<compile_context>
chip_gen: v7x
topology: tpu7x:2x2x1
jax: 0.10.0
libtpu: 0.0.40
codegen_flags: <defaults>
</compile_context>

<pallas_src>
import functools

import jax
import jax.numpy as jnp
from jax.experimental import pallas as pl
from jax.experimental.pallas import tpu as pltpu


LRELU_SLOPE = 0.2
IN_EPS = 1e-5

# Explicit scoped-VMEM cap: above the 16 MiB v5e default, equal to the 32 MiB v6e/v7x
# defaults, and well below physical VMEM on every generation.
_VMEM_LIMIT_BYTES = 32 * 1024 * 1024


def _round_up(x, m):
    return (x + m - 1) // m * m


@functools.lru_cache(maxsize=None)
def _tpu_tuning():
    """Per-generation (VMEM working-set budget bytes, MXU row alignment) for tiling."""
    try:
        kind = jax.devices()[0].device_kind.lower()
    except Exception:
        kind = ""
    if "v5 lite" in kind or "v5e" in kind or "v5lite" in kind:
        return 12 * 1024 * 1024, 128       # v5e: 16 MiB scoped default -> stay under it
    if "v6" in kind:
        return 26 * 1024 * 1024, 256       # v6e: 128 MiB physical, raise past old 10 MiB
    if "v7" in kind:
        return 22 * 1024 * 1024, 256       # v7x: 64 MiB physical -> keep headroom
    return 16 * 1024 * 1024, 256           # unknown generation: conservative


# ----------------------------------------------------------------------------
# Pallas kernels
# ----------------------------------------------------------------------------
def _matmul_bias_act_kernel(x_ref, w_ref, b_ref, o_ref, *, slope):
    """(tile_s, K) @ (K, OCp) with f32 accumulate, + bias, optional LeakyReLU."""
    acc = jnp.dot(x_ref[...], w_ref[...], preferred_element_type=jnp.float32)
    acc = acc + b_ref[...]                        # (1, OCp) broadcasts over tile_s
    if slope is not None:
        acc = jnp.where(acc >= 0.0, acc, slope * acc)
    o_ref[...] = acc.astype(o_ref.dtype)          # bf16 store for intermediate layers


def _conv_inorm_lrelu_kernel(x_ref, w_ref, b_ref, o_ref, *, eps, slope):
    """Per-sample fused conv-as-matmul + InstanceNorm2d + LeakyReLU (centered variance)."""
    acc = jnp.dot(x_ref[...], w_ref[...], preferred_element_type=jnp.float32)  # (S, OCp)
    acc = acc + b_ref[...]
    mean = jnp.mean(acc, axis=0, keepdims=True)
    diff = acc - mean
    var = jnp.mean(diff * diff, axis=0, keepdims=True)   # biased var, matches PyTorch IN
    y = diff * jax.lax.rsqrt(var + eps)
    o_ref[...] = jnp.where(y >= 0.0, y, slope * y).astype(o_ref.dtype)


def _inorm_lrelu_kernel(x_ref, o_ref, *, eps, slope):
    """Fallback: standalone per-sample InstanceNorm2d + LeakyReLU on a conv output."""
    x = x_ref[...].astype(jnp.float32)            # (S, OCp)
    mean = jnp.mean(x, axis=0, keepdims=True)
    diff = x - mean
    var = jnp.mean(diff * diff, axis=0, keepdims=True)
    y = diff * jax.lax.rsqrt(var + eps)
    o_ref[...] = jnp.where(y >= 0.0, y, slope * y).astype(o_ref.dtype)


def _final_matmul_kernel(x_ref, w_ref, b_ref, o_ref):
    """Final cout=1 conv: MXU matmul against the padded weight, store lane 0 only."""
    acc = jnp.dot(x_ref[...], w_ref[...], preferred_element_type=jnp.float32)
    acc = acc + b_ref[...]
    o_ref[...] = acc[:, : o_ref.shape[-1]]


# ----------------------------------------------------------------------------
# Pallas wrappers
# ----------------------------------------------------------------------------
def _pick_tile_s(S, K, OCp, in_bytes, out_bytes):
    """Largest S tile (multiple of 16, MXU-height aligned when large) fitting the budget."""
    budget, mxu_align = _tpu_tuning()
    tile = min(2048, _round_up(S, 16))            # 16: bf16 sublane packing

    def need(t):
        # double-buffered input + output tiles, plus resident weight/bias
        return 2 * t * K * in_bytes + 2 * t * OCp * out_bytes + K * OCp * in_bytes + OCp * 4

    while tile > 16 and need(tile) > budget:
        tile = _round_up(tile // 2, 16)
    if tile > mxu_align:
        tile = tile // mxu_align * mxu_align      # fill the MXU height (256 / 128 tall)
    return max(tile, 16)


def conv_matmul(patches3, w, b, *, slope, out_dtype):
    """patches3 (N, S, K) @ w (K, OCp) + b, optional LeakyReLU -> (N, S, OCp) out_dtype."""
    N, S, K = patches3.shape
    OCp = w.shape[1]
    in_bytes = jnp.dtype(patches3.dtype).itemsize
    out_bytes = jnp.dtype(out_dtype).itemsize
    tile_s = _pick_tile_s(S, K, OCp, in_bytes, out_bytes)
    s_pad = _round_up(S, tile_s)
    if s_pad != S:                                # no-op at the shapes used here
        patches3 = jnp.pad(patches3, ((0, 0), (0, s_pad - S), (0, 0)))
    out = pl.pallas_call(
        functools.partial(_matmul_bias_act_kernel, slope=slope),
        grid=(N, s_pad // tile_s),                # batch axis => >= 2 steps (v7x megacore)
        in_specs=[
            pl.BlockSpec((None, tile_s, K), lambda n, s: (n, s, 0)),
            pl.BlockSpec((K, OCp), lambda n, s: (0, 0)),      # resident across the grid
            pl.BlockSpec((1, OCp), lambda n, s: (0, 0)),
        ],
        out_specs=pl.BlockSpec((None, tile_s, OCp), lambda n, s: (n, s, 0)),
        out_shape=jax.ShapeDtypeStruct((N, s_pad, OCp), out_dtype),
        compiler_params=pltpu.CompilerParams(
            dimension_semantics=("parallel", "parallel"),
            vmem_limit_bytes=_VMEM_LIMIT_BYTES),
    )(patches3, w, b)
    return out[:, :S] if s_pad != S else out


def conv_inorm_lrelu_fused(patches3, w, b, *, eps, slope, out_dtype):
    """Fused conv + InstanceNorm + LeakyReLU, grid over batch, whole sample per step."""
    N, S, K = patches3.shape
    OCp = w.shape[1]
    return pl.pallas_call(
        functools.partial(_conv_inorm_lrelu_kernel, eps=eps, slope=slope),
        grid=(N,),
        in_specs=[
            pl.BlockSpec((None, S, K), lambda n: (n, 0, 0)),
            pl.BlockSpec((K, OCp), lambda n: (0, 0)),
            pl.BlockSpec((1, OCp), lambda n: (0, 0)),
        ],
        out_specs=pl.BlockSpec((None, S, OCp), lambda n: (n, 0, 0)),
        out_shape=jax.ShapeDtypeStruct((N, S, OCp), out_dtype),
        compiler_params=pltpu.CompilerParams(
            dimension_semantics=("parallel",),
            vmem_limit_bytes=_VMEM_LIMIT_BYTES),
    )(patches3, w, b)


def inorm_lrelu(x3, *, eps, slope, out_dtype):
    """Standalone per-sample InstanceNorm + LeakyReLU (fallback when fusion won't fit)."""
    N, S, C = x3.shape
    return pl.pallas_call(
        functools.partial(_inorm_lrelu_kernel, eps=eps, slope=slope),
        grid=(N,),
        in_specs=[pl.BlockSpec((None, S, C), lambda n: (n, 0, 0))],
        out_specs=pl.BlockSpec((None, S, C), lambda n: (n, 0, 0)),
        out_shape=jax.ShapeDtypeStruct((N, S, C), out_dtype),
        compiler_params=pltpu.CompilerParams(
            dimension_semantics=("parallel",),
            vmem_limit_bytes=_VMEM_LIMIT_BYTES),
    )(x3)


def conv_norm_act(patches3, w, b, *, eps=IN_EPS, slope=LRELU_SLOPE, out_dtype=jnp.bfloat16):
    """Dispatch: fused kernel if the per-sample (S, K) block fits the VMEM budget."""
    N, S, K = patches3.shape
    OCp = w.shape[1]
    in_bytes = jnp.dtype(patches3.dtype).itemsize
    budget, _ = _tpu_tuning()
    fused_need = 2 * S * K * in_bytes + 2 * S * OCp * 2 + K * OCp * in_bytes + OCp * 4
    if fused_need <= budget:
        return conv_inorm_lrelu_fused(patches3, w, b, eps=eps, slope=slope,
                                      out_dtype=out_dtype)
    # Fallback: S-tiled conv (f32 out for norm precision) + separate per-sample norm.
    conv = conv_matmul(patches3, w, b, slope=None, out_dtype=jnp.float32)
    return inorm_lrelu(conv, eps=eps, slope=slope, out_dtype=out_dtype)


def final_conv(patches3, w, b, *, out_channels):
    """Final cout=1 conv: per-sample matmul, store only the real output channel(s)."""
    N, S, K = patches3.shape
    OCp = w.shape[1]
    return pl.pallas_call(
        _final_matmul_kernel,
        grid=(N,),
        in_specs=[
            pl.BlockSpec((None, S, K), lambda n: (n, 0, 0)),
            pl.BlockSpec((K, OCp), lambda n: (0, 0)),
            pl.BlockSpec((1, OCp), lambda n: (0, 0)),
        ],
        out_specs=pl.BlockSpec((None, S, out_channels), lambda n: (n, 0, 0)),
        out_shape=jax.ShapeDtypeStruct((N, S, out_channels), jnp.float32),
        compiler_params=pltpu.CompilerParams(
            dimension_semantics=("parallel",),
            vmem_limit_bytes=_VMEM_LIMIT_BYTES),
    )(patches3, w, b)


# ----------------------------------------------------------------------------
# Plain-JAX glue: im2col patch extraction, configs, parameters
# ----------------------------------------------------------------------------
def im2col(x_nhwc, k, stride, pad, dtype):
    """(N,H,W,C) -> patches (N, OH*OW, k*k*C) in (kh, kw, c) order, cast to `dtype`."""
    N, H, W, C = x_nhwc.shape
    xp = jnp.pad(x_nhwc, ((0, 0), (pad, pad), (pad, pad), (0, 0)))
    OH = (H + 2 * pad - k) // stride + 1
    OW = (W + 2 * pad - k) // stride + 1
    cols = []
    for i in range(k):
        for j in range(k):
            cols.append(xp[:, i:i + stride * OH:stride, j:j + stride * OW:stride, :])
    cols = jnp.stack(cols, axis=3)                # (N, OH, OW, k*k, C)
    cols = cols.reshape(N, OH * OW, k * k * C)
    return cols.astype(dtype), (N, OH, OW)


def build_configs(input_nc, resolution, ndf):
    if resolution < 32:
        disc_layers = 2
    elif resolution < 128:
        disc_layers = 3
    else:
        disc_layers = 4
    cfgs = [dict(cin=input_nc, cout=ndf, k=4, s=2, p=1, norm=False, act=True)]
    if disc_layers > 1:
        cfgs.append(dict(cin=ndf, cout=ndf * 2, k=4, s=2, p=1, norm=True, act=True))
    if disc_layers > 2:
        cfgs.append(dict(cin=ndf * 2, cout=ndf * 4, k=4, s=2, p=1, norm=True, act=True))
    if disc_layers > 3:
        cfgs.append(dict(cin=ndf * 4, cout=1, k=4, s=1, p=1, norm=False, act=False))
    else:
        final_in = ndf * 2 ** (disc_layers - 1)
        cfgs.append(dict(cin=final_in, cout=1, k=4, s=1, p=1, norm=False, act=False))
    return cfgs


def init_params(key, cfgs):
    """Deterministic synthetic init (PyTorch-like uniform(-1/sqrt(fan_in), +)).

    Weights are stored (KH, KW, Cin, Cout) so the flattened (kh, kw, cin) order matches
    the im2col layout. Real PyTorch checkpoints ((Cout, Cin, KH, KW)) need a transpose
    at the load boundary.
    """
    params = []
    for cfg in cfgs:
        key, kw, kb = jax.random.split(key, 3)
        fan_in = cfg["cin"] * cfg["k"] * cfg["k"]
        bound = 1.0 / (fan_in ** 0.5)
        w = jax.random.uniform(kw, (cfg["k"], cfg["k"], cfg["cin"], cfg["cout"]),
                               jnp.float32, -bound, bound)
        b = jax.random.uniform(kb, (1, cfg["cout"]), jnp.float32, -bound, bound)
        params.append((w, b))
    return params


# ----------------------------------------------------------------------------
# Forward pass
# ----------------------------------------------------------------------------
def progressive_discriminator(x_nchw, cfgs, params):
    x = jnp.transpose(x_nchw, (0, 2, 3, 1)).astype(jnp.float32)   # NCHW -> NHWC
    n_layers = len(cfgs)
    for li, (cfg, (w, b)) in enumerate(zip(cfgs, params)):
        k, s, p, cout = cfg["k"], cfg["s"], cfg["p"], cfg["cout"]
        is_final = li == n_layers - 1
        cin_pad = x.shape[-1]                       # carry the 128-padded channel dim
        compute_dtype = jnp.float32 if li == 0 else jnp.bfloat16
        patches, (N, OH, OW) = im2col(x, k, s, p, dtype=compute_dtype)  # (N, S, K)
        K = k * k * cin_pad
        OCp = _round_up(cout, 128)                  # lane-dense, unmasked stores
        # Zero-pad weight rows for padded input channels and columns for padded outputs.
        w2 = jnp.pad(w, ((0, 0), (0, 0),
                         (0, cin_pad - cfg["cin"]), (0, OCp - cout)))
        w2 = w2.reshape(K, OCp).astype(compute_dtype)
        b2 = jnp.pad(b, ((0, 0), (0, OCp - cout))).astype(jnp.float32)
        if is_final:
            y = final_conv(patches, w2, b2, out_channels=cout)     # (N, S, 1) f32
            x = y.reshape(N, OH, OW, cout)
        elif cfg["norm"]:
            y = conv_norm_act(patches, w2, b2)                     # (N, S, OCp) bf16
            x = y.reshape(N, OH, OW, OCp)
        else:
            slope = LRELU_SLOPE if cfg["act"] else None
            y = conv_matmul(patches, w2, b2, slope=slope, out_dtype=jnp.bfloat16)
            x = y.reshape(N, OH, OW, OCp)           # padded channels are exactly zero
    return jnp.transpose(x, (0, 3, 1, 2)).astype(jnp.float32)      # NHWC -> NCHW


if __name__ == "__main__":
    key = jax.random.PRNGKey(0)
    k_x, k_p = jax.random.split(key)

    # Small shapes: batch=2, input_nc=4, resolution=16 (=> 2 disc layers), ndf=16.
    input_nc, resolution, ndf = 4, 16, 16
    x = jax.random.normal(k_x, (2, input_nc, resolution, resolution), jnp.float32)

    cfgs = build_configs(input_nc, resolution, ndf)
    params = init_params(k_p, cfgs)

    fwd = jax.jit(lambda xx, pp: progressive_discriminator(xx, cfgs, pp))
    out = jax.block_until_ready(fwd(x, params))

    assert out.shape == (2, 1, 3, 3), out.shape    # 16 -> 8 -> 4 -> (k=4,p=1,s=1) -> 3
    assert out.dtype == jnp.float32
    assert bool(jnp.all(jnp.isfinite(out)))
    print("KERNEL_OK")
</pallas_src>

<mosaic_0001>
module attributes {stable_mosaic.version = 11 : i64} {
  func.func @_matmul_bias_act_kernel(%arg0: i32, %arg1: i32, %arg2: memref<1x64x64xf32, #tpu.memory_space<vmem>>, %arg3: memref<64x128xf32, #tpu.memory_space<vmem>>, %arg4: memref<1x128xf32, #tpu.memory_space<vmem>>, %arg5: memref<1x64x128xbf16, #tpu.memory_space<vmem>>) attributes {dimension_semantics = [#tpu.dimension_semantics<parallel>, #tpu.dimension_semantics<parallel>], iteration_bounds = array<i64: 2, 1>, scalar_prefetch = 0 : i64, scratch_operands = 0 : i64, tpu.core_type = #tpu.core_type<tc>, window_params = [{transform_indices = @transform_0, window_bounds = array<i64: 1, 64, 64>}, {pipeline_mode = #tpu.pipeline_mode<synchronous>, transform_indices = @transform_1, window_bounds = array<i64: 64, 128>}, {pipeline_mode = #tpu.pipeline_mode<synchronous>, transform_indices = @transform_2, window_bounds = array<i64: 1, 128>}, {transform_indices = @transform_3, window_bounds = array<i64: 1, 64, 128>}]} {
    %c0 = arith.constant 0 : index
    %c0_0 = arith.constant 0 : index
    %c0_1 = arith.constant 0 : index
    %0 = vector.load %arg2[%c0, %c0_0, %c0_1] : memref<1x64x64xf32, #tpu.memory_space<vmem>>, vector<1x64x64xf32>
    %1 = vector.shape_cast %0 : vector<1x64x64xf32> to vector<64x64xf32>
    %c0_2 = arith.constant 0 : index
    %c0_3 = arith.constant 0 : index
    %2 = vector.load %arg3[%c0_2, %c0_3] : memref<64x128xf32, #tpu.memory_space<vmem>>, vector<64x128xf32>
    %cst = arith.constant dense<0.000000e+00> : vector<64x128xf32>
    %3 = tpu.matmul %1, %2, %cst {dimension_numbers = #tpu.dot_dimension_numbers<[1], [0], [0], [1], [0, 0, 1, 1], [], []>} : vector<64x64xf32>, vector<64x128xf32>, vector<64x128xf32> -> vector<64x128xf32>
    %c0_4 = arith.constant 0 : index
    %c0_5 = arith.constant 0 : index
    %4 = vector.load %arg4[%c0_4, %c0_5] : memref<1x128xf32, #tpu.memory_space<vmem>>, vector<1x128xf32>
    %5 = vector.broadcast %4 : vector<1x128xf32> to vector<64x128xf32>
    %6 = arith.addf %3, %5 : vector<64x128xf32>
    %cst_6 = arith.constant 0.000000e+00 : f32
    %7 = vector.broadcast %cst_6 : f32 to vector<64x128xf32>
    %8 = arith.cmpf oge, %6, %7 : vector<64x128xf32>
    %cst_7 = arith.constant 2.000000e-01 : f32
    %9 = vector.broadcast %cst_7 : f32 to vector<64x128xf32>
    %10 = arith.mulf %9, %6 : vector<64x128xf32>
    %11 = arith.select %8, %6, %10 : vector<64x128xi1>, vector<64x128xf32>
    %12 = arith.truncf %11 : vector<64x128xf32> to vector<64x128xbf16>
    %c0_8 = arith.constant 0 : index
    %c0_9 = arith.constant 0 : index
    %c0_10 = arith.constant 0 : index
    %13 = vector.load %arg5[%c0_8, %c0_9, %c0_10] : memref<1x64x128xbf16, #tpu.memory_space<vmem>>, vector<1x64x128xbf16>
    %14 = vector.shape_cast %13 : vector<1x64x128xbf16> to vector<64x128xbf16>
    %15 = vector.shape_cast %12 : vector<64x128xbf16> to vector<1x64x128xbf16>
    tpu.vector_store %arg5[%c0_8, %c0_9, %c0_10], %15 {strides = array<i32>} : memref<1x64x128xbf16, #tpu.memory_space<vmem>>, vector<1x64x128xbf16>,
    return
  }
  func.func @transform_0(%arg0: i32, %arg1: i32) -> (i32, i32, i32) {
    %c0_i32 = arith.constant 0 : i32
    %c0_i32_0 = arith.constant 0 : i32
    return %arg0, %arg1, %c0_i32 : i32, i32, i32
  }
  func.func @transform_1(%arg0: i32, %arg1: i32) -> (i32, i32) {
    %c0_i32 = arith.constant 0 : i32
    %c0_i32_0 = arith.constant 0 : i32
    %c0_i32_1 = arith.constant 0 : i32
    return %c0_i32, %c0_i32_0 : i32, i32
  }
  func.func @transform_2(%arg0: i32, %arg1: i32) -> (i32, i32) {
    %c0_i32 = arith.constant 0 : i32
    %c0_i32_0 = arith.constant 0 : i32
    %c0_i32_1 = arith.constant 0 : i32
    return %c0_i32, %c0_i32_0 : i32, i32
  }
  func.func @transform_3(%arg0: i32, %arg1: i32) -> (i32, i32, i32) {
    %c0_i32 = arith.constant 0 : i32
    %c0_i32_0 = arith.constant 0 : i32
    return %arg0, %arg1, %c0_i32 : i32, i32, i32
  }
}

module attributes {stable_mosaic.version = 11 : i64} {
  func.func @_conv_inorm_lrelu_kernel(%arg0: i32, %arg1: memref<1x16x2048xbf16, #tpu.memory_space<vmem>>, %arg2: memref<2048x128xbf16, #tpu.memory_space<vmem>>, %arg3: memref<1x128xf32, #tpu.memory_space<vmem>>, %arg4: memref<1x16x128xbf16, #tpu.memory_space<vmem>>) attributes {dimension_semantics = [#tpu.dimension_semantics<parallel>], iteration_bounds = array<i64: 2>, scalar_prefetch = 0 : i64, scratch_operands = 0 : i64, tpu.core_type = #tpu.core_type<tc>, window_params = [{transform_indices = @transform_0, window_bounds = array<i64: 1, 16, 2048>}, {pipeline_mode = #tpu.pipeline_mode<synchronous>, transform_indices = @transform_1, window_bounds = array<i64: 2048, 128>}, {pipeline_mode = #tpu.pipeline_mode<synchronous>, transform_indices = @transform_2, window_bounds = array<i64: 1, 128>}, {transform_indices = @transform_3, window_bounds = array<i64: 1, 16, 128>}]} {
    %c0 = arith.constant 0 : index
    %c0_0 = arith.constant 0 : index
    %c0_1 = arith.constant 0 : index
    %0 = vector.load %arg1[%c0, %c0_0, %c0_1] : memref<1x16x2048xbf16, #tpu.memory_space<vmem>>, vector<1x16x2048xbf16>
    %1 = vector.shape_cast %0 : vector<1x16x2048xbf16> to vector<16x2048xbf16>
    %c0_2 = arith.constant 0 : index
    %c0_3 = arith.constant 0 : index
    %2 = vector.load %arg2[%c0_2, %c0_3] : memref<2048x128xbf16, #tpu.memory_space<vmem>>, vector<2048x128xbf16>
    %cst = arith.constant dense<0.000000e+00> : vector<16x128xf32>
    %3 = tpu.matmul %1, %2, %cst {dimension_numbers = #tpu.dot_dimension_numbers<[1], [0], [0], [1], [0, 0, 1, 1], [], []>} : vector<16x2048xbf16>, vector<2048x128xbf16>, vector<16x128xf32> -> vector<16x128xf32>
    %c0_4 = arith.constant 0 : index
    %c0_5 = arith.constant 0 : index
    %4 = vector.load %arg3[%c0_4, %c0_5] : memref<1x128xf32, #tpu.memory_space<vmem>>, vector<1x128xf32>
    %5 = vector.broadcast %4 : vector<1x128xf32> to vector<16x128xf32>
    %6 = arith.addf %3, %5 : vector<16x128xf32>
    %cst_6 = arith.constant dense<0.000000e+00> : vector<128xf32>
    %7 = vector.multi_reduction <add>, %6, %cst_6 [0] : vector<16x128xf32> to vector<128xf32>
    %8 = vector.shape_cast %7 : vector<128xf32> to vector<1x128xf32>
    %cst_7 = arith.constant 1.600000e+01 : f32
    %9 = vector.broadcast %cst_7 : f32 to vector<1x128xf32>
    %10 = arith.divf %8, %9 : vector<1x128xf32>
    %11 = vector.broadcast %10 : vector<1x128xf32> to vector<16x128xf32>
    %12 = arith.subf %6, %11 : vector<16x128xf32>
    %13 = arith.mulf %12, %12 : vector<16x128xf32>
    %cst_8 = arith.constant dense<0.000000e+00> : vector<128xf32>
    %14 = vector.multi_reduction <add>, %13, %cst_8 [0] : vector<16x128xf32> to vector<128xf32>
    %15 = vector.shape_cast %14 : vector<128xf32> to vector<1x128xf32>
    %cst_9 = arith.constant 1.600000e+01 : f32
    %16 = vector.broadcast %cst_9 : f32 to vector<1x128xf32>
    %17 = arith.divf %15, %16 : vector<1x128xf32>
    %cst_10 = arith.constant 9.99999974E-6 : f32
    %18 = vector.broadcast %cst_10 : f32 to vector<1x128xf32>
    %19 = arith.addf %17, %18 : vector<1x128xf32>
    %20 = math.rsqrt %19 : vector<1x128xf32>
    %21 = vector.broadcast %20 : vector<1x128xf32> to vector<16x128xf32>
    %22 = arith.mulf %12, %21 : vector<16x128xf32>
    %cst_11 = arith.constant 0.000000e+00 : f32
    %23 = vector.broadcast %cst_11 : f32 to vector<16x128xf32>
    %24 = arith.cmpf oge, %22, %23 : vector<16x128xf32>
    %cst_12 = arith.constant 2.000000e-01 : f32
    %25 = vector.broadcast %cst_12 : f32 to vector<16x128xf32>
    %26 = arith.mulf %25, %22 : vector<16x128xf32>
    %27 = arith.select %24, %22, %26 : vector<16x128xi1>, vector<16x128xf32>
    %28 = arith.truncf %27 : vector<16x128xf32> to vector<16x128xbf16>
    %c0_13 = arith.constant 0 : index
    %c0_14 = arith.constant 0 : index
    %c0_15 = arith.constant 0 : index
    %29 = vector.load %arg4[%c0_13, %c0_14, %c0_15] : memref<1x16x128xbf16, #tpu.memory_space<vmem>>, vector<1x16x128xbf16>
    %30 = vector.shape_cast %29 : vector<1x16x128xbf16> to vector<16x128xbf16>
    %31 = vector.shape_cast %28 : vector<16x128xbf16> to vector<1x16x128xbf16>
    tpu.vector_store %arg4[%c0_13, %c0_14, %c0_15], %31 {strides = array<i32>} : memref<1x16x128xbf16, #tpu.memory_space<vmem>>, vector<1x16x128xbf16>,
    return
  }
  func.func @transform_0(%arg0: i32) -> (i32, i32, i32) {
    %c0_i32 = arith.constant 0 : i32
    %c0_i32_0 = arith.constant 0 : i32
    %c0_i32_1 = arith.constant 0 : i32
    return %arg0, %c0_i32, %c0_i32_0 : i32, i32, i32
  }
  func.func @transform_1(%arg0: i32) -> (i32, i32) {
    %c0_i32 = arith.constant 0 : i32
    %c0_i32_0 = arith.constant 0 : i32
    %c0_i32_1 = arith.constant 0 : i32
    return %c0_i32, %c0_i32_0 : i32, i32
  }
  func.func @transform_2(%arg0: i32) -> (i32, i32) {
    %c0_i32 = arith.constant 0 : i32
    %c0_i32_0 = arith.constant 0 : i32
    %c0_i32_1 = arith.constant 0 : i32
    return %c0_i32, %c0_i32_0 : i32, i32
  }
  func.func @transform_3(%arg0: i32) -> (i32, i32, i32) {
    %c0_i32 = arith.constant 0 : i32
    %c0_i32_0 = arith.constant 0 : i32
    %c0_i32_1 = arith.constant 0 : i32
    return %arg0, %c0_i32, %c0_i32_0 : i32, i32, i32
  }
}

module attributes {stable_mosaic.version = 11 : i64} {
  func.func @_final_matmul_kernel(%arg0: i32, %arg1: memref<1x9x2048xbf16, #tpu.memory_space<vmem>>, %arg2: memref<2048x128xbf16, #tpu.memory_space<vmem>>, %arg3: memref<1x128xf32, #tpu.memory_space<vmem>>, %arg4: memref<1x9x1xf32, #tpu.memory_space<vmem>>) attributes {dimension_semantics = [#tpu.dimension_semantics<parallel>], iteration_bounds = array<i64: 2>, scalar_prefetch = 0 : i64, scratch_operands = 0 : i64, tpu.core_type = #tpu.core_type<tc>, window_params = [{transform_indices = @transform_0, window_bounds = array<i64: 1, 9, 2048>}, {pipeline_mode = #tpu.pipeline_mode<synchronous>, transform_indices = @transform_1, window_bounds = array<i64: 2048, 128>}, {pipeline_mode = #tpu.pipeline_mode<synchronous>, transform_indices = @transform_2, window_bounds = array<i64: 1, 128>}, {transform_indices = @transform_3, window_bounds = array<i64: 1, 9, 1>}]} {
    %c0 = arith.constant 0 : index
    %c0_0 = arith.constant 0 : index
    %c0_1 = arith.constant 0 : index
    %0 = vector.load %arg1[%c0, %c0_0, %c0_1] : memref<1x9x2048xbf16, #tpu.memory_space<vmem>>, vector<1x9x2048xbf16>
    %1 = vector.shape_cast %0 : vector<1x9x2048xbf16> to vector<9x2048xbf16>
    %c0_2 = arith.constant 0 : index
    %c0_3 = arith.constant 0 : index
    %2 = vector.load %arg2[%c0_2, %c0_3] : memref<2048x128xbf16, #tpu.memory_space<vmem>>, vector<2048x128xbf16>
    %cst = arith.constant dense<0.000000e+00> : vector<9x128xf32>
    %3 = tpu.matmul %1, %2, %cst {dimension_numbers = #tpu.dot_dimension_numbers<[1], [0], [0], [1], [0, 0, 1, 1], [], []>} : vector<9x2048xbf16>, vector<2048x128xbf16>, vector<9x128xf32> -> vector<9x128xf32>
    %c0_4 = arith.constant 0 : index
    %c0_5 = arith.constant 0 : index
    %4 = vector.load %arg3[%c0_4, %c0_5] : memref<1x128xf32, #tpu.memory_space<vmem>>, vector<1x128xf32>
    %5 = vector.broadcast %4 : vector<1x128xf32> to vector<9x128xf32>
    %6 = arith.addf %3, %5 : vector<9x128xf32>
    %7 = vector.extract_strided_slice %6 {offsets = [0, 0], sizes = [9, 1], strides = [1, 1]} : vector<9x128xf32> to vector<9x1xf32>
    %c0_6 = arith.constant 0 : index
    %c0_7 = arith.constant 0 : index
    %c0_8 = arith.constant 0 : index
    %8 = vector.load %arg4[%c0_6, %c0_7, %c0_8] : memref<1x9x1xf32, #tpu.memory_space<vmem>>, vector<1x9x1xf32>
    %9 = vector.shape_cast %8 : vector<1x9x1xf32> to vector<9x1xf32>
    %10 = vector.shape_cast %7 : vector<9x1xf32> to vector<1x9x1xf32>
    tpu.vector_store %arg4[%c0_6, %c0_7, %c0_8], %10 {strides = array<i32>} : memref<1x9x1xf32, #tpu.memory_space<vmem>>, vector<1x9x1xf32>,
    return
  }
  func.func @transform_0(%arg0: i32) -> (i32, i32, i32) {
    %c0_i32 = arith.constant 0 : i32
    %c0_i32_0 = arith.constant 0 : i32
    %c0_i32_1 = arith.constant 0 : i32
    return %arg0, %c0_i32, %c0_i32_0 : i32, i32, i32
  }
  func.func @transform_1(%arg0: i32) -> (i32, i32) {
    %c0_i32 = arith.constant 0 : i32
    %c0_i32_0 = arith.constant 0 : i32
    %c0_i32_1 = arith.constant 0 : i32
    return %c0_i32, %c0_i32_0 : i32, i32
  }
  func.func @transform_2(%arg0: i32) -> (i32, i32) {
    %c0_i32 = arith.constant 0 : i32
    %c0_i32_0 = arith.constant 0 : i32
    %c0_i32_1 = arith.constant 0 : i32
    return %c0_i32, %c0_i32_0 : i32, i32
  }
  func.func @transform_3(%arg0: i32) -> (i32, i32, i32) {
    %c0_i32 = arith.constant 0 : i32
    %c0_i32_0 = arith.constant 0 : i32
    %c0_i32_1 = arith.constant 0 : i32
    return %arg0, %c0_i32, %c0_i32_0 : i32, i32, i32
  }
}

</mosaic_0001>

<llo_original>
// kernel: _lambda_.3
$region0: #{_lambda_.3}
  #allocation0 [shape = 'u32[]', space=smem, size = 0x4, offset = 0x4, fixed_abs, tag = 'smem constant byte address 0x4 - core index']
  #allocation1 [shape = 'u32[144,128]{1,0:T(1,128)}', space=vmem, size = 0x12000, scoped, tag = 'internal scratch']
  %s0 = inlined_call_operand.vmem [shape: f32[2,64,64], index: 0, kind: input, shape index: {}]
  %s1 = inlined_call_operand.vmem [shape: f32[64,128], index: 1, kind: input, shape index: {}]
  %s2 = inlined_call_operand.vmem [shape: f32[1,128], index: 2, kind: input, shape index: {}]
  %s3 = inlined_call_operand.vmem [shape: bf16[2,64,128], index: 3, kind: output, shape index: {}]
  %s4 = sld [smem:[#allocation0]]
  $region45: #{_lambda_.3} parent=0
    _
  %s6 = ssub.s32 1, %s4
  %s7 = scalar_select 0, %s6, %s4
  loop: start=0, step=1, limit=4
  $region2: #{_lambda_.3} parent=0 // loop_pre_header
    _
  $region3: #{_lambda_.3} parent=0 // loop_header
    %s9 = sphi 0, %s13
    %p10 = scmp.ge.s32.totalorder %s9, 4
    %s16 = sphi 0, %s28
    %s17 = sphi 0, %s24
    %s18 = sphi 0, %s16
    %s19 = sphi 0, %s17
    %s20 = sphi 0, %s18
    %s21 = sphi 0, %s19
    %s33 = sphi 0, %s35
    %s36 = sphi 0, %s33
    %s37 = sphi 0, %s36
    %s53 = sphi 0, %s37
    %s57 = sphi 0, %s57
    %s59 = sphi 0, %s57
    %s60 = sphi 0, %s59
    %s74 = sphi 0, %s60
    %s78 = sphi 0, %s78
    %s80 = sphi 0, %s78
    %s81 = sphi 0, %s80
    %s95 = sphi 0, %s81
    %s103 = sphi 0, %s105
    %s106 = sphi 0, %s103
    %s107 = sphi 0, %s106
    %s123 = sphi 0, %s107
  $region4: #{_lambda_.3} parent=0 // loop_header_branch
    %12 = sbr.rel (%p10) target = $region8
  $region5: #{_lambda_.3} parent=0 // loop_body
    %s14 = ssub.s32 %s9, 1
    %s15 = ssub.s32 %s9, 2
    %s22 = sadd.s32 1, %s17
    %p23 = scmp.ge.s32.totalorder %s22, 1
    %s24 = scalar_select %p23, 0, %s22
    %s25 = sadd.s32 1, %s16
    %s26 = scalar_select %p23, %s25, %s16
    %p27 = scmp.ge.s32.totalorder %s26, 2
    %s28 = scalar_select %p27, 0, %s26
    %s29 = ssub.s32 %s16, %s28
    %s30 = ssub.s32 %s17, %s24
    %s31 = sor.u32 %s29, %s30
    %p32 = scmp.eq.s32.totalorder %s31, 0
    %s34 = sadd.s32 %s33, 1
    %s35 = scalar_select %p32, %s33, %s34
    %p38 = pneg %p32
    %p39 = scmp.eq.s32.totalorder %s9, 1
    %p40 = por %p38, %p39
    %p41 = scmp.ne.s32.totalorder %s33, %s36
    %p42 = scmp.eq.s32.totalorder %s9, 0
    %p43 = por %p41, %p42
    %p44 = scmp.ne.s32.totalorder %s33, %s36
    %p45 = scmp.eq.s32.totalorder %s14, 1
    %p46 = por %p44, %p45
    %p47 = scmp.ne.s32.totalorder %s36, %s37
    %p48 = scmp.eq.s32.totalorder %s14, 0
    %p49 = por %p47, %p48
    %p50 = scmp.ne.s32.totalorder %s36, %s37
    %p51 = scmp.eq.s32.totalorder %s15, 1
    %p52 = por %p50, %p51
    %p54 = scmp.ne.s32.totalorder %s37, %s53
    %p55 = scmp.eq.s32.totalorder %s15, 0
    %p56 = por %p54, %p55
    %s58 = sadd.s32 %s57, 1
    %p61 = scmp.eq.s32.totalorder %s9, 1
    %p62 = scmp.ne.s32.totalorder %s57, %s59
    %p63 = scmp.eq.s32.totalorder %s9, 0
    %p64 = por %p62, %p63
    %p65 = scmp.ne.s32.totalorder %s57, %s59
    %p66 = scmp.eq.s32.totalorder %s14, 1
    %p67 = por %p65, %p66
    %p68 = scmp.ne.s32.totalorder %s59, %s60
    %p69 = scmp.eq.s32.totalorder %s14, 0
    %p70 = por %p68, %p69
    %p71 = scmp.ne.s32.totalorder %s59, %s60
    %p72 = scmp.eq.s32.totalorder %s15, 1
    %p73 = por %p71, %p72
    %p75 = scmp.ne.s32.totalorder %s60, %s74
    %p76 = scmp.eq.s32.totalorder %s15, 0
    %p77 = por %p75, %p76
    %s79 = sadd.s32 %s78, 1
    %p82 = scmp.eq.s32.totalorder %s9, 1
    %p83 = scmp.ne.s32.totalorder %s78, %s80
    %p84 = scmp.eq.s32.totalorder %s9, 0
    %p85 = por %p83, %p84
    %p86 = scmp.ne.s32.totalorder %s78, %s80
    %p87 = scmp.eq.s32.totalorder %s14, 1
    %p88 = por %p86, %p87
    %p89 = scmp.ne.s32.totalorder %s80, %s81
    %p90 = scmp.eq.s32.totalorder %s14, 0
    %p91 = por %p89, %p90
    %p92 = scmp.ne.s32.totalorder %s80, %s81
    %p93 = scmp.eq.s32.totalorder %s15, 1
    %p94 = por %p92, %p93
    %p96 = scmp.ne.s32.totalorder %s81, %s95
    %p97 = scmp.eq.s32.totalorder %s15, 0
    %p98 = por %p96, %p97
    %s99 = ssub.s32 %s16, %s28
    %s100 = ssub.s32 %s17, %s24
    %s101 = sor.u32 %s99, %s100
    %p102 = scmp.eq.s32.totalorder %s101, 0
    %s104 = sadd.s32 %s103, 1
    %s105 = scalar_select %p102, %s103, %s104
    %p108 = pneg %p102
    %p109 = scmp.eq.s32.totalorder %s9, 1
    %p110 = por %p108, %p109
    %p111 = scmp.ne.s32.totalorder %s103, %s106
    %p112 = scmp.eq.s32.totalorder %s9, 0
    %p113 = por %p111, %p112
    %p114 = scmp.ne.s32.totalorder %s103, %s106
    %p115 = scmp.eq.s32.totalorder %s14, 1
    %p116 = por %p114, %p115
    %p117 = scmp.ne.s32.totalorder %s106, %s107
    %p118 = scmp.eq.s32.totalorder %s14, 0
    %p119 = por %p117, %p118
    %p120 = scmp.ne.s32.totalorder %s106, %s107
    %p121 = scmp.eq.s32.totalorder %s15, 1
    %p122 = por %p120, %p121
    %p124 = scmp.ne.s32.totalorder %s107, %s123
    %p125 = scmp.eq.s32.totalorder %s15, 0
    %p126 = por %p124, %p125
    %p127 = scmp.le.s32.totalorder 1, %s9
    %p128 = scmp.lt.s32.totalorder %s9, 3
    %p129 = pnand %p127, %p128
    %p130 = pneg %p129
    // Predicated region
    $region9: #{_lambda_.3} parent=5 // pred_check
      _
    $region10: #{_lambda_.3} parent=5 // pred_check_branch
      %132 = sbr.rel (%p129) target = $region12
    $region11: #{_lambda_.3} parent=5 // pred_region
      %s133 = ssub.s32 %s9, 1
      // Predicated region
      $region13: #{_lambda_.3} parent=11 // pred_check
        %p134 = pneg %p70
      $region14: #{_lambda_.3} parent=11 // pred_check_branch
        %136 = sbr.rel (%p134) target = $region16
      $region15: #{_lambda_.3} parent=11 // pred_region
        _
      $region16: #{_lambda_.3} parent=11 // pred_fallthru
        _
      // Predicated region
      $region17: #{_lambda_.3} parent=11 // pred_check
        %p137 = pneg %p91
      $region18: #{_lambda_.3} parent=11 // pred_check_branch
        %139 = sbr.rel (%p137) target = $region20
      $region19: #{_lambda_.3} parent=11 // pred_region
        _
      $region20: #{_lambda_.3} parent=11 // pred_fallthru
        _
    $region12: #{_lambda_.3} parent=5 // pred_fallthru
      _
    %p140 = scmp.lt.s32.totalorder %s9, 2
    // Predicated region
    $region21: #{_lambda_.3} parent=5 // pred_check
      %p141 = pneg %p140
    $region22: #{_lambda_.3} parent=5 // pred_check_branch
      %143 = sbr.rel (%p141) target = $region24
    $region23: #{_lambda_.3} parent=5 // pred_region
      // Predicated region
      $region25: #{_lambda_.3} parent=23 // pred_check
        %p144 = pneg %p43
      $region26: #{_lambda_.3} parent=23 // pred_check_branch
        %146 = sbr.rel (%p144) target = $region28
      $region27: #{_lambda_.3} parent=23 // pred_region
        %s147 = smul.u32 8, %s17
        %p148 = scmp.lt.s32.totalorder %s16, 1
        %s149 = scalar_select %p148, %s16, 1
        %p150 = scmp.lt.s32.totalorder %s147, 7
        %s151 = scalar_select %p150, %s147, 7
        %s152 = smul.addr %s149, 8
        %s153 = sadd.s32 %s151, %s152
        %s154 = smul.addr %s153, 8
        %s155 = scalar_lea.vmem %s0, %s154
        %s156 = smul.u32 8, %s17
      $region28: #{_lambda_.3} parent=23 // pred_fallthru
        _
    $region24: #{_lambda_.3} parent=5 // pred_fallthru
      _
    %p157 = scmp.le.s32.totalorder 1, %s9
    %p158 = scmp.lt.s32.totalorder %s9, 3
    %p159 = pnand %p157, %p158
    %p160 = pneg %p159
    // Predicated region
    $region29: #{_lambda_.3} parent=5 // pred_check
      _
    $region30: #{_lambda_.3} parent=5 // pred_check_branch
      %162 = sbr.rel (%p159) target = $region32
    $region31: #{_lambda_.3} parent=5 // pred_region
      %s163 = ssub.s32 %s9, 1
      %s164 = smul.u32 8, %s19
      %p165 = scmp.lt.s32.totalorder %s18, 1
      %s166 = scalar_select %p165, %s18, 1
      %p167 = scmp.lt.s32.totalorder %s164, 7
      %s168 = scalar_select %p167, %s164, 7
      %s169 = smul.addr %s166, 8
      %s170 = sadd.s32 %s168, %s169
      %s171 = smul.addr %s170, 8
      %s172 = scalar_lea.vmem %s0, %s171
      %p173 = pneg %p49
      %p174 = pneg %p46
      %p175 = pneg %p70
      %p176 = pneg %p67
      %p177 = pneg %p91
      %p178 = pneg %p88
      %p179 = pneg %p119
      %p180 = pneg %p116
      %s181 = smul.u32 8, %s19
      %p182 = scmp.lt.s32.totalorder %s18, 1
      %s183 = scalar_select %p182, %s18, 1
      %p184 = scmp.lt.s32.totalorder %s181, 7
      %s185 = scalar_select %p184, %s181, 7
      %s186 = smul.addr %s183, 8
      %s187 = sadd.s32 %s185, %s186
      %s188 = smul.addr %s187, 4
      %s189 = scalar_lea.vmem %s3, %s188
      %s190 = smul.u32 8, %s19
      %p191 = scmp.lt.s32.totalorder %s18, 1
      %s192 = scalar_select %p191, %s18, 1
      %p193 = scmp.lt.s32.totalorder %s190, 7
      %s194 = scalar_select %p193, %s190, 7
      %s195 = smul.addr %s192, 8
      %s196 = sadd.s32 %s194, %s195
      %s197 = smul.addr %s196, 8
      %s198 = scalar_lea.vmem %s0, %s197
      %s199 = smul.u32 8, %s19
      %s200 = smul.u32 8, %s19
      %p201 = scmp.lt.s32.totalorder %s18, 1
      %s202 = scalar_select %p201, %s18, 1
      %p203 = scmp.lt.s32.totalorder %s200, 7
      %s204 = scalar_select %p203, %s200, 7
      %s205 = smul.addr %s202, 8
      %s206 = sadd.s32 %s204, %s205
      %s207 = smul.addr %s206, 4
      %s208 = scalar_lea.vmem %s3, %s207
      %s209 = smul.u32 8, %s19
      %v210 = vld [vmem:[%s198] sm:$0xff]
      %v211 = vld [vmem:[%s198 + $0x8] sm:$0xff]
      %v212 = vld [vmem:[%s198 + $0x10] sm:$0xff]
      %v213 = vld [vmem:[%s198 + $0x18] sm:$0xff]
      %v214 = vld [vmem:[%s198 + $0x20] sm:$0xff]
      %v215 = vld [vmem:[%s198 + $0x28] sm:$0xff]
      %v216 = vld [vmem:[%s198 + $0x30] sm:$0xff]
      %v217 = vld [vmem:[%s198 + $0x38] sm:$0xff]
      %v218 = vld [vmem:[%s1] sm:$0xff]
      %v219 = vld [vmem:[%s1 + $0x8] sm:$0xff]
      %v220 = vld [vmem:[%s1 + $0x10] sm:$0xff]
      %v221 = vld [vmem:[%s1 + $0x18] sm:$0xff]
      %v222 = vld [vmem:[%s1 + $0x20] sm:$0xff]
      %v223 = vld [vmem:[%s1 + $0x28] sm:$0xff]
      %v224 = vld [vmem:[%s1 + $0x30] sm:$0xff]
      %v225 = vld [vmem:[%s1 + $0x38] sm:$0xff]
      %v226 = vld [vmem:[%s2] sm:$0x1]
      %v228 = vlaneseq
      %v229 = vshrl.u32 %v228, 7
      %v230 = vsub.s32 0, %v229
      %v231 = vrot.slane %v226, %v230
      %vm233 = vcmask 523264
      %v235 = vsel %vm233, %v210, 0
      %v238 = vsel %vm233, %v211, 0
      %v241 = vsel %vm233, %v212, 0
      %v244 = vsel %vm233, %v213, 0
      %v247 = vsel %vm233, %v214, 0
      %v250 = vsel %vm233, %v215, 0
      %v253 = vsel %vm233, %v216, 0
      %v256 = vsel %vm233, %v217, 0
      %258 = vmatprep.subr.mxu0 0.0
      %259 = vmatpush1.msra.mxu0 %v218
      %260 = vmatprep.subr.mxu0 0.0
      %261 = vmatpush1.msra.mxu0 %v219
      %262 = vmatprep.subr.mxu0 0.0
      %263 = vmatpush1.msra.mxu0 %v220
      %264 = vmatprep.subr.mxu0 0.0
      %265 = vmatpush1.msra.mxu0 %v221
      %266 = vmatprep.subr.mxu0 0.0
      %267 = vmatpush1.msra.mxu0 %v222
      %268 = vmatprep.subr.mxu0 0.0
      %269 = vmatpush1.msra.mxu0 %v223
      %270 = vmatprep.subr.mxu0 0.0
      %271 = vmatpush1.msra.mxu0 %v224
      %272 = vmatprep.subr.mxu0 0.0
      %273 = vmatpush1.msra.mxu0 %v225
      %274 = vmatprep.subr.mxu0 0.0
      %275 = vmatpush1.msra.mxu0 0.0
      %276 = vmatprep.subr.mxu0 0.0
      %277 = vmatpush1.msra.mxu0 0.0
      %278 = vmatprep.subr.mxu0 0.0
      %279 = vmatpush1.msra.mxu0 0.0
      %280 = vmatprep.subr.mxu0 0.0
      %281 = vmatpush1.msra.mxu0 0.0
      %282 = vmatprep.subr.mxu0 0.0
      %283 = vmatpush1.msra.mxu0 0.0
      %284 = vmatprep.subr.mxu0 0.0
      %285 = vmatpush1.msra.mxu0 0.0
      %286 = vmatprep.subr.mxu0 0.0
      %287 = vmatpush1.msra.mxu0 0.0
      %288 = vmatprep.subr.mxu0 0.0
      %289 = vmatpush1.msra.mxu0 0.0
      %290 = vmatprep.subr.mxu0 0.0
      %291 = vmatpush1.msra.mxu0 0.0
      %292 = vmatprep.subr.mxu0 0.0
      %293 = vmatpush1.msra.mxu0 0.0
      %294 = vmatprep.subr.mxu0 0.0
      %295 = vmatpush1.msra.mxu0 0.0
      %296 = vmatprep.subr.mxu0 0.0
      %297 = vmatpush1.msra.mxu0 0.0
      %298 = vmatprep.subr.mxu0 0.0
      %299 = vmatpush1.msra.mxu0 0.0
      %300 = vmatprep.subr.mxu0 0.0
      %301 = vmatpush1.msra.mxu0 0.0
      %302 = vmatprep.subr.mxu0 0.0
      %303 = vmatpush1.msra.mxu0 0.0
      %304 = vmatprep.subr.mxu0 0.0
      %305 = vmatpush1.msra.mxu0 0.0
      %306 = vmatprep.subr.mxu0 0.0
      %307 = vmatpush1.msra.mxu0 0.0
      %308 = vmatprep.subr.mxu0 0.0
      %309 = vmatpush1.msra.mxu0 0.0
      %310 = vmatprep.subr.mxu0 0.0
      %311 = vmatpush1.msra.mxu0 0.0
      %312 = vmatprep.subr.mxu0 0.0
      %313 = vmatpush1.msra.mxu0 0.0
      %314 = vmatprep.subr.mxu0 0.0
      %315 = vmatpush1.msra.mxu0 0.0
      %316 = vmatprep.subr.mxu0 0.0
      %317 = vmatpush1.msra.mxu0 0.0
      %318 = vmatprep.subr.mxu0 0.0
      %319 = vmatpush1.msra.mxu0 0.0
      %320 = vmatprep.subr.mxu0 0.0
      %321 = vmatpush1.msra.mxu0 0.0
      %322 = vmatprep.mubr.f32.mxu0 0.0
      %323 = vmatmul.mubr.f32.gmra.mrb[0].mxu0 %v235
      %v324 = vpop.f32.mrb[0].mxu0
      %v325 = vadd.f32 %v231, %v324
      %v326 = vpop.f32.mrb[0].mxu0
      %327 = vmatprep.mubr.f32.mxu0 0.0
      %328 = vmatmul.mubr.f32.gmra.mrb[0].mxu0 %v238
      %v329 = vpop.f32.mrb[0].mxu0
      %v330 = vadd.f32 %v231, %v329
      %v331 = vpop.f32.mrb[0].mxu0
      %332 = vmatprep.mubr.f32.mxu0 0.0
      %333 = vmatmul.mubr.f32.gmra.mrb[0].mxu0 %v241
      %v334 = vpop.f32.mrb[0].mxu0
      %v335 = vadd.f32 %v231, %v334
      %v336 = vpop.f32.mrb[0].mxu0
      %337 = vmatprep.mubr.f32.mxu0 0.0
      %338 = vmatmul.mubr.f32.gmra.mrb[0].mxu0 %v244
      %v339 = vpop.f32.mrb[0].mxu0
      %v340 = vadd.f32 %v231, %v339
      %v341 = vpop.f32.mrb[0].mxu0
      %342 = vmatprep.mubr.f32.mxu0 0.0
      %343 = vmatmul.mubr.f32.gmra.mrb[0].mxu0 %v247
      %v344 = vpop.f32.mrb[0].mxu0
      %v345 = vadd.f32 %v231, %v344
      %v346 = vpop.f32.mrb[0].mxu0
      %347 = vmatprep.mubr.f32.mxu0 0.0
      %348 = vmatmul.mubr.f32.gmra.mrb[0].mxu0 %v250
      %v349 = vpop.f32.mrb[0].mxu0
      %v350 = vadd.f32 %v231, %v349
      %v351 = vpop.f32.mrb[0].mxu0
      %352 = vmatprep.mubr.f32.mxu0 0.0
      %353 = vmatmul.mubr.f32.gmra.mrb[0].mxu0 %v253
      %v354 = vpop.f32.mrb[0].mxu0
      %v355 = vadd.f32 %v231, %v354
      %v356 = vpop.f32.mrb[0].mxu0
      %357 = vmatprep.mubr.f32.mxu0 0.0
      %358 = vmatmul.mubr.f32.gmra.mrb[0].mxu0 %v256
      %v359 = vpop.f32.mrb[0].mxu0
      %v360 = vadd.f32 %v231, %v359
      %v361 = vpop.f32.mrb[0].mxu0
      %362 = vdwg.mxu0
      %vm363 = vcmp.ge.f32.partialorder %v325, 0.0
      %vm364 = vcmp.ge.f32.partialorder %v330, 0.0
      %vm365 = vcmp.ge.f32.partialorder %v335, 0.0
      %vm366 = vcmp.ge.f32.partialorder %v340, 0.0
      %vm367 = vcmp.ge.f32.partialorder %v345, 0.0
      %vm368 = vcmp.ge.f32.partialorder %v350, 0.0
      %vm369 = vcmp.ge.f32.partialorder %v355, 0.0
      %vm370 = vcmp.ge.f32.partialorder %v360, 0.0
      %v371 = vmul.f32 %v325, 0.2
      %v372 = vmul.f32 %v330, 0.2
      %v373 = vmul.f32 %v335, 0.2
      %v374 = vmul.f32 %v340, 0.2
      %v375 = vmul.f32 %v345, 0.2
      %v376 = vmul.f32 %v350, 0.2
      %v377 = vmul.f32 %v355, 0.2
      %v378 = vmul.f32 %v360, 0.2
      %v379 = vsel %vm363, %v325, %v371
      %v380 = vsel %vm364, %v330, %v372
      %v381 = vsel %vm365, %v335, %v373
      %v382 = vsel %vm366, %v340, %v374
      %v383 = vsel %vm367, %v345, %v375
      %v384 = vsel %vm368, %v350, %v376
      %v385 = vsel %vm369, %v355, %v377
      %v386 = vsel %vm370, %v360, %v378
      %v387 = vpack.c.bf16 %v380, %v379
      %v388 = vpack.c.bf16 %v382, %v381
      %v389 = vpack.c.bf16 %v384, %v383
      %v390 = vpack.c.bf16 %v386, %v385
      %v395 = vunpack.c.l.b16 %v387
      %v396 = vunpack.c.h.b16 %v387
      %v397 = vunpack.c.l.b16 %v388
      %v398 = vunpack.c.h.b16 %v388
      %v399 = vunpack.c.l.b16 %v389
      %v400 = vunpack.c.h.b16 %v389
      %v401 = vunpack.c.l.b16 %v390
      %v402 = vunpack.c.h.b16 %v390
      %v403 = vpack.c.b16 %v395, %v395
      %v404 = vpack.c.b16 %v396, %v396
      %v405 = vpack.c.b16 %v397, %v397
      %v406 = vpack.c.b16 %v398, %v398
      %v407 = vpack.c.b16 %v399, %v399
      %v408 = vpack.c.b16 %v400, %v400
      %v409 = vpack.c.b16 %v401, %v401
      %v410 = vpack.c.b16 %v402, %v402
      %419 = vst [vmem:[%s208] sm:$0xf] %v403
      %420 = vst [vmem:[%s208 + $0x4] sm:$0xf] %v404
      %421 = vst [vmem:[%s208 + $0x8] sm:$0xf] %v405
      %422 = vst [vmem:[%s208 + $0xc] sm:$0xf] %v406
      %423 = vst [vmem:[%s208 + $0x10] sm:$0xf] %v407
      %424 = vst [vmem:[%s208 + $0x14] sm:$0xf] %v408
      %425 = vst [vmem:[%s208 + $0x18] sm:$0xf] %v409
      %426 = vst [vmem:[%s208 + $0x1c] sm:$0xf] %v410
      %s427 = smul.u32 8, %s19
      %p428 = scmp.lt.s32.totalorder %s18, 1
      %s429 = scalar_select %p428, %s18, 1
      %p430 = scmp.lt.s32.totalorder %s427, 7
      %s431 = scalar_select %p430, %s427, 7
      %s432 = smul.addr %s429, 8
      %s433 = sadd.s32 %s431, %s432
      %s434 = smul.addr %s433, 4
      %s435 = scalar_lea.vmem %s3, %s434
      // Predicated region
      $region33: #{_lambda_.3} parent=31 // pred_check
        %p436 = pneg %p116
      $region34: #{_lambda_.3} parent=31 // pred_check_branch
        %438 = sbr.rel (%p436) target = $region36
      $region35: #{_lambda_.3} parent=31 // pred_region
        %s439 = smul.u32 8, %s19
      $region36: #{_lambda_.3} parent=31 // pred_fallthru
        _
    $region32: #{_lambda_.3} parent=5 // pred_fallthru
      _
    %p440 = scmp.le.s32.totalorder 2, %s9
    // Predicated region
    $region37: #{_lambda_.3} parent=5 // pred_check
      %p441 = pneg %p440
    $region38: #{_lambda_.3} parent=5 // pred_check_branch
      %443 = sbr.rel (%p441) target = $region40
    $region39: #{_lambda_.3} parent=5 // pred_region
      %s444 = ssub.s32 %s9, 2
      // Predicated region
      $region41: #{_lambda_.3} parent=39 // pred_check
        %p445 = pneg %p122
      $region42: #{_lambda_.3} parent=39 // pred_check_branch
        %447 = sbr.rel (%p445) target = $region44
      $region43: #{_lambda_.3} parent=39 // pred_region
        %s448 = smul.u32 8, %s21
        %p449 = scmp.lt.s32.totalorder %s20, 1
        %s450 = scalar_select %p449, %s20, 1
        %p451 = scmp.lt.s32.totalorder %s448, 7
        %s452 = scalar_select %p451, %s448, 7
        %s453 = smul.addr %s450, 8
        %s454 = sadd.s32 %s452, %s453
        %s455 = smul.addr %s454, 4
        %s456 = scalar_lea.vmem %s3, %s455
      $region44: #{_lambda_.3} parent=39 // pred_fallthru
        _
    $region40: #{_lambda_.3} parent=5 // pred_fallthru
      _
  $region6: #{_lambda_.3} parent=0 // loop_footer
    %s13 = sadd.s32 1, %s9
  $region7: #{_lambda_.3} parent=0 // loop_footer_branch
    %8 = sbr.rel target = $region3
  $region8: #{_lambda_.3} parent=0 // loop_exit
    _

// kernel: _lambda_.4
$region0: #{_lambda_.4}
  #allocation0 [shape = 'u32[]', space=smem, size = 0x4, offset = 0x4, fixed_abs, tag = 'smem constant byte address 0x4 - core index']
  #allocation1 [shape = 'u32[144,128]{1,0:T(1,128)}', space=vmem, size = 0x12000, scoped, tag = 'internal scratch']
  %s0 = inlined_call_operand.vmem [shape: bf16[2,16,2048], index: 0, kind: input, shape index: {}]
  %s1 = inlined_call_operand.vmem [shape: bf16[2048,128], index: 1, kind: input, shape index: {}]
  %s2 = inlined_call_operand.vmem [shape: f32[1,128], index: 2, kind: input, shape index: {}]
  %s3 = inlined_call_operand.vmem [shape: bf16[2,16,128], index: 3, kind: output, shape index: {}]
  %s4 = sld [smem:[#allocation0]]
  $region45: #{_lambda_.4} parent=0
    _
  %s6 = ssub.s32 1, %s4
  %s7 = scalar_select 0, %s6, %s4
  loop: start=0, step=1, limit=4
  $region2: #{_lambda_.4} parent=0 // loop_pre_header
    _
  $region3: #{_lambda_.4} parent=0 // loop_header
    %s9 = sphi 0, %s13
    %p10 = scmp.ge.s32.totalorder %s9, 4
    %s19 = sphi 0, %s21
    %s22 = sphi 0, %s19
    %s23 = sphi 0, %s22
    %s39 = sphi 0, %s23
    %s43 = sphi 0, %s43
    %s45 = sphi 0, %s43
    %s46 = sphi 0, %s45
    %s60 = sphi 0, %s46
    %s64 = sphi 0, %s64
    %s66 = sphi 0, %s64
    %s67 = sphi 0, %s66
    %s81 = sphi 0, %s67
    %s87 = sphi 0, %s89
    %s90 = sphi 0, %s87
    %s91 = sphi 0, %s90
    %s107 = sphi 0, %s91
  $region4: #{_lambda_.4} parent=0 // loop_header_branch
    %12 = sbr.rel (%p10) target = $region8
  $region5: #{_lambda_.4} parent=0 // loop_body
    %s14 = ssub.s32 %s9, 1
    %s15 = ssub.s32 %s9, 2
    %s16 = sadd.s32 %s9, 1
    %s17 = ssub.s32 %s9, %s16
    %p18 = scmp.eq.s32.totalorder %s17, 0
    %s20 = sadd.s32 %s19, 1
    %s21 = scalar_select %p18, %s19, %s20
    %p24 = pneg %p18
    %p25 = scmp.eq.s32.totalorder %s9, 1
    %p26 = por %p24, %p25
    %p27 = scmp.ne.s32.totalorder %s19, %s22
    %p28 = scmp.eq.s32.totalorder %s9, 0
    %p29 = por %p27, %p28
    %p30 = scmp.ne.s32.totalorder %s19, %s22
    %p31 = scmp.eq.s32.totalorder %s14, 1
    %p32 = por %p30, %p31
    %p33 = scmp.ne.s32.totalorder %s22, %s23
    %p34 = scmp.eq.s32.totalorder %s14, 0
    %p35 = por %p33, %p34
    %p36 = scmp.ne.s32.totalorder %s22, %s23
    %p37 = scmp.eq.s32.totalorder %s15, 1
    %p38 = por %p36, %p37
    %p40 = scmp.ne.s32.totalorder %s23, %s39
    %p41 = scmp.eq.s32.totalorder %s15, 0
    %p42 = por %p40, %p41
    %s44 = sadd.s32 %s43, 1
    %p47 = scmp.eq.s32.totalorder %s9, 1
    %p48 = scmp.ne.s32.totalorder %s43, %s45
    %p49 = scmp.eq.s32.totalorder %s9, 0
    %p50 = por %p48, %p49
    %p51 = scmp.ne.s32.totalorder %s43, %s45
    %p52 = scmp.eq.s32.totalorder %s14, 1
    %p53 = por %p51, %p52
    %p54 = scmp.ne.s32.totalorder %s45, %s46
    %p55 = scmp.eq.s32.totalorder %s14, 0
    %p56 = por %p54, %p55
    %p57 = scmp.ne.s32.totalorder %s45, %s46
    %p58 = scmp.eq.s32.totalorder %s15, 1
    %p59 = por %p57, %p58
    %p61 = scmp.ne.s32.totalorder %s46, %s60
    %p62 = scmp.eq.s32.totalorder %s15, 0
    %p63 = por %p61, %p62
    %s65 = sadd.s32 %s64, 1
    %p68 = scmp.eq.s32.totalorder %s9, 1
    %p69 = scmp.ne.s32.totalorder %s64, %s66
    %p70 = scmp.eq.s32.totalorder %s9, 0
    %p71 = por %p69, %p70
    %p72 = scmp.ne.s32.totalorder %s64, %s66
    %p73 = scmp.eq.s32.totalorder %s14, 1
    %p74 = por %p72, %p73
    %p75 = scmp.ne.s32.totalorder %s66, %s67
    %p76 = scmp.eq.s32.totalorder %s14, 0
    %p77 = por %p75, %p76
    %p78 = scmp.ne.s32.totalorder %s66, %s67
    %p79 = scmp.eq.s32.totalorder %s15, 1
    %p80 = por %p78, %p79
    %p82 = scmp.ne.s32.totalorder %s67, %s81
    %p83 = scmp.eq.s32.totalorder %s15, 0
    %p84 = por %p82, %p83
    %s85 = ssub.s32 %s9, %s16
    %p86 = scmp.eq.s32.totalorder %s85, 0
    %s88 = sadd.s32 %s87, 1
    %s89 = scalar_select %p86, %s87, %s88
    %p92 = pneg %p86
    %p93 = scmp.eq.s32.totalorder %s9, 1
    %p94 = por %p92, %p93
    %p95 = scmp.ne.s32.totalorder %s87, %s90
    %p96 = scmp.eq.s32.totalorder %s9, 0
    %p97 = por %p95, %p96
    %p98 = scmp.ne.s32.totalorder %s87, %s90
    %p99 = scmp.eq.s32.totalorder %s14, 1
    %p100 = por %p98, %p99
    %p101 = scmp.ne.s32.totalorder %s90, %s91
    %p102 = scmp.eq.s32.totalorder %s14, 0
    %p103 = por %p101, %p102
    %p104 = scmp.ne.s32.totalorder %s90, %s91
    %p105 = scmp.eq.s32.totalorder %s15, 1
    %p106 = por %p104, %p105
    %p108 = scmp.ne.s32.totalorder %s91, %s107
    %p109 = scmp.eq.s32.totalorder %s15, 0
    %p110 = por %p108, %p109
    %p111 = scmp.le.s32.totalorder 1, %s9
    %p112 = scmp.lt.s32.totalorder %s9, 3
    %p113 = pnand %p111, %p112
    %p114 = pneg %p113
    // Predicated region
    $region9: #{_lambda_.4} parent=5 // pred_check
      _
    $region10: #{_lambda_.4} parent=5 // pred_check_branch
      %116 = sbr.rel (%p113) target = $region12
    $region11: #{_lambda_.4} parent=5 // pred_region
      %s117 = ssub.s32 %s9, 1
      // Predicated region
      $region13: #{_lambda_.4} parent=11 // pred_check
        %p118 = pneg %p56
      $region14: #{_lambda_.4} parent=11 // pred_check_branch
        %120 = sbr.rel (%p118) target = $region16
      $region15: #{_lambda_.4} parent=11 // pred_region
        _
      $region16: #{_lambda_.4} parent=11 // pred_fallthru
        _
      // Predicated region
      $region17: #{_lambda_.4} parent=11 // pred_check
        %p121 = pneg %p77
      $region18: #{_lambda_.4} parent=11 // pred_check_branch
        %123 = sbr.rel (%p121) target = $region20
      $region19: #{_lambda_.4} parent=11 // pred_region
        _
      $region20: #{_lambda_.4} parent=11 // pred_fallthru
        _
    $region12: #{_lambda_.4} parent=5 // pred_fallthru
      _
    %p124 = scmp.lt.s32.totalorder %s9, 2
    // Predicated region
    $region21: #{_lambda_.4} parent=5 // pred_check
      %p125 = pneg %p124
    $region22: #{_lambda_.4} parent=5 // pred_check_branch
      %127 = sbr.rel (%p125) target = $region24
    $region23: #{_lambda_.4} parent=5 // pred_region
      // Predicated region
      $region25: #{_lambda_.4} parent=23 // pred_check
        %p128 = pneg %p29
      $region26: #{_lambda_.4} parent=23 // pred_check_branch
        %130 = sbr.rel (%p128) target = $region28
      $region27: #{_lambda_.4} parent=23 // pred_region
        %p131 = scmp.lt.s32.totalorder %s9, 1
        %s132 = scalar_select %p131, %s9, 1
        %s133 = smul.addr %s132, 32
        %s134 = smul.addr %s133, 4
        %s135 = scalar_lea.vmem %s0, %s134
      $region28: #{_lambda_.4} parent=23 // pred_fallthru
        _
    $region24: #{_lambda_.4} parent=5 // pred_fallthru
      _
    %p136 = scmp.le.s32.totalorder 1, %s9
    %p137 = scmp.lt.s32.totalorder %s9, 3
    %p138 = pnand %p136, %p137
    %p139 = pneg %p138
    // Predicated region
    $region29: #{_lambda_.4} parent=5 // pred_check
      _
    $region30: #{_lambda_.4} parent=5 // pred_check_branch
      %141 = sbr.rel (%p138) target = $region32
    $region31: #{_lambda_.4} parent=5 // pred_region
      %s142 = ssub.s32 %s9, 1
      %p143 = scmp.lt.s32.totalorder %s14, 1
      %s144 = scalar_select %p143, %s14, 1
      %s145 = smul.addr %s144, 32
      %s146 = smul.addr %s145, 4
      %s147 = scalar_lea.vmem %s0, %s146
      %p148 = pneg %p35
      %p149 = pneg %p32
      %p150 = pneg %p56
      %p151 = pneg %p53
      %p152 = pneg %p77
      %p153 = pneg %p74
      %p154 = pneg %p103
      %p155 = pneg %p100
      %p156 = scmp.lt.s32.totalorder %s14, 1
      %s157 = scalar_select %p156, %s14, 1
      %s158 = smul.addr %s157, 2
      %s159 = smul.addr %s158, 4
      %s160 = scalar_lea.vmem %s3, %s159
      %p161 = scmp.lt.s32.totalorder %s14, 1
      %s162 = scalar_select %p161, %s14, 1
      %s163 = smul.addr %s162, 32
      %s164 = smul.addr %s163, 4
      %s165 = scalar_lea.vmem %s0, %s164
      %p166 = scmp.lt.s32.totalorder %s14, 1
      %s167 = scalar_select %p166, %s14, 1
      %s168 = smul.addr %s167, 2
      %s169 = smul.addr %s168, 4
      %s170 = scalar_lea.vmem %s3, %s169
      %v172 = vld [vmem:[%s165] sm:$0xff]
      %v173 = vld [vmem:[%s165 + $0x8] sm:$0xff]
      %v174 = vld [vmem:[%s165 + $0x10] sm:$0xff]
      %v175 = vld [vmem:[%s165 + $0x18] sm:$0xff]
      %v176 = vld [vmem:[%s165 + $0x20] sm:$0xff]
      %v177 = vld [vmem:[%s165 + $0x28] sm:$0xff]
      %v178 = vld [vmem:[%s165 + $0x30] sm:$0xff]
      %v179 = vld [vmem:[%s165 + $0x38] sm:$0xff]
      %v180 = vld [vmem:[%s165 + $0x40] sm:$0xff]
      %v181 = vld [vmem:[%s165 + $0x48] sm:$0xff]
      %v182 = vld [vmem:[%s165 + $0x50] sm:$0xff]
      %v183 = vld [vmem:[%s165 + $0x58] sm:$0xff]
      %v184 = vld [vmem:[%s165 + $0x60] sm:$0xff]
      %v185 = vld [vmem:[%s165 + $0x68] sm:$0xff]
      %v186 = vld [vmem:[%s165 + $0x70] sm:$0xff]
      %v187 = vld [vmem:[%s165 + $0x78] sm:$0xff]
      %v188 = vld [vmem:[%s1] sm:$0xf]
      %v189 = vld [vmem:[%s1 + $0x4] sm:$0xf]
      %v190 = vld [vmem:[%s1 + $0x8] sm:$0xf]
      %v191 = vld [vmem:[%s1 + $0xc] sm:$0xf]
      %v192 = vld [vmem:[%s1 + $0x10] sm:$0xf]
      %v193 = vld [vmem:[%s1 + $0x14] sm:$0xf]
      %v194 = vld [vmem:[%s1 + $0x18] sm:$0xf]
      %v195 = vld [vmem:[%s1 + $0x1c] sm:$0xf]
      %v196 = vld [vmem:[%s1 + $0x20] sm:$0xf]
      %v197 = vld [vmem:[%s1 + $0x24] sm:$0xf]
      %v198 = vld [vmem:[%s1 + $0x28] sm:$0xf]
      %v199 = vld [vmem:[%s1 + $0x2c] sm:$0xf]
      %v200 = vld [vmem:[%s1 + $0x30] sm:$0xf]
      %v201 = vld [vmem:[%s1 + $0x34] sm:$0xf]
      %v202 = vld [vmem:[%s1 + $0x38] sm:$0xf]
      %v203 = vld [vmem:[%s1 + $0x3c] sm:$0xf]
      %v204 = vld [vmem:[%s1 + $0x40] sm:$0xf]
      %v205 = vld [vmem:[%s1 + $0x44] sm:$0xf]
      %v206 = vld [vmem:[%s1 + $0x48] sm:$0xf]
      %v207 = vld [vmem:[%s1 + $0x4c] sm:$0xf]
      %v208 = vld [vmem:[%s1 + $0x50] sm:$0xf]
      %v209 = vld [vmem:[%s1 + $0x54] sm:$0xf]
      %v210 = vld [vmem:[%s1 + $0x58] sm:$0xf]
      %v211 = vld [vmem:[%s1 + $0x5c] sm:$0xf]
      %v212 = vld [vmem:[%s1 + $0x60] sm:$0xf]
      %v213 = vld [vmem:[%s1 + $0x64] sm:$0xf]
      %v214 = vld [vmem:[%s1 + $0x68] sm:$0xf]
      %v215 = vld [vmem:[%s1 + $0x6c] sm:$0xf]
      %v216 = vld [vmem:[%s1 + $0x70] sm:$0xf]
      %v217 = vld [vmem:[%s1 + $0x74] sm:$0xf]
      %v218 = vld [vmem:[%s1 + $0x78] sm:$0xf]
      %v219 = vld [vmem:[%s1 + $0x7c] sm:$0xf]
      %v220 = vld [vmem:[%s1 + $0x80] sm:$0xf]
      %v221 = vld [vmem:[%s1 + $0x84] sm:$0xf]
      %v222 = vld [vmem:[%s1 + $0x88] sm:$0xf]
      %v223 = vld [vmem:[%s1 + $0x8c] sm:$0xf]
      %v224 = vld [vmem:[%s1 + $0x90] sm:$0xf]
      %v225 = vld [vmem:[%s1 + $0x94] sm:$0xf]
      %v226 = vld [vmem:[%s1 + $0x98] sm:$0xf]
      %v227 = vld [vmem:[%s1 + $0x9c] sm:$0xf]
      %v228 = vld [vmem:[%s1 + $0xa0] sm:$0xf]
      %v229 = vld [vmem:[%s1 + $0xa4] sm:$0xf]
      %v230 = vld [vmem:[%s1 + $0xa8] sm:$0xf]
      %v231 = vld [vmem:[%s1 + $0xac] sm:$0xf]
      %v232 = vld [vmem:[%s1 + $0xb0] sm:$0xf]
      %v233 = vld [vmem:[%s1 + $0xb4] sm:$0xf]
      %v234 = vld [vmem:[%s1 + $0xb8] sm:$0xf]
      %v235 = vld [vmem:[%s1 + $0xbc] sm:$0xf]
      %v236 = vld [vmem:[%s1 + $0xc0] sm:$0xf]
      %v237 = vld [vmem:[%s1 + $0xc4] sm:$0xf]
      %v238 = vld [vmem:[%s1 + $0xc8] sm:$0xf]
      %v239 = vld [vmem:[%s1 + $0xcc] sm:$0xf]
      %v240 = vld [vmem:[%s1 + $0xd0] sm:$0xf]
      %v241 = vld [vmem:[%s1 + $0xd4] sm:$0xf]
      %v242 = vld [vmem:[%s1 + $0xd8] sm:$0xf]
      %v243 = vld [vmem:[%s1 + $0xdc] sm:$0xf]
      %v244 = vld [vmem:[%s1 + $0xe0] sm:$0xf]
      %v245 = vld [vmem:[%s1 + $0xe4] sm:$0xf]
      %v246 = vld [vmem:[%s1 + $0xe8] sm:$0xf]
      %v247 = vld [vmem:[%s1 + $0xec] sm:$0xf]
      %v248 = vld [vmem:[%s1 + $0xf0] sm:$0xf]
      %v249 = vld [vmem:[%s1 + $0xf4] sm:$0xf]
      %v250 = vld [vmem:[%s1 + $0xf8] sm:$0xf]
      %v251 = vld [vmem:[%s1 + $0xfc] sm:$0xf]
      %v252 = vld [vmem:[%s1 + $0x100] sm:$0xf]
      %v253 = vld [vmem:[%s1 + $0x104] sm:$0xf]
      %v254 = vld [vmem:[%s1 + $0x108] sm:$0xf]
      %v255 = vld [vmem:[%s1 + $0x10c] sm:$0xf]
      %v256 = vld [vmem:[%s1 + $0x110] sm:$0xf]
      %v257 = vld [vmem:[%s1 + $0x114] sm:$0xf]
      %v258 = vld [vmem:[%s1 + $0x118] sm:$0xf]
      %v259 = vld [vmem:[%s1 + $0x11c] sm:$0xf]
      %v260 = vld [vmem:[%s1 + $0x120] sm:$0xf]
      %v261 = vld [vmem:[%s1 + $0x124] sm:$0xf]
      %v262 = vld [vmem:[%s1 + $0x128] sm:$0xf]
      %v263 = vld [vmem:[%s1 + $0x12c] sm:$0xf]
      %v264 = vld [vmem:[%s1 + $0x130] sm:$0xf]
      %v265 = vld [vmem:[%s1 + $0x134] sm:$0xf]
      %v266 = vld [vmem:[%s1 + $0x138] sm:$0xf]
      %v267 = vld [vmem:[%s1 + $0x13c] sm:$0xf]
      %v268 = vld [vmem:[%s1 + $0x140] sm:$0xf]
      %v269 = vld [vmem:[%s1 + $0x144] sm:$0xf]
      %v270 = vld [vmem:[%s1 + $0x148] sm:$0xf]
      %v271 = vld [vmem:[%s1 + $0x14c] sm:$0xf]
      %v272 = vld [vmem:[%s1 + $0x150] sm:$0xf]
      %v273 = vld [vmem:[%s1 + $0x154] sm:$0xf]
      %v274 = vld [vmem:[%s1 + $0x158] sm:$0xf]
      %v275 = vld [vmem:[%s1 + $0x15c] sm:$0xf]
      %v276 = vld [vmem:[%s1 + $0x160] sm:$0xf]
      %v277 = vld [vmem:[%s1 + $0x164] sm:$0xf]
      %v278 = vld [vmem:[%s1 + $0x168] sm:$0xf]
      %v279 = vld [vmem:[%s1 + $0x16c] sm:$0xf]
      %v280 = vld [vmem:[%s1 + $0x170] sm:$0xf]
      %v281 = vld [vmem:[%s1 + $0x174] sm:$0xf]
      %v282 = vld [vmem:[%s1 + $0x178] sm:$0xf]
      %v283 = vld [vmem:[%s1 + $0x17c] sm:$0xf]
      %v284 = vld [vmem:[%s1 + $0x180] sm:$0xf]
      %v285 = vld [vmem:[%s1 + $0x184] sm:$0xf]
      %v286 = vld [vmem:[%s1 + $0x188] sm:$0xf]
      %v287 = vld [vmem:[%s1 + $0x18c] sm:$0xf]
      %v288 = vld [vmem:[%s1 + $0x190] sm:$0xf]
      %v289 = vld [vmem:[%s1 + $0x194] sm:$0xf]
      %v290 = vld [vmem:[%s1 + $0x198] sm:$0xf]
      %v291 = vld [vmem:[%s1 + $0x19c] sm:$0xf]
      %v292 = vld [vmem:[%s1 + $0x1a0] sm:$0xf]
      %v293 = vld [vmem:[%s1 + $0x1a4] sm:$0xf]
      %v294 = vld [vmem:[%s1 + $0x1a8] sm:$0xf]
      %v295 = vld [vmem:[%s1 + $0x1ac] sm:$0xf]
      %v296 = vld [vmem:[%s1 + $0x1b0] sm:$0xf]
      %v297 = vld [vmem:[%s1 + $0x1b4] sm:$0xf]
      %v298 = vld [vmem:[%s1 + $0x1b8] sm:$0xf]
      %v299 = vld [vmem:[%s1 + $0x1bc] sm:$0xf]
      %v300 = vld [vmem:[%s1 + $0x1c0] sm:$0xf]
      %v301 = vld [vmem:[%s1 + $0x1c4] sm:$0xf]
      %v302 = vld [vmem:[%s1 + $0x1c8] sm:$0xf]
      %v303 = vld [vmem:[%s1 + $0x1cc] sm:$0xf]
      %v304 = vld [vmem:[%s1 + $0x1d0] sm:$0xf]
      %v305 = vld [vmem:[%s1 + $0x1d4] sm:$0xf]
      %v306 = vld [vmem:[%s1 + $0x1d8] sm:$0xf]
      %v307 = vld [vmem:[%s1 + $0x1dc] sm:$0xf]
      %v308 = vld [vmem:[%s1 + $0x1e0] sm:$0xf]
      %v309 = vld [vmem:[%s1 + $0x1e4] sm:$0xf]
      %v310 = vld [vmem:[%s1 + $0x1e8] sm:$0xf]
      %v311 = vld [vmem:[%s1 + $0x1ec] sm:$0xf]
      %v312 = vld [vmem:[%s1 + $0x1f0] sm:$0xf]
      %v313 = vld [vmem:[%s1 + $0x1f4] sm:$0xf]
      %v314 = vld [vmem:[%s1 + $0x1f8] sm:$0xf]
      %v315 = vld [vmem:[%s1 + $0x1fc] sm:$0xf]
      %v316 = vld [vmem:[%s1 + $0x200] sm:$0xf]
      %v317 = vld [vmem:[%s1 + $0x204] sm:$0xf]
      %v318 = vld [vmem:[%s1 + $0x208] sm:$0xf]
      %v319 = vld [vmem:[%s1 + $0x20c] sm:$0xf]
      %v320 = vld [vmem:[%s1 + $0x210] sm:$0xf]
      %v321 = vld [vmem:[%s1 + $0x214] sm:$0xf]
      %v322 = vld [vmem:[%s1 + $0x218] sm:$0xf]
      %v323 = vld [vmem:[%s1 + $0x21c] sm:$0xf]
      %v324 = vld [vmem:[%s1 + $0x220] sm:$0xf]
      %v325 = vld [vmem:[%s1 + $0x224] sm:$0xf]
      %v326 = vld [vmem:[%s1 + $0x228] sm:$0xf]
      %v327 = vld [vmem:[%s1 + $0x22c] sm:$0xf]
      %v328 = vld [vmem:[%s1 + $0x230] sm:$0xf]
      %v329 = vld [vmem:[%s1 + $0x234] sm:$0xf]
      %v330 = vld [vmem:[%s1 + $0x238] sm:$0xf]
      %v331 = vld [vmem:[%s1 + $0x23c] sm:$0xf]
      %v332 = vld [vmem:[%s1 + $0x240] sm:$0xf]
      %v333 = vld [vmem:[%s1 + $0x244] sm:$0xf]
      %v334 = vld [vmem:[%s1 + $0x248] sm:$0xf]
      %v335 = vld [vmem:[%s1 + $0x24c] sm:$0xf]
      %v336 = vld [vmem:[%s1 + $0x250] sm:$0xf]
      %v337 = vld [vmem:[%s1 + $0x254] sm:$0xf]
      %v338 = vld [vmem:[%s1 + $0x258] sm:$0xf]
      %v339 = vld [vmem:[%s1 + $0x25c] sm:$0xf]
      %v340 = vld [vmem:[%s1 + $0x260] sm:$0xf]
      %v341 = vld [vmem:[%s1 + $0x264] sm:$0xf]
      %v342 = vld [vmem:[%s1 + $0x268] sm:$0xf]
      %v343 = vld [vmem:[%s1 + $0x26c] sm:$0xf]
      %v344 = vld [vmem:[%s1 + $0x270] sm:$0xf]
      %v345 = vld [vmem:[%s1 + $0x274] sm:$0xf]
      %v346 = vld [vmem:[%s1 + $0x278] sm:$0xf]
      %v347 = vld [vmem:[%s1 + $0x27c] sm:$0xf]
      %v348 = vld [vmem:[%s1 + $0x280] sm:$0xf]
      %v349 = vld [vmem:[%s1 + $0x284] sm:$0xf]
      %v350 = vld [vmem:[%s1 + $0x288] sm:$0xf]
      %v351 = vld [vmem:[%s1 + $0x28c] sm:$0xf]
      %v352 = vld [vmem:[%s1 + $0x290] sm:$0xf]
      %v353 = vld [vmem:[%s1 + $0x294] sm:$0xf]
      %v354 = vld [vmem:[%s1 + $0x298] sm:$0xf]
      %v355 = vld [vmem:[%s1 + $0x29c] sm:$0xf]
      %v356 = vld [vmem:[%s1 + $0x2a0] sm:$0xf]
      %v357 = vld [vmem:[%s1 + $0x2a4] sm:$0xf]
      %v358 = vld [vmem:[%s1 + $0x2a8] sm:$0xf]
      %v359 = vld [vmem:[%s1 + $0x2ac] sm:$0xf]
      %v360 = vld [vmem:[%s1 + $0x2b0] sm:$0xf]
      %v361 = vld [vmem:[%s1 + $0x2b4] sm:$0xf]
      %v362 = vld [vmem:[%s1 + $0x2b8] sm:$0xf]
      %v363 = vld [vmem:[%s1 + $0x2bc] sm:$0xf]
      %v364 = vld [vmem:[%s1 + $0x2c0] sm:$0xf]
      %v365 = vld [vmem:[%s1 + $0x2c4] sm:$0xf]
      %v366 = vld [vmem:[%s1 + $0x2c8] sm:$0xf]
      %v367 = vld [vmem:[%s1 + $0x2cc] sm:$0xf]
      %v368 = vld [vmem:[%s1 + $0x2d0] sm:$0xf]
      %v369 = vld [vmem:[%s1 + $0x2d4] sm:$0xf]
      %v370 = vld [vmem:[%s1 + $0x2d8] sm:$0xf]
      %v371 = vld [vmem:[%s1 + $0x2dc] sm:$0xf]
      %v372 = vld [vmem:[%s1 + $0x2e0] sm:$0xf]
      %v373 = vld [vmem:[%s1 + $0x2e4] sm:$0xf]
      %v374 = vld [vmem:[%s1 + $0x2e8] sm:$0xf]
      %v375 = vld [vmem:[%s1 + $0x2ec] sm:$0xf]
      %v376 = vld [vmem:[%s1 + $0x2f0] sm:$0xf]
      %v377 = vld [vmem:[%s1 + $0x2f4] sm:$0xf]
      %v378 = vld [vmem:[%s1 + $0x2f8] sm:$0xf]
      %v379 = vld [vmem:[%s1 + $0x2fc] sm:$0xf]
      %v380 = vld [vmem:[%s1 + $0x300] sm:$0xf]
      %v381 = vld [vmem:[%s1 + $0x304] sm:$0xf]
      %v382 = vld [vmem:[%s1 + $0x308] sm:$0xf]
      %v383 = vld [vmem:[%s1 + $0x30c] sm:$0xf]
      %v384 = vld [vmem:[%s1 + $0x310] sm:$0xf]
      %v385 = vld [vmem:[%s1 + $0x314] sm:$0xf]
      %v386 = vld [vmem:[%s1 + $0x318] sm:$0xf]
      %v387 = vld [vmem:[%s1 + $0x31c] sm:$0xf]
      %v388 = vld [vmem:[%s1 + $0x320] sm:$0xf]
      %v389 = vld [vmem:[%s1 + $0x324] sm:$0xf]
      %v390 = vld [vmem:[%s1 + $0x328] sm:$0xf]
      %v391 = vld [vmem:[%s1 + $0x32c] sm:$0xf]
      %v392 = vld [vmem:[%s1 + $0x330] sm:$0xf]
      %v393 = vld [vmem:[%s1 + $0x334] sm:$0xf]
      %v394 = vld [vmem:[%s1 + $0x338] sm:$0xf]
      %v395 = vld [vmem:[%s1 + $0x33c] sm:$0xf]
      %v396 = vld [vmem:[%s1 + $0x340] sm:$0xf]
      %v397 = vld [vmem:[%s1 + $0x344] sm:$0xf]
      %v398 = vld [vmem:[%s1 + $0x348] sm:$0xf]
      %v399 = vld [vmem:[%s1 + $0x34c] sm:$0xf]
      %v400 = vld [vmem:[%s1 + $0x350] sm:$0xf]
      %v401 = vld [vmem:[%s1 + $0x354] sm:$0xf]
      %v402 = vld [vmem:[%s1 + $0x358] sm:$0xf]
      %v403 = vld [vmem:[%s1 + $0x35c] sm:$0xf]
      %v404 = vld [vmem:[%s1 + $0x360] sm:$0xf]
      %v405 = vld [vmem:[%s1 + $0x364] sm:$0xf]
      %v406 = vld [vmem:[%s1 + $0x368] sm:$0xf]
      %v407 = vld [vmem:[%s1 + $0x36c] sm:$0xf]
      %v408 = vld [vmem:[%s1 + $0x370] sm:$0xf]
      %v409 = vld [vmem:[%s1 + $0x374] sm:$0xf]
      %v410 = vld [vmem:[%s1 + $0x378] sm:$0xf]
      %v411 = vld [vmem:[%s1 + $0x37c] sm:$0xf]
      %v412 = vld [vmem:[%s1 + $0x380] sm:$0xf]
      %v413 = vld [vmem:[%s1 + $0x384] sm:$0xf]
      %v414 = vld [vmem:[%s1 + $0x388] sm:$0xf]
      %v415 = vld [vmem:[%s1 + $0x38c] sm:$0xf]
      %v416 = vld [vmem:[%s1 + $0x390] sm:$0xf]
      %v417 = vld [vmem:[%s1 + $0x394] sm:$0xf]
      %v418 = vld [vmem:[%s1 + $0x398] sm:$0xf]
      %v419 = vld [vmem:[%s1 + $0x39c] sm:$0xf]
      %v420 = vld [vmem:[%s1 + $0x3a0] sm:$0xf]
      %v421 = vld [vmem:[%s1 + $0x3a4] sm:$0xf]
      %v422 = vld [vmem:[%s1 + $0x3a8] sm:$0xf]
      %v423 = vld [vmem:[%s1 + $0x3ac] sm:$0xf]
      %v424 = vld [vmem:[%s1 + $0x3b0] sm:$0xf]
      %v425 = vld [vmem:[%s1 + $0x3b4] sm:$0xf]
      %v426 = vld [vmem:[%s1 + $0x3b8] sm:$0xf]
      %v427 = vld [vmem:[%s1 + $0x3bc] sm:$0xf]
      %v428 = vld [vmem:[%s1 + $0x3c0] sm:$0xf]
      %v429 = vld [vmem:[%s1 + $0x3c4] sm:$0xf]
      %v430 = vld [vmem:[%s1 + $0x3c8] sm:$0xf]
      %v431 = vld [vmem:[%s1 + $0x3cc] sm:$0xf]
      %v432 = vld [vmem:[%s1 + $0x3d0] sm:$0xf]
      %v433 = vld [vmem:[%s1 + $0x3d4] sm:$0xf]
      %v434 = vld [vmem:[%s1 + $0x3d8] sm:$0xf]
      %v435 = vld [vmem:[%s1 + $0x3dc] sm:$0xf]
      %v436 = vld [vmem:[%s1 + $0x3e0] sm:$0xf]
      %v437 = vld [vmem:[%s1 + $0x3e4] sm:$0xf]
      %v438 = vld [vmem:[%s1 + $0x3e8] sm:$0xf]
      %v439 = vld [vmem:[%s1 + $0x3ec] sm:$0xf]
      %v440 = vld [vmem:[%s1 + $0x3f0] sm:$0xf]
      %v441 = vld [vmem:[%s1 + $0x3f4] sm:$0xf]
      %v442 = vld [vmem:[%s1 + $0x3f8] sm:$0xf]
      %v443 = vld [vmem:[%s1 + $0x3fc] sm:$0xf]
      %v444 = vld [vmem:[%s2] sm:$0x1]
      %v446 = vlaneseq
      %v447 = vshrl.u32 %v446, 7
      %v448 = vsub.s32 0, %v447
      %v449 = vrot.slane %v444, %v448
      %v467 = vunpack.c.l.b16 %v172
      %v468 = vunpack.c.h.b16 %v172
      %v469 = vunpack.c.l.b16 %v173
      %v470 = vunpack.c.h.b16 %v173
      %v471 = vunpack.c.l.b16 %v174
      %v472 = vunpack.c.h.b16 %v174
      %v473 = vunpack.c.l.b16 %v175
      %v474 = vunpack.c.h.b16 %v175
      %v475 = vunpack.c.l.b16 %v176
      %v476 = vunpack.c.h.b16 %v176
      %v477 = vunpack.c.l.b16 %v177
      %v478 = vunpack.c.h.b16 %v177
      %v479 = vunpack.c.l.b16 %v178
      %v480 = vunpack.c.h.b16 %v178
      %v481 = vunpack.c.l.b16 %v179
      %v482 = vunpack.c.h.b16 %v179
      %v483 = vunpack.c.l.b16 %v180
      %v484 = vunpack.c.h.b16 %v180
      %v485 = vunpack.c.l.b16 %v181
      %v486 = vunpack.c.h.b16 %v181
      %v487 = vunpack.c.l.b16 %v182
      %v488 = vunpack.c.h.b16 %v182
      %v489 = vunpack.c.l.b16 %v183
      %v490 = vunpack.c.h.b16 %v183
      %v491 = vunpack.c.l.b16 %v184
      %v492 = vunpack.c.h.b16 %v184
      %v493 = vunpack.c.l.b16 %v185
      %v494 = vunpack.c.h.b16 %v185
      %v495 = vunpack.c.l.b16 %v186
      %v496 = vunpack.c.h.b16 %v186
      %v497 = vunpack.c.l.b16 %v187
      %v498 = vunpack.c.h.b16 %v187
      %v499 = vpack.c.b16 %v483, %v467
      %v500 = vpack.c.b16 %v484, %v468
      %v501 = vpack.c.b16 %v485, %v469
      %v502 = vpack.c.b16 %v486, %v470
      %v503 = vpack.c.b16 %v487, %v471
      %v504 = vpack.c.b16 %v488, %v472
      %v505 = vpack.c.b16 %v489, %v473
      %v506 = vpack.c.b16 %v490, %v474
      %v507 = vpack.c.b16 %v491, %v475
      %v508 = vpack.c.b16 %v492, %v476
      %v509 = vpack.c.b16 %v493, %v477
      %v510 = vpack.c.b16 %v494, %v478
      %v511 = vpack.c.b16 %v495, %v479
      %v512 = vpack.c.b16 %v496, %v480
      %v513 = vpack.c.b16 %v497, %v481
      %v514 = vpack.c.b16 %v498, %v482
      %v787 = vunpack.c.l.b16 %v188
      %v788 = vunpack.c.l.b16 %v189
      %v789 = vunpack.c.l.b16 %v190
      %v790 = vunpack.c.l.b16 %v191
      %v791 = vunpack.c.l.b16 %v192
      %v792 = vunpack.c.l.b16 %v193
      %v793 = vunpack.c.l.b16 %v194
      %v794 = vunpack.c.l.b16 %v195
      %v795 = vunpack.c.l.b16 %v196
      %v796 = vunpack.c.l.b16 %v197
      %v797 = vunpack.c.l.b16 %v198
      %v798 = vunpack.c.l.b16 %v199
      %v799 = vunpack.c.l.b16 %v200
      %v800 = vunpack.c.l.b16 %v201
      %v801 = vunpack.c.l.b16 %v202
      %v802 = vunpack.c.l.b16 %v203
      %v803 = vunpack.c.l.b16 %v204
      %v804 = vunpack.c.l.b16 %v205
      %v805 = vunpack.c.l.b16 %v206
      %v806 = vunpack.c.l.b16 %v207
      %v807 = vunpack.c.l.b16 %v208
      %v808 = vunpack.c.l.b16 %v209
      %v809 = vunpack.c.l.b16 %v210
      %v810 = vunpack.c.l.b16 %v211
      %v811 = vunpack.c.l.b16 %v212
      %v812 = vunpack.c.l.b16 %v213
      %v813 = vunpack.c.l.b16 %v214
      %v814 = vunpack.c.l.b16 %v215
      %v815 = vunpack.c.l.b16 %v216
      %v816 = vunpack.c.l.b16 %v217
      %v817 = vunpack.c.l.b16 %v218
      %v818 = vunpack.c.l.b16 %v219
      %v819 = vunpack.c.l.b16 %v220
      %v820 = vunpack.c.l.b16 %v221
      %v821 = vunpack.c.l.b16 %v222
      %v822 = vunpack.c.l.b16 %v223
      %v823 = vunpack.c.l.b16 %v224
      %v824 = vunpack.c.l.b16 %v225
      %v825 = vunpack.c.l.b16 %v226
      %v826 = vunpack.c.l.b16 %v227
      %v827 = vunpack.c.l.b16 %v228
      %v828 = vunpack.c.l.b16 %v229
      %v829 = vunpack.c.l.b16 %v230
      %v830 = vunpack.c.l.b16 %v231
      %v831 = vunpack.c.l.b16 %v232
      %v832 = vunpack.c.l.b16 %v233
      %v833 = vunpack.c.l.b16 %v234
      %v834 = vunpack.c.l.b16 %v235
      %v835 = vunpack.c.l.b16 %v236
      %v836 = vunpack.c.l.b16 %v237
      %v837 = vunpack.c.l.b16 %v238
      %v838 = vunpack.c.l.b16 %v239
      %v839 = vunpack.c.l.b16 %v240
      %v840 = vunpack.c.l.b16 %v241
      %v841 = vunpack.c.l.b16 %v242
      %v842 = vunpack.c.l.b16 %v243
      %v843 = vunpack.c.l.b16 %v244
      %v844 = vunpack.c.l.b16 %v245
      %v845 = vunpack.c.l.b16 %v246
      %v846 = vunpack.c.l.b16 %v247
      %v847 = vunpack.c.l.b16 %v248
      %v848 = vunpack.c.l.b16 %v249
      %v849 = vunpack.c.l.b16 %v250
      %v850 = vunpack.c.l.b16 %v251
      %v851 = vunpack.c.l.b16 %v252
      %v852 = vunpack.c.l.b16 %v253
      %v853 = vunpack.c.l.b16 %v254
      %v854 = vunpack.c.l.b16 %v255
      %v855 = vunpack.c.l.b16 %v256
      %v856 = vunpack.c.l.b16 %v257
      %v857 = vunpack.c.l.b16 %v258
      %v858 = vunpack.c.l.b16 %v259
      %v859 = vunpack.c.l.b16 %v260
      %v860 = vunpack.c.l.b16 %v261
      %v861 = vunpack.c.l.b16 %v262
      %v862 = vunpack.c.l.b16 %v263
      %v863 = vunpack.c.l.b16 %v264
      %v864 = vunpack.c.l.b16 %v265
      %v865 = vunpack.c.l.b16 %v266
      %v866 = vunpack.c.l.b16 %v267
      %v867 = vunpack.c.l.b16 %v268
      %v868 = vunpack.c.l.b16 %v269
      %v869 = vunpack.c.l.b16 %v270
      %v870 = vunpack.c.l.b16 %v271
      %v871 = vunpack.c.l.b16 %v272
      %v872 = vunpack.c.l.b16 %v273
      %v873 = vunpack.c.l.b16 %v274
      %v874 = vunpack.c.l.b16 %v275
      %v875 = vunpack.c.l.b16 %v276
      %v876 = vunpack.c.l.b16 %v277
      %v877 = vunpack.c.l.b16 %v278
      %v878 = vunpack.c.l.b16 %v279
      %v879 = vunpack.c.l.b16 %v280
      %v880 = vunpack.c.l.b16 %v281
      %v881 = vunpack.c.l.b16 %v282
      %v882 = vunpack.c.l.b16 %v283
      %v883 = vunpack.c.l.b16 %v284
      %v884 = vunpack.c.l.b16 %v285
      %v885 = vunpack.c.l.b16 %v286
      %v886 = vunpack.c.l.b16 %v287
      %v887 = vunpack.c.l.b16 %v288
      %v888 = vunpack.c.l.b16 %v289
      %v889 = vunpack.c.l.b16 %v290
      %v890 = vunpack.c.l.b16 %v291
      %v891 = vunpack.c.l.b16 %v292
      %v892 = vunpack.c.l.b16 %v293
      %v893 = vunpack.c.l.b16 %v294
      %v894 = vunpack.c.l.b16 %v295
      %v895 = vunpack.c.l.b16 %v296
      %v896 = vunpack.c.l.b16 %v297
      %v897 = vunpack.c.l.b16 %v298
      %v898 = vunpack.c.l.b16 %v299
      %v899 = vunpack.c.l.b16 %v300
      %v900 = vunpack.c.l.b16 %v301
      %v901 = vunpack.c.l.b16 %v302
      %v902 = vunpack.c.l.b16 %v303
      %v903 = vunpack.c.l.b16 %v304
      %v904 = vunpack.c.l.b16 %v305
      %v905 = vunpack.c.l.b16 %v306
      %v906 = vunpack.c.l.b16 %v307
      %v907 = vunpack.c.l.b16 %v308
      %v908 = vunpack.c.l.b16 %v309
      %v909 = vunpack.c.l.b16 %v310
      %v910 = vunpack.c.l.b16 %v311
      %v911 = vunpack.c.l.b16 %v312
      %v912 = vunpack.c.l.b16 %v313
      %v913 = vunpack.c.l.b16 %v314
      %v914 = vunpack.c.l.b16 %v315
      %v915 = vunpack.c.l.b16 %v316
      %v916 = vunpack.c.l.b16 %v317
      %v917 = vunpack.c.l.b16 %v318
      %v918 = vunpack.c.l.b16 %v319
      %v919 = vunpack.c.l.b16 %v320
      %v920 = vunpack.c.l.b16 %v321
      %v921 = vunpack.c.l.b16 %v322
      %v922 = vunpack.c.l.b16 %v323
      %v923 = vunpack.c.l.b16 %v324
      %v924 = vunpack.c.l.b16 %v325
      %v925 = vunpack.c.l.b16 %v326
      %v926 = vunpack.c.l.b16 %v327
      %v927 = vunpack.c.l.b16 %v328
      %v928 = vunpack.c.l.b16 %v329
      %v929 = vunpack.c.l.b16 %v330
      %v930 = vunpack.c.l.b16 %v331
      %v931 = vunpack.c.l.b16 %v332
      %v932 = vunpack.c.l.b16 %v333
      %v933 = vunpack.c.l.b16 %v334
      %v934 = vunpack.c.l.b16 %v335
      %v935 = vunpack.c.l.b16 %v336
      %v936 = vunpack.c.l.b16 %v337
      %v937 = vunpack.c.l.b16 %v338
      %v938 = vunpack.c.l.b16 %v339
      %v939 = vunpack.c.l.b16 %v340
      %v940 = vunpack.c.l.b16 %v341
      %v941 = vunpack.c.l.b16 %v342
      %v942 = vunpack.c.l.b16 %v343
      %v943 = vunpack.c.l.b16 %v344
      %v944 = vunpack.c.l.b16 %v345
      %v945 = vunpack.c.l.b16 %v346
      %v946 = vunpack.c.l.b16 %v347
      %v947 = vunpack.c.l.b16 %v348
      %v948 = vunpack.c.l.b16 %v349
      %v949 = vunpack.c.l.b16 %v350
      %v950 = vunpack.c.l.b16 %v351
      %v951 = vunpack.c.l.b16 %v352
      %v952 = vunpack.c.l.b16 %v353
      %v953 = vunpack.c.l.b16 %v354
      %v954 = vunpack.c.l.b16 %v355
      %v955 = vunpack.c.l.b16 %v356
      %v956 = vunpack.c.l.b16 %v357
      %v957 = vunpack.c.l.b16 %v358
      %v958 = vunpack.c.l.b16 %v359
      %v959 = vunpack.c.l.b16 %v360
      %v960 = vunpack.c.l.b16 %v361
      %v961 = vunpack.c.l.b16 %v362
      %v962 = vunpack.c.l.b16 %v363
      %v963 = vunpack.c.l.b16 %v364
      %v964 = vunpack.c.l.b16 %v365
      %v965 = vunpack.c.l.b16 %v366
      %v966 = vunpack.c.l.b16 %v367
      %v967 = vunpack.c.l.b16 %v368
      %v968 = vunpack.c.l.b16 %v369
      %v969 = vunpack.c.l.b16 %v370
      %v970 = vunpack.c.l.b16 %v371
      %v971 = vunpack.c.l.b16 %v372
      %v972 = vunpack.c.l.b16 %v373
      %v973 = vunpack.c.l.b16 %v374
      %v974 = vunpack.c.l.b16 %v375
      %v975 = vunpack.c.l.b16 %v376
      %v976 = vunpack.c.l.b16 %v377
      %v977 = vunpack.c.l.b16 %v378
      %v978 = vunpack.c.l.b16 %v379
      %v979 = vunpack.c.l.b16 %v380
      %v980 = vunpack.c.l.b16 %v381
      %v981 = vunpack.c.l.b16 %v382
      %v982 = vunpack.c.l.b16 %v383
      %v983 = vunpack.c.l.b16 %v384
      %v984 = vunpack.c.l.b16 %v385
      %v985 = vunpack.c.l.b16 %v386
      %v986 = vunpack.c.l.b16 %v387
      %v987 = vunpack.c.l.b16 %v388
      %v988 = vunpack.c.l.b16 %v389
      %v989 = vunpack.c.l.b16 %v390
      %v990 = vunpack.c.l.b16 %v391
      %v991 = vunpack.c.l.b16 %v392
      %v992 = vunpack.c.l.b16 %v393
      %v993 = vunpack.c.l.b16 %v394
      %v994 = vunpack.c.l.b16 %v395
      %v995 = vunpack.c.l.b16 %v396
      %v996 = vunpack.c.l.b16 %v397
      %v997 = vunpack.c.l.b16 %v398
      %v998 = vunpack.c.l.b16 %v399
      %v999 = vunpack.c.l.b16 %v400
      %v1000 = vunpack.c.l.b16 %v401
      %v1001 = vunpack.c.l.b16 %v402
      %v1002 = vunpack.c.l.b16 %v403
      %v1003 = vunpack.c.l.b16 %v404
      %v1004 = vunpack.c.l.b16 %v405
      %v1005 = vunpack.c.l.b16 %v406
      %v1006 = vunpack.c.l.b16 %v407
      %v1007 = vunpack.c.l.b16 %v408
      %v1008 = vunpack.c.l.b16 %v409
      %v1009 = vunpack.c.l.b16 %v410
      %v1010 = vunpack.c.l.b16 %v411
      %v1011 = vunpack.c.l.b16 %v412
      %v1012 = vunpack.c.l.b16 %v413
      %v1013 = vunpack.c.l.b16 %v414
      %v1014 = vunpack.c.l.b16 %v415
      %v1015 = vunpack.c.l.b16 %v416
      %v1016 = vunpack.c.l.b16 %v417
      %v1017 = vunpack.c.l.b16 %v418
      %v1018 = vunpack.c.l.b16 %v419
      %v1019 = vunpack.c.l.b16 %v420
      %v1020 = vunpack.c.l.b16 %v421
      %v1021 = vunpack.c.l.b16 %v422
      %v1022 = vunpack.c.l.b16 %v423
      %v1023 = vunpack.c.l.b16 %v424
      %v1024 = vunpack.c.l.b16 %v425
      %v1025 = vunpack.c.l.b16 %v426
      %v1026 = vunpack.c.l.b16 %v427
      %v1027 = vunpack.c.l.b16 %v428
      %v1028 = vunpack.c.l.b16 %v429
      %v1029 = vunpack.c.l.b16 %v430
      %v1030 = vunpack.c.l.b16 %v431
      %v1031 = vunpack.c.l.b16 %v432
      %v1032 = vunpack.c.l.b16 %v433
      %v1033 = vunpack.c.l.b16 %v434
      %v1034 = vunpack.c.l.b16 %v435
      %v1035 = vunpack.c.l.b16 %v436
      %v1036 = vunpack.c.l.b16 %v437
      %v1037 = vunpack.c.l.b16 %v438
      %v1038 = vunpack.c.l.b16 %v439
      %v1039 = vunpack.c.l.b16 %v440
      %v1040 = vunpack.c.l.b16 %v441
      %v1041 = vunpack.c.l.b16 %v442
      %v1042 = vunpack.c.l.b16 %v443
      %v1043 = vpack.c.b16 %v788, %v787
      %v1044 = vpack.c.b16 %v790, %v789
      %v1045 = vpack.c.b16 %v792, %v791
      %v1046 = vpack.c.b16 %v794, %v793
      %v1047 = vpack.c.b16 %v796, %v795
      %v1048 = vpack.c.b16 %v798, %v797
      %v1049 = vpack.c.b16 %v800, %v799
      %v1050 = vpack.c.b16 %v802, %v801
      %v1051 = vpack.c.b16 %v804, %v803
      %v1052 = vpack.c.b16 %v806, %v805
      %v1053 = vpack.c.b16 %v808, %v807
      %v1054 = vpack.c.b16 %v810, %v809
      %v1055 = vpack.c.b16 %v812, %v811
      %v1056 = vpack.c.b16 %v814, %v813
      %v1057 = vpack.c.b16 %v816, %v815
      %v1058 = vpack.c.b16 %v818, %v817
      %v1059 = vpack.c.b16 %v820, %v819
      %v1060 = vpack.c.b16 %v822, %v821
      %v1061 = vpack.c.b16 %v824, %v823
      %v1062 = vpack.c.b16 %v826, %v825
      %v1063 = vpack.c.b16 %v828, %v827
      %v1064 = vpack.c.b16 %v830, %v829
      %v1065 = vpack.c.b16 %v832, %v831
      %v1066 = vpack.c.b16 %v834, %v833
      %v1067 = vpack.c.b16 %v836, %v835
      %v1068 = vpack.c.b16 %v838, %v837
      %v1069 = vpack.c.b16 %v840, %v839
      %v1070 = vpack.c.b16 %v842, %v841
      %v1071 = vpack.c.b16 %v844, %v843
      %v1072 = vpack.c.b16 %v846, %v845
      %v1073 = vpack.c.b16 %v848, %v847
      %v1074 = vpack.c.b16 %v850, %v849
      %v1075 = vpack.c.b16 %v852, %v851
      %v1076 = vpack.c.b16 %v854, %v853
      %v1077 = vpack.c.b16 %v856, %v855
      %v1078 = vpack.c.b16 %v858, %v857
      %v1079 = vpack.c.b16 %v860, %v859
      %v1080 = vpack.c.b16 %v862, %v861
      %v1081 = vpack.c.b16 %v864, %v863
      %v1082 = vpack.c.b16 %v866, %v865
      %v1083 = vpack.c.b16 %v868, %v867
      %v1084 = vpack.c.b16 %v870, %v869
      %v1085 = vpack.c.b16 %v872, %v871
      %v1086 = vpack.c.b16 %v874, %v873
      %v1087 = vpack.c.b16 %v876, %v875
      %v1088 = vpack.c.b16 %v878, %v877
      %v1089 = vpack.c.b16 %v880, %v879
      %v1090 = vpack.c.b16 %v882, %v881
      %v1091 = vpack.c.b16 %v884, %v883
      %v1092 = vpack.c.b16 %v886, %v885
      %v1093 = vpack.c.b16 %v888, %v887
      %v1094 = vpack.c.b16 %v890, %v889
      %v1095 = vpack.c.b16 %v892, %v891
      %v1096 = vpack.c.b16 %v894, %v893
      %v1097 = vpack.c.b16 %v896, %v895
      %v1098 = vpack.c.b16 %v898, %v897
      %v1099 = vpack.c.b16 %v900, %v899
      %v1100 = vpack.c.b16 %v902, %v901
      %v1101 = vpack.c.b16 %v904, %v903
      %v1102 = vpack.c.b16 %v906, %v905
      %v1103 = vpack.c.b16 %v908, %v907
      %v1104 = vpack.c.b16 %v910, %v909
      %v1105 = vpack.c.b16 %v912, %v911
      %v1106 = vpack.c.b16 %v914, %v913
      %v1107 = vpack.c.b16 %v916, %v915
      %v1108 = vpack.c.b16 %v918, %v917
      %v1109 = vpack.c.b16 %v920, %v919
      %v1110 = vpack.c.b16 %v922, %v921
      %v1111 = vpack.c.b16 %v924, %v923
      %v1112 = vpack.c.b16 %v926, %v925
      %v1113 = vpack.c.b16 %v928, %v927
      %v1114 = vpack.c.b16 %v930, %v929
      %v1115 = vpack.c.b16 %v932, %v931
      %v1116 = vpack.c.b16 %v934, %v933
      %v1117 = vpack.c.b16 %v936, %v935
      %v1118 = vpack.c.b16 %v938, %v937
      %v1119 = vpack.c.b16 %v940, %v939
      %v1120 = vpack.c.b16 %v942, %v941
      %v1121 = vpack.c.b16 %v944, %v943
      %v1122 = vpack.c.b16 %v946, %v945
      %v1123 = vpack.c.b16 %v948, %v947
      %v1124 = vpack.c.b16 %v950, %v949
      %v1125 = vpack.c.b16 %v952, %v951
      %v1126 = vpack.c.b16 %v954, %v953
      %v1127 = vpack.c.b16 %v956, %v955
      %v1128 = vpack.c.b16 %v958, %v957
      %v1129 = vpack.c.b16 %v960, %v959
      %v1130 = vpack.c.b16 %v962, %v961
      %v1131 = vpack.c.b16 %v964, %v963
      %v1132 = vpack.c.b16 %v966, %v965
      %v1133 = vpack.c.b16 %v968, %v967
      %v1134 = vpack.c.b16 %v970, %v969
      %v1135 = vpack.c.b16 %v972, %v971
      %v1136 = vpack.c.b16 %v974, %v973
      %v1137 = vpack.c.b16 %v976, %v975
      %v1138 = vpack.c.b16 %v978, %v977
      %v1139 = vpack.c.b16 %v980, %v979
      %v1140 = vpack.c.b16 %v982, %v981
      %v1141 = vpack.c.b16 %v984, %v983
      %v1142 = vpack.c.b16 %v986, %v985
      %v1143 = vpack.c.b16 %v988, %v987
      %v1144 = vpack.c.b16 %v990, %v989
      %v1145 = vpack.c.b16 %v992, %v991
      %v1146 = vpack.c.b16 %v994, %v993
      %v1147 = vpack.c.b16 %v996, %v995
      %v1148 = vpack.c.b16 %v998, %v997
      %v1149 = vpack.c.b16 %v1000, %v999
      %v1150 = vpack.c.b16 %v1002, %v1001
      %v1151 = vpack.c.b16 %v1004, %v1003
      %v1152 = vpack.c.b16 %v1006, %v1005
      %v1153 = vpack.c.b16 %v1008, %v1007
      %v1154 = vpack.c.b16 %v1010, %v1009
      %v1155 = vpack.c.b16 %v1012, %v1011
      %v1156 = vpack.c.b16 %v1014, %v1013
      %v1157 = vpack.c.b16 %v1016, %v1015
      %v1158 = vpack.c.b16 %v1018, %v1017
      %v1159 = vpack.c.b16 %v1020, %v1019
      %v1160 = vpack.c.b16 %v1022, %v1021
      %v1161 = vpack.c.b16 %v1024, %v1023
      %v1162 = vpack.c.b16 %v1026, %v1025
      %v1163 = vpack.c.b16 %v1028, %v1027
      %v1164 = vpack.c.b16 %v1030, %v1029
      %v1165 = vpack.c.b16 %v1032, %v1031
      %v1166 = vpack.c.b16 %v1034, %v1033
      %v1167 = vpack.c.b16 %v1036, %v1035
      %v1168 = vpack.c.b16 %v1038, %v1037
      %v1169 = vpack.c.b16 %v1040, %v1039
      %v1170 = vpack.c.b16 %v1042, %v1041
      %1299 = vmatprep.subr.bf16.mxu0 0
      %1300 = vmatpush1.bf16.msra.mxu0 %v1043
      %1301 = vmatprep.subr.bf16.mxu0 0
      %1302 = vmatpush1.bf16.msra.mxu0 %v1044
      %1303 = vmatprep.subr.bf16.mxu0 0
      %1304 = vmatpush1.bf16.msra.mxu0 %v1045
      %1305 = vmatprep.subr.bf16.mxu0 0
      %1306 = vmatpush1.bf16.msra.mxu0 %v1046
      %1307 = vmatprep.subr.bf16.mxu0 0
      %1308 = vmatpush1.bf16.msra.mxu0 %v1047
      %1309 = vmatprep.subr.bf16.mxu0 0
      %1310 = vmatpush1.bf16.msra.mxu0 %v1048
      %1311 = vmatprep.subr.bf16.mxu0 0
      %1312 = vmatpush1.bf16.msra.mxu0 %v1049
      %1313 = vmatprep.subr.bf16.mxu0 0
      %1314 = vmatpush1.bf16.msra.mxu0 %v1050
      %1315 = vmatprep.subr.bf16.mxu0 0
      %1316 = vmatpush1.bf16.msra.mxu0 %v1051
      %1317 = vmatprep.subr.bf16.mxu0 0
      %1318 = vmatpush1.bf16.msra.mxu0 %v1052
      %1319 = vmatprep.subr.bf16.mxu0 0
      %1320 = vmatpush1.bf16.msra.mxu0 %v1053
      %1321 = vmatprep.subr.bf16.mxu0 0
      %1322 = vmatpush1.bf16.msra.mxu0 %v1054
      %1323 = vmatprep.subr.bf16.mxu0 0
      %1324 = vmatpush1.bf16.msra.mxu0 %v1055
      %1325 = vmatprep.subr.bf16.mxu0 0
      %1326 = vmatpush1.bf16.msra.mxu0 %v1056
      %1327 = vmatprep.subr.bf16.mxu0 0
      %1328 = vmatpush1.bf16.msra.mxu0 %v1057
      %1329 = vmatprep.subr.bf16.mxu0 0
      %1330 = vmatpush1.bf16.msra.mxu0 %v1058
      %1331 = vmatprep.mubr.bf16.mxu0 %v500
      %1332 = vmatmul.mubr.bf16.gmra.mrb[0].mxu0 %v499
      %v1333 = vpop.f32.mrb[0].mxu0
      %v1334 = vadd.f32 %v449, %v1333
      %v1335 = vpop.f32.mrb[0].mxu0
      %v1336 = vpop.f32.mrb[0].mxu0
      %v1337 = vadd.f32 %v449, %v1336
      %v1338 = vpop.f32.mrb[0].mxu0
      %1339 = vdwg.mxu0
      %1340 = vmatprep.subr.bf16.mxu0 0
      %1341 = vmatpush1.bf16.msra.mxu0 %v1059
      %1342 = vmatprep.subr.bf16.mxu0 0
      %1343 = vmatpush1.bf16.msra.mxu0 %v1060
      %1344 = vmatprep.subr.bf16.mxu0 0
      %1345 = vmatpush1.bf16.msra.mxu0 %v1061
      %1346 = vmatprep.subr.bf16.mxu0 0
      %1347 = vmatpush1.bf16.msra.mxu0 %v1062
      %1348 = vmatprep.subr.bf16.mxu0 0
      %1349 = vmatpush1.bf16.msra.mxu0 %v1063
      %1350 = vmatprep.subr.bf16.mxu0 0
      %1351 = vmatpush1.bf16.msra.mxu0 %v1064
      %1352 = vmatprep.subr.bf16.mxu0 0
      %1353 = vmatpush1.bf16.msra.mxu0 %v1065
      %1354 = vmatprep.subr.bf16.mxu0 0
      %1355 = vmatpush1.bf16.msra.mxu0 %v1066
      %1356 = vmatprep.subr.bf16.mxu0 0
      %1357 = vmatpush1.bf16.msra.mxu0 %v1067
      %1358 = vmatprep.subr.bf16.mxu0 0
      %1359 = vmatpush1.bf16.msra.mxu0 %v1068
      %1360 = vmatprep.subr.bf16.mxu0 0
      %1361 = vmatpush1.bf16.msra.mxu0 %v1069
      %1362 = vmatprep.subr.bf16.mxu0 0
      %1363 = vmatpush1.bf16.msra.mxu0 %v1070
      %1364 = vmatprep.subr.bf16.mxu0 0
      %1365 = vmatpush1.bf16.msra.mxu0 %v1071
      %1366 = vmatprep.subr.bf16.mxu0 0
      %1367 = vmatpush1.bf16.msra.mxu0 %v1072
      %1368 = vmatprep.subr.bf16.mxu0 0
      %1369 = vmatpush1.bf16.msra.mxu0 %v1073
      %1370 = vmatprep.subr.bf16.mxu0 0
      %1371 = vmatpush1.bf16.msra.mxu0 %v1074
      %1372 = vmatprep.mubr.bf16.mxu0 %v502
      %1373 = vmatmul.mubr.bf16.gmra.mrb[0].mxu0 %v501
      %v1374 = vpop.f32.mrb[0].mxu0
      %v1375 = vadd.f32 %v1334, %v1374
      %v1376 = vpop.f32.mrb[0].mxu0
      %v1377 = vpop.f32.mrb[0].mxu0
      %v1378 = vadd.f32 %v1337, %v1377
      %v1379 = vpop.f32.mrb[0].mxu0
      %1380 = vdwg.mxu0
      %1381 = vmatprep.subr.bf16.mxu0 0
      %1382 = vmatpush1.bf16.msra.mxu0 %v1075
      %1383 = vmatprep.subr.bf16.mxu0 0
      %1384 = vmatpush1.bf16.msra.mxu0 %v1076
      %1385 = vmatprep.subr.bf16.mxu0 0
      %1386 = vmatpush1.bf16.msra.mxu0 %v1077
      %1387 = vmatprep.subr.bf16.mxu0 0
      %1388 = vmatpush1.bf16.msra.mxu0 %v1078
      %1389 = vmatprep.subr.bf16.mxu0 0
      %1390 = vmatpush1.bf16.msra.mxu0 %v1079
      %1391 = vmatprep.subr.bf16.mxu0 0
      %1392 = vmatpush1.bf16.msra.mxu0 %v1080
      %1393 = vmatprep.subr.bf16.mxu0 0
      %1394 = vmatpush1.bf16.msra.mxu0 %v1081
      %1395 = vmatprep.subr.bf16.mxu0 0
      %1396 = vmatpush1.bf16.msra.mxu0 %v1082
      %1397 = vmatprep.subr.bf16.mxu0 0
      %1398 = vmatpush1.bf16.msra.mxu0 %v1083
      %1399 = vmatprep.subr.bf16.mxu0 0
      %1400 = vmatpush1.bf16.msra.mxu0 %v1084
      %1401 = vmatprep.subr.bf16.mxu0 0
      %1402 = vmatpush1.bf16.msra.mxu0 %v1085
      %1403 = vmatprep.subr.bf16.mxu0 0
      %1404 = vmatpush1.bf16.msra.mxu0 %v1086
      %1405 = vmatprep.subr.bf16.mxu0 0
      %1406 = vmatpush1.bf16.msra.mxu0 %v1087
      %1407 = vmatprep.subr.bf16.mxu0 0
      %1408 = vmatpush1.bf16.msra.mxu0 %v1088
      %1409 = vmatprep.subr.bf16.mxu0 0
      %1410 = vmatpush1.bf16.msra.mxu0 %v1089
      %1411 = vmatprep.subr.bf16.mxu0 0
      %1412 = vmatpush1.bf16.msra.mxu0 %v1090
      %1413 = vmatprep.mubr.bf16.mxu0 %v504
      %1414 = vmatmul.mubr.bf16.gmra.mrb[0].mxu0 %v503
      %v1415 = vpop.f32.mrb[0].mxu0
      %v1416 = vadd.f32 %v1375, %v1415
      %v1417 = vpop.f32.mrb[0].mxu0
      %v1418 = vpop.f32.mrb[0].mxu0
      %v1419 = vadd.f32 %v1378, %v1418
      %v1420 = vpop.f32.mrb[0].mxu0
      %1421 = vdwg.mxu0
      %1422 = vmatprep.subr.bf16.mxu0 0
      %1423 = vmatpush1.bf16.msra.mxu0 %v1091
      %1424 = vmatprep.subr.bf16.mxu0 0
      %1425 = vmatpush1.bf16.msra.mxu0 %v1092
      %1426 = vmatprep.subr.bf16.mxu0 0
      %1427 = vmatpush1.bf16.msra.mxu0 %v1093
      %1428 = vmatprep.subr.bf16.mxu0 0
      %1429 = vmatpush1.bf16.msra.mxu0 %v1094
      %1430 = vmatprep.subr.bf16.mxu0 0
      %1431 = vmatpush1.bf16.msra.mxu0 %v1095
      %1432 = vmatprep.subr.bf16.mxu0 0
      %1433 = vmatpush1.bf16.msra.mxu0 %v1096
      %1434 = vmatprep.subr.bf16.mxu0 0
      %1435 = vmatpush1.bf16.msra.mxu0 %v1097
      %1436 = vmatprep.subr.bf16.mxu0 0
      %1437 = vmatpush1.bf16.msra.mxu0 %v1098
      %1438 = vmatprep.subr.bf16.mxu0 0
      %1439 = vmatpush1.bf16.msra.mxu0 %v1099
      %1440 = vmatprep.subr.bf16.mxu0 0
      %1441 = vmatpush1.bf16.msra.mxu0 %v1100
      %1442 = vmatprep.subr.bf16.mxu0 0
      %1443 = vmatpush1.bf16.msra.mxu0 %v1101
      %1444 = vmatprep.subr.bf16.mxu0 0
      %1445 = vmatpush1.bf16.msra.mxu0 %v1102
      %1446 = vmatprep.subr.bf16.mxu0 0
      %1447 = vmatpush1.bf16.msra.mxu0 %v1103
      %1448 = vmatprep.subr.bf16.mxu0 0
      %1449 = vmatpush1.bf16.msra.mxu0 %v1104
      %1450 = vmatprep.subr.bf16.mxu0 0
      %1451 = vmatpush1.bf16.msra.mxu0 %v1105
      %1452 = vmatprep.subr.bf16.mxu0 0
      %1453 = vmatpush1.bf16.msra.mxu0 %v1106
      %1454 = vmatprep.mubr.bf16.mxu0 %v506
      %1455 = vmatmul.mubr.bf16.gmra.mrb[0].mxu0 %v505
      %v1456 = vpop.f32.mrb[0].mxu0
      %v1457 = vadd.f32 %v1416, %v1456
      %v1458 = vpop.f32.mrb[0].mxu0
      %v1459 = vpop.f32.mrb[0].mxu0
      %v1460 = vadd.f32 %v1419, %v1459
      %v1461 = vpop.f32.mrb[0].mxu0
      %1462 = vdwg.mxu0
      %1463 = vmatprep.subr.bf16.mxu0 0
      %1464 = vmatpush1.bf16.msra.mxu0 %v1107
      %1465 = vmatprep.subr.bf16.mxu0 0
      %1466 = vmatpush1.bf16.msra.mxu0 %v1108
      %1467 = vmatprep.subr.bf16.mxu0 0
      %1468 = vmatpush1.bf16.msra.mxu0 %v1109
      %1469 = vmatprep.subr.bf16.mxu0 0
      %1470 = vmatpush1.bf16.msra.mxu0 %v1110
      %1471 = vmatprep.subr.bf16.mxu0 0
      %1472 = vmatpush1.bf16.msra.mxu0 %v1111
      %1473 = vmatprep.subr.bf16.mxu0 0
      %1474 = vmatpush1.bf16.msra.mxu0 %v1112
      %1475 = vmatprep.subr.bf16.mxu0 0
      %1476 = vmatpush1.bf16.msra.mxu0 %v1113
      %1477 = vmatprep.subr.bf16.mxu0 0
      %1478 = vmatpush1.bf16.msra.mxu0 %v1114
      %1479 = vmatprep.subr.bf16.mxu0 0
      %1480 = vmatpush1.bf16.msra.mxu0 %v1115
      %1481 = vmatprep.subr.bf16.mxu0 0
      %1482 = vmatpush1.bf16.msra.mxu0 %v1116
      %1483 = vmatprep.subr.bf16.mxu0 0
      %1484 = vmatpush1.bf16.msra.mxu0 %v1117
      %1485 = vmatprep.subr.bf16.mxu0 0
      %1486 = vmatpush1.bf16.msra.mxu0 %v1118
      %1487 = vmatprep.subr.bf16.mxu0 0
      %1488 = vmatpush1.bf16.msra.mxu0 %v1119
      %1489 = vmatprep.subr.bf16.mxu0 0
      %1490 = vmatpush1.bf16.msra.mxu0 %v1120
      %1491 = vmatprep.subr.bf16.mxu0 0
      %1492 = vmatpush1.bf16.msra.mxu0 %v1121
      %1493 = vmatprep.subr.bf16.mxu0 0
      %1494 = vmatpush1.bf16.msra.mxu0 %v1122
      %1495 = vmatprep.mubr.bf16.mxu0 %v508
      %1496 = vmatmul.mubr.bf16.gmra.mrb[0].mxu0 %v507
      %v1497 = vpop.f32.mrb[0].mxu0
      %v1498 = vadd.f32 %v1457, %v1497
      %v1499 = vpop.f32.mrb[0].mxu0
      %v1500 = vpop.f32.mrb[0].mxu0
      %v1501 = vadd.f32 %v1460, %v1500
      %v1502 = vpop.f32.mrb[0].mxu0
      %1503 = vdwg.mxu0
      %1504 = vmatprep.subr.bf16.mxu0 0
      %1505 = vmatpush1.bf16.msra.mxu0 %v1123
      %1506 = vmatprep.subr.bf16.mxu0 0
      %1507 = vmatpush1.bf16.msra.mxu0 %v1124
      %1508 = vmatprep.subr.bf16.mxu0 0
      %1509 = vmatpush1.bf16.msra.mxu0 %v1125
      %1510 = vmatprep.subr.bf16.mxu0 0
      %1511 = vmatpush1.bf16.msra.mxu0 %v1126
      %1512 = vmatprep.subr.bf16.mxu0 0
      %1513 = vmatpush1.bf16.msra.mxu0 %v1127
      %1514 = vmatprep.subr.bf16.mxu0 0
      %1515 = vmatpush1.bf16.msra.mxu0 %v1128
      %1516 = vmatprep.subr.bf16.mxu0 0
      %1517 = vmatpush1.bf16.msra.mxu0 %v1129
      %1518 = vmatprep.subr.bf16.mxu0 0
      %1519 = vmatpush1.bf16.msra.mxu0 %v1130
      %1520 = vmatprep.subr.bf16.mxu0 0
      %1521 = vmatpush1.bf16.msra.mxu0 %v1131
      %1522 = vmatprep.subr.bf16.mxu0 0
      %1523 = vmatpush1.bf16.msra.mxu0 %v1132
      %1524 = vmatprep.subr.bf16.mxu0 0
      %1525 = vmatpush1.bf16.msra.mxu0 %v1133
      %1526 = vmatprep.subr.bf16.mxu0 0
      %1527 = vmatpush1.bf16.msra.mxu0 %v1134
      %1528 = vmatprep.subr.bf16.mxu0 0
      %1529 = vmatpush1.bf16.msra.mxu0 %v1135
      %1530 = vmatprep.subr.bf16.mxu0 0
      %1531 = vmatpush1.bf16.msra.mxu0 %v1136
      %1532 = vmatprep.subr.bf16.mxu0 0
      %1533 = vmatpush1.bf16.msra.mxu0 %v1137
      %1534 = vmatprep.subr.bf16.mxu0 0
      %1535 = vmatpush1.bf16.msra.mxu0 %v1138
      %1536 = vmatprep.mubr.bf16.mxu0 %v510
      %1537 = vmatmul.mubr.bf16.gmra.mrb[0].mxu0 %v509
      %v1538 = vpop.f32.mrb[0].mxu0
      %v1539 = vadd.f32 %v1498, %v1538
      %v1540 = vpop.f32.mrb[0].mxu0
      %v1541 = vpop.f32.mrb[0].mxu0
      %v1542 = vadd.f32 %v1501, %v1541
      %v1543 = vpop.f32.mrb[0].mxu0
      %1544 = vdwg.mxu0
      %1545 = vmatprep.subr.bf16.mxu0 0
      %1546 = vmatpush1.bf16.msra.mxu0 %v1139
      %1547 = vmatprep.subr.bf16.mxu0 0
      %1548 = vmatpush1.bf16.msra.mxu0 %v1140
      %1549 = vmatprep.subr.bf16.mxu0 0
      %1550 = vmatpush1.bf16.msra.mxu0 %v1141
      %1551 = vmatprep.subr.bf16.mxu0 0
      %1552 = vmatpush1.bf16.msra.mxu0 %v1142
      %1553 = vmatprep.subr.bf16.mxu0 0
      %1554 = vmatpush1.bf16.msra.mxu0 %v1143
      %1555 = vmatprep.subr.bf16.mxu0 0
      %1556 = vmatpush1.bf16.msra.mxu0 %v1144
      %1557 = vmatprep.subr.bf16.mxu0 0
      %1558 = vmatpush1.bf16.msra.mxu0 %v1145
      %1559 = vmatprep.subr.bf16.mxu0 0
      %1560 = vmatpush1.bf16.msra.mxu0 %v1146
      %1561 = vmatprep.subr.bf16.mxu0 0
      %1562 = vmatpush1.bf16.msra.mxu0 %v1147
      %1563 = vmatprep.subr.bf16.mxu0 0
      %1564 = vmatpush1.bf16.msra.mxu0 %v1148
      %1565 = vmatprep.subr.bf16.mxu0 0
      %1566 = vmatpush1.bf16.msra.mxu0 %v1149
      %1567 = vmatprep.subr.bf16.mxu0 0
      %1568 = vmatpush1.bf16.msra.mxu0 %v1150
      %1569 = vmatprep.subr.bf16.mxu0 0
      %1570 = vmatpush1.bf16.msra.mxu0 %v1151
      %1571 = vmatprep.subr.bf16.mxu0 0
      %1572 = vmatpush1.bf16.msra.mxu0 %v1152
      %1573 = vmatprep.subr.bf16.mxu0 0
      %1574 = vmatpush1.bf16.msra.mxu0 %v1153
      %1575 = vmatprep.subr.bf16.mxu0 0
      %1576 = vmatpush1.bf16.msra.mxu0 %v1154
      %1577 = vmatprep.mubr.bf16.mxu0 %v512
      %1578 = vmatmul.mubr.bf16.gmra.mrb[0].mxu0 %v511
      %v1579 = vpop.f32.mrb[0].mxu0
      %v1580 = vadd.f32 %v1539, %v1579
      %v1581 = vpop.f32.mrb[0].mxu0
      %v1582 = vpop.f32.mrb[0].mxu0
      %v1583 = vadd.f32 %v1542, %v1582
      %v1584 = vpop.f32.mrb[0].mxu0
      %1585 = vdwg.mxu0
      %1586 = vmatprep.subr.bf16.mxu0 0
      %1587 = vmatpush1.bf16.msra.mxu0 %v1155
      %1588 = vmatprep.subr.bf16.mxu0 0
      %1589 = vmatpush1.bf16.msra.mxu0 %v1156
      %1590 = vmatprep.subr.bf16.mxu0 0
      %1591 = vmatpush1.bf16.msra.mxu0 %v1157
      %1592 = vmatprep.subr.bf16.mxu0 0
      %1593 = vmatpush1.bf16.msra.mxu0 %v1158
      %1594 = vmatprep.subr.bf16.mxu0 0
      %1595 = vmatpush1.bf16.msra.mxu0 %v1159
      %1596 = vmatprep.subr.bf16.mxu0 0
      %1597 = vmatpush1.bf16.msra.mxu0 %v1160
      %1598 = vmatprep.subr.bf16.mxu0 0
      %1599 = vmatpush1.bf16.msra.mxu0 %v1161
      %1600 = vmatprep.subr.bf16.mxu0 0
      %1601 = vmatpush1.bf16.msra.mxu0 %v1162
      %1602 = vmatprep.subr.bf16.mxu0 0
      %1603 = vmatpush1.bf16.msra.mxu0 %v1163
      %1604 = vmatprep.subr.bf16.mxu0 0
      %1605 = vmatpush1.bf16.msra.mxu0 %v1164
      %1606 = vmatprep.subr.bf16.mxu0 0
      %1607 = vmatpush1.bf16.msra.mxu0 %v1165
      %1608 = vmatprep.subr.bf16.mxu0 0
      %1609 = vmatpush1.bf16.msra.mxu0 %v1166
      %1610 = vmatprep.subr.bf16.mxu0 0
      %1611 = vmatpush1.bf16.msra.mxu0 %v1167
      %1612 = vmatprep.subr.bf16.mxu0 0
      %1613 = vmatpush1.bf16.msra.mxu0 %v1168
      %1614 = vmatprep.subr.bf16.mxu0 0
      %1615 = vmatpush1.bf16.msra.mxu0 %v1169
      %1616 = vmatprep.subr.bf16.mxu0 0
      %1617 = vmatpush1.bf16.msra.mxu0 %v1170
      %1618 = vmatprep.mubr.bf16.mxu0 %v514
      %1619 = vmatmul.mubr.bf16.gmra.mrb[0].mxu0 %v513
      %v1620 = vpop.f32.mrb[0].mxu0
      %v1621 = vadd.f32 %v1580, %v1620
      %v1622 = vpop.f32.mrb[0].mxu0
      %v1623 = vpop.f32.mrb[0].mxu0
      %v1624 = vadd.f32 %v1583, %v1623
      %v1625 = vpop.f32.mrb[0].mxu0
      %1626 = vdwg.mxu0
      %v1627 = vadd.f32 %v1621, %v1624
      %v1628 = vrot.slane %v1627, 4
      %v1629 = vadd.f32 %v1627, %v1628
      %v1630 = vrot.slane %v1629, 2
      %v1631 = vadd.f32 %v1629, %v1630
      %v1632 = vrot.slane %v1631, 1
      %v1633 = vadd.f32 %v1631, %v1632
      %v1634 = vrcp.pop 16.0
      %v1635 = vmul.f32 %v1633, %v1634
      %v1636 = vsub.f32 %v1621, %v1635
      %v1637 = vsub.f32 %v1624, %v1635
      %v1638 = vmul.f32 %v1636, %v1636
      %v1639 = vmul.f32 %v1637, %v1637
      %v1640 = vadd.f32 %v1638, %v1639
      %v1641 = vrot.slane %v1640, 4
      %v1642 = vadd.f32 %v1640, %v1641
      %v1643 = vrot.slane %v1642, 2
      %v1644 = vadd.f32 %v1642, %v1643
      %v1645 = vrot.slane %v1644, 1
      %v1646 = vadd.f32 %v1644, %v1645
      %v1647 = vmul.f32 %v1646, %v1634
      %v1648 = vadd.f32 %v1647, 1e-05
      %v1649 = vrsqrt.pop %v1648
      %v1650 = vmul.f32 %v1636, %v1649
      %v1651 = vmul.f32 %v1637, %v1649
      %vm1652 = vcmp.ge.f32.partialorder %v1650, 0.0
      %vm1653 = vcmp.ge.f32.partialorder %v1651, 0.0
      %v1654 = vmul.f32 %v1650, 0.2
      %v1655 = vmul.f32 %v1651, 0.2
      %v1656 = vsel %vm1652, %v1650, %v1654
      %v1657 = vsel %vm1653, %v1651, %v1655
      %v1658 = vpack.c.bf16 %v1657, %v1656
      %v1660 = vunpack.c.l.b16 %v1658
      %v1661 = vunpack.c.h.b16 %v1658
      %v1662 = vpack.c.b16 %v1660, %v1660
      %v1663 = vpack.c.b16 %v1661, %v1661
      %1666 = vst [vmem:[%s170] sm:$0xf] %v1662
      %1667 = vst [vmem:[%s170 + $0x4] sm:$0xf] %v1663
      %p1668 = scmp.lt.s32.totalorder %s14, 1
      %s1669 = scalar_select %p1668, %s14, 1
      %s1670 = smul.addr %s1669, 2
      %s1671 = smul.addr %s1670, 4
      %s1672 = scalar_lea.vmem %s3, %s1671
      // Predicated region
      $region33: #{_lambda_.4} parent=31 // pred_check
        %p1673 = pneg %p100
      $region34: #{_lambda_.4} parent=31 // pred_check_branch
        %1675 = sbr.rel (%p1673) target = $region36
      $region35: #{_lambda_.4} parent=31 // pred_region
        _
      $region36: #{_lambda_.4} parent=31 // pred_fallthru
        _
    $region32: #{_lambda_.4} parent=5 // pred_fallthru
      _
    %p1676 = scmp.le.s32.totalorder 2, %s9
    // Predicated region
    $region37: #{_lambda_.4} parent=5 // pred_check
      %p1677 = pneg %p1676
    $region38: #{_lambda_.4} parent=5 // pred_check_branch
      %1679 = sbr.rel (%p1677) target = $region40
    $region39: #{_lambda_.4} parent=5 // pred_region
      %s1680 = ssub.s32 %s9, 2
      // Predicated region
      $region41: #{_lambda_.4} parent=39 // pred_check
        %p1681 = pneg %p106
      $region42: #{_lambda_.4} parent=39 // pred_check_branch
        %1683 = sbr.rel (%p1681) target = $region44
      $region43: #{_lambda_.4} parent=39 // pred_region
        %p1684 = scmp.lt.s32.totalorder %s15, 1
        %s1685 = scalar_select %p1684, %s15, 1
        %s1686 = smul.addr %s1685, 2
        %s1687 = smul.addr %s1686, 4
        %s1688 = scalar_lea.vmem %s3, %s1687
      $region44: #{_lambda_.4} parent=39 // pred_fallthru
        _
    $region40: #{_lambda_.4} parent=5 // pred_fallthru
      _
  $region6: #{_lambda_.4} parent=0 // loop_footer
    %s13 = sadd.s32 1, %s9
  $region7: #{_lambda_.4} parent=0 // loop_footer_branch
    %8 = sbr.rel target = $region3
  $region8: #{_lambda_.4} parent=0 // loop_exit
    _

// kernel: _lambda_.5
$region0: #{_lambda_.5}
  #allocation0 [shape = 'u32[]', space=smem, size = 0x4, offset = 0x4, fixed_abs, tag = 'smem constant byte address 0x4 - core index']
  #allocation1 [shape = 'u32[144,128]{1,0:T(1,128)}', space=vmem, size = 0x12000, scoped, tag = 'internal scratch']
  %s0 = inlined_call_operand.vmem [shape: bf16[2,9,2048], index: 0, kind: input, shape index: {}]
  %s1 = inlined_call_operand.vmem [shape: bf16[2048,128], index: 1, kind: input, shape index: {}]
  %s2 = inlined_call_operand.vmem [shape: f32[1,128], index: 2, kind: input, shape index: {}]
  %s3 = inlined_call_operand.vmem [shape: f32[2,9,1], index: 3, kind: output, shape index: {}]
  %s4 = sld [smem:[#allocation0]]
  $region45: #{_lambda_.5} parent=0
    _
  %s6 = ssub.s32 1, %s4
  %s7 = scalar_select 0, %s6, %s4
  loop: start=0, step=1, limit=4
  $region2: #{_lambda_.5} parent=0 // loop_pre_header
    _
  $region3: #{_lambda_.5} parent=0 // loop_header
    %s9 = sphi 0, %s13
    %p10 = scmp.ge.s32.totalorder %s9, 4
    %s19 = sphi 0, %s21
    %s22 = sphi 0, %s19
    %s23 = sphi 0, %s22
    %s39 = sphi 0, %s23
    %s43 = sphi 0, %s43
    %s45 = sphi 0, %s43
    %s46 = sphi 0, %s45
    %s60 = sphi 0, %s46
    %s64 = sphi 0, %s64
    %s66 = sphi 0, %s64
    %s67 = sphi 0, %s66
    %s81 = sphi 0, %s67
    %s87 = sphi 0, %s89
    %s90 = sphi 0, %s87
    %s91 = sphi 0, %s90
    %s107 = sphi 0, %s91
  $region4: #{_lambda_.5} parent=0 // loop_header_branch
    %12 = sbr.rel (%p10) target = $region8
  $region5: #{_lambda_.5} parent=0 // loop_body
    %s14 = ssub.s32 %s9, 1
    %s15 = ssub.s32 %s9, 2
    %s16 = sadd.s32 %s9, 1
    %s17 = ssub.s32 %s9, %s16
    %p18 = scmp.eq.s32.totalorder %s17, 0
    %s20 = sadd.s32 %s19, 1
    %s21 = scalar_select %p18, %s19, %s20
    %p24 = pneg %p18
    %p25 = scmp.eq.s32.totalorder %s9, 1
    %p26 = por %p24, %p25
    %p27 = scmp.ne.s32.totalorder %s19, %s22
    %p28 = scmp.eq.s32.totalorder %s9, 0
    %p29 = por %p27, %p28
    %p30 = scmp.ne.s32.totalorder %s19, %s22
    %p31 = scmp.eq.s32.totalorder %s14, 1
    %p32 = por %p30, %p31
    %p33 = scmp.ne.s32.totalorder %s22, %s23
    %p34 = scmp.eq.s32.totalorder %s14, 0
    %p35 = por %p33, %p34
    %p36 = scmp.ne.s32.totalorder %s22, %s23
    %p37 = scmp.eq.s32.totalorder %s15, 1
    %p38 = por %p36, %p37
    %p40 = scmp.ne.s32.totalorder %s23, %s39
    %p41 = scmp.eq.s32.totalorder %s15, 0
    %p42 = por %p40, %p41
    %s44 = sadd.s32 %s43, 1
    %p47 = scmp.eq.s32.totalorder %s9, 1
    %p48 = scmp.ne.s32.totalorder %s43, %s45
    %p49 = scmp.eq.s32.totalorder %s9, 0
    %p50 = por %p48, %p49
    %p51 = scmp.ne.s32.totalorder %s43, %s45
    %p52 = scmp.eq.s32.totalorder %s14, 1
    %p53 = por %p51, %p52
    %p54 = scmp.ne.s32.totalorder %s45, %s46
    %p55 = scmp.eq.s32.totalorder %s14, 0
    %p56 = por %p54, %p55
    %p57 = scmp.ne.s32.totalorder %s45, %s46
    %p58 = scmp.eq.s32.totalorder %s15, 1
    %p59 = por %p57, %p58
    %p61 = scmp.ne.s32.totalorder %s46, %s60
    %p62 = scmp.eq.s32.totalorder %s15, 0
    %p63 = por %p61, %p62
    %s65 = sadd.s32 %s64, 1
    %p68 = scmp.eq.s32.totalorder %s9, 1
    %p69 = scmp.ne.s32.totalorder %s64, %s66
    %p70 = scmp.eq.s32.totalorder %s9, 0
    %p71 = por %p69, %p70
    %p72 = scmp.ne.s32.totalorder %s64, %s66
    %p73 = scmp.eq.s32.totalorder %s14, 1
    %p74 = por %p72, %p73
    %p75 = scmp.ne.s32.totalorder %s66, %s67
    %p76 = scmp.eq.s32.totalorder %s14, 0
    %p77 = por %p75, %p76
    %p78 = scmp.ne.s32.totalorder %s66, %s67
    %p79 = scmp.eq.s32.totalorder %s15, 1
    %p80 = por %p78, %p79
    %p82 = scmp.ne.s32.totalorder %s67, %s81
    %p83 = scmp.eq.s32.totalorder %s15, 0
    %p84 = por %p82, %p83
    %s85 = ssub.s32 %s9, %s16
    %p86 = scmp.eq.s32.totalorder %s85, 0
    %s88 = sadd.s32 %s87, 1
    %s89 = scalar_select %p86, %s87, %s88
    %p92 = pneg %p86
    %p93 = scmp.eq.s32.totalorder %s9, 1
    %p94 = por %p92, %p93
    %p95 = scmp.ne.s32.totalorder %s87, %s90
    %p96 = scmp.eq.s32.totalorder %s9, 0
    %p97 = por %p95, %p96
    %p98 = scmp.ne.s32.totalorder %s87, %s90
    %p99 = scmp.eq.s32.totalorder %s14, 1
    %p100 = por %p98, %p99
    %p101 = scmp.ne.s32.totalorder %s90, %s91
    %p102 = scmp.eq.s32.totalorder %s14, 0
    %p103 = por %p101, %p102
    %p104 = scmp.ne.s32.totalorder %s90, %s91
    %p105 = scmp.eq.s32.totalorder %s15, 1
    %p106 = por %p104, %p105
    %p108 = scmp.ne.s32.totalorder %s91, %s107
    %p109 = scmp.eq.s32.totalorder %s15, 0
    %p110 = por %p108, %p109
    %p111 = scmp.le.s32.totalorder 1, %s9
    %p112 = scmp.lt.s32.totalorder %s9, 3
    %p113 = pnand %p111, %p112
    %p114 = pneg %p113
    // Predicated region
    $region9: #{_lambda_.5} parent=5 // pred_check
      _
    $region10: #{_lambda_.5} parent=5 // pred_check_branch
      %116 = sbr.rel (%p113) target = $region12
    $region11: #{_lambda_.5} parent=5 // pred_region
      %s117 = ssub.s32 %s9, 1
      // Predicated region
      $region13: #{_lambda_.5} parent=11 // pred_check
        %p118 = pneg %p56
      $region14: #{_lambda_.5} parent=11 // pred_check_branch
        %120 = sbr.rel (%p118) target = $region16
      $region15: #{_lambda_.5} parent=11 // pred_region
        _
      $region16: #{_lambda_.5} parent=11 // pred_fallthru
        _
      // Predicated region
      $region17: #{_lambda_.5} parent=11 // pred_check
        %p121 = pneg %p77
      $region18: #{_lambda_.5} parent=11 // pred_check_branch
        %123 = sbr.rel (%p121) target = $region20
      $region19: #{_lambda_.5} parent=11 // pred_region
        _
      $region20: #{_lambda_.5} parent=11 // pred_fallthru
        _
    $region12: #{_lambda_.5} parent=5 // pred_fallthru
      _
    %p124 = scmp.lt.s32.totalorder %s9, 2
    // Predicated region
    $region21: #{_lambda_.5} parent=5 // pred_check
      %p125 = pneg %p124
    $region22: #{_lambda_.5} parent=5 // pred_check_branch
      %127 = sbr.rel (%p125) target = $region24
    $region23: #{_lambda_.5} parent=5 // pred_region
      // Predicated region
      $region25: #{_lambda_.5} parent=23 // pred_check
        %p128 = pneg %p29
      $region26: #{_lambda_.5} parent=23 // pred_check_branch
        %130 = sbr.rel (%p128) target = $region28
      $region27: #{_lambda_.5} parent=23 // pred_region
        %p131 = scmp.lt.s32.totalorder %s9, 1
        %s132 = scalar_select %p131, %s9, 1
        %s133 = smul.addr %s132, 32
        %s134 = smul.addr %s133, 4
        %s135 = scalar_lea.vmem %s0, %s134
      $region28: #{_lambda_.5} parent=23 // pred_fallthru
        _
    $region24: #{_lambda_.5} parent=5 // pred_fallthru
      _
    %p136 = scmp.le.s32.totalorder 1, %s9
    %p137 = scmp.lt.s32.totalorder %s9, 3
    %p138 = pnand %p136, %p137
    %p139 = pneg %p138
    // Predicated region
    $region29: #{_lambda_.5} parent=5 // pred_check
      _
    $region30: #{_lambda_.5} parent=5 // pred_check_branch
      %141 = sbr.rel (%p138) target = $region32
    $region31: #{_lambda_.5} parent=5 // pred_region
      %s142 = ssub.s32 %s9, 1
      %p143 = scmp.lt.s32.totalorder %s14, 1
      %s144 = scalar_select %p143, %s14, 1
      %s145 = smul.addr %s144, 32
      %s146 = smul.addr %s145, 4
      %s147 = scalar_lea.vmem %s0, %s146
      %p148 = pneg %p35
      %p149 = pneg %p32
      %p150 = pneg %p56
      %p151 = pneg %p53
      %p152 = pneg %p77
      %p153 = pneg %p74
      %p154 = pneg %p103
      %p155 = pneg %p100
      %p156 = scmp.lt.s32.totalorder %s14, 1
      %s157 = scalar_select %p156, %s14, 1
      %s158 = smul.addr %s157, 2
      %s159 = smul.addr %s158, 8
      %s160 = scalar_lea.vmem %s3, %s159
      %p161 = scmp.lt.s32.totalorder %s14, 1
      %s162 = scalar_select %p161, %s14, 1
      %s163 = smul.addr %s162, 32
      %s164 = smul.addr %s163, 4
      %s165 = scalar_lea.vmem %s0, %s164
      %p166 = scmp.lt.s32.totalorder %s14, 1
      %s167 = scalar_select %p166, %s14, 1
      %s168 = smul.addr %s167, 2
      %s169 = smul.addr %s168, 8
      %s170 = scalar_lea.vmem %s3, %s169
      %v172 = vld [vmem:[%s165] sm:$0xff]
      %v173 = vld [vmem:[%s165 + $0x8] sm:$0xff]
      %v174 = vld [vmem:[%s165 + $0x10] sm:$0xff]
      %v175 = vld [vmem:[%s165 + $0x18] sm:$0xff]
      %v176 = vld [vmem:[%s165 + $0x20] sm:$0xff]
      %v177 = vld [vmem:[%s165 + $0x28] sm:$0xff]
      %v178 = vld [vmem:[%s165 + $0x30] sm:$0xff]
      %v179 = vld [vmem:[%s165 + $0x38] sm:$0xff]
      %v180 = vld [vmem:[%s165 + $0x40] sm:$0x11]
      %v181 = vld [vmem:[%s165 + $0x48] sm:$0x11]
      %v182 = vld [vmem:[%s165 + $0x50] sm:$0x11]
      %v183 = vld [vmem:[%s165 + $0x58] sm:$0x11]
      %v184 = vld [vmem:[%s165 + $0x60] sm:$0x11]
      %v185 = vld [vmem:[%s165 + $0x68] sm:$0x11]
      %v186 = vld [vmem:[%s165 + $0x70] sm:$0x11]
      %v187 = vld [vmem:[%s165 + $0x78] sm:$0x11]
      %v188 = vld [vmem:[%s1] sm:$0xf]
      %v189 = vld [vmem:[%s1 + $0x4] sm:$0xf]
      %v190 = vld [vmem:[%s1 + $0x8] sm:$0xf]
      %v191 = vld [vmem:[%s1 + $0xc] sm:$0xf]
      %v192 = vld [vmem:[%s1 + $0x10] sm:$0xf]
      %v193 = vld [vmem:[%s1 + $0x14] sm:$0xf]
      %v194 = vld [vmem:[%s1 + $0x18] sm:$0xf]
      %v195 = vld [vmem:[%s1 + $0x1c] sm:$0xf]
      %v196 = vld [vmem:[%s1 + $0x20] sm:$0xf]
      %v197 = vld [vmem:[%s1 + $0x24] sm:$0xf]
      %v198 = vld [vmem:[%s1 + $0x28] sm:$0xf]
      %v199 = vld [vmem:[%s1 + $0x2c] sm:$0xf]
      %v200 = vld [vmem:[%s1 + $0x30] sm:$0xf]
      %v201 = vld [vmem:[%s1 + $0x34] sm:$0xf]
      %v202 = vld [vmem:[%s1 + $0x38] sm:$0xf]
      %v203 = vld [vmem:[%s1 + $0x3c] sm:$0xf]
      %v204 = vld [vmem:[%s1 + $0x40] sm:$0xf]
      %v205 = vld [vmem:[%s1 + $0x44] sm:$0xf]
      %v206 = vld [vmem:[%s1 + $0x48] sm:$0xf]
      %v207 = vld [vmem:[%s1 + $0x4c] sm:$0xf]
      %v208 = vld [vmem:[%s1 + $0x50] sm:$0xf]
      %v209 = vld [vmem:[%s1 + $0x54] sm:$0xf]
      %v210 = vld [vmem:[%s1 + $0x58] sm:$0xf]
      %v211 = vld [vmem:[%s1 + $0x5c] sm:$0xf]
      %v212 = vld [vmem:[%s1 + $0x60] sm:$0xf]
      %v213 = vld [vmem:[%s1 + $0x64] sm:$0xf]
      %v214 = vld [vmem:[%s1 + $0x68] sm:$0xf]
      %v215 = vld [vmem:[%s1 + $0x6c] sm:$0xf]
      %v216 = vld [vmem:[%s1 + $0x70] sm:$0xf]
      %v217 = vld [vmem:[%s1 + $0x74] sm:$0xf]
      %v218 = vld [vmem:[%s1 + $0x78] sm:$0xf]
      %v219 = vld [vmem:[%s1 + $0x7c] sm:$0xf]
      %v220 = vld [vmem:[%s1 + $0x80] sm:$0xf]
      %v221 = vld [vmem:[%s1 + $0x84] sm:$0xf]
      %v222 = vld [vmem:[%s1 + $0x88] sm:$0xf]
      %v223 = vld [vmem:[%s1 + $0x8c] sm:$0xf]
      %v224 = vld [vmem:[%s1 + $0x90] sm:$0xf]
      %v225 = vld [vmem:[%s1 + $0x94] sm:$0xf]
      %v226 = vld [vmem:[%s1 + $0x98] sm:$0xf]
      %v227 = vld [vmem:[%s1 + $0x9c] sm:$0xf]
      %v228 = vld [vmem:[%s1 + $0xa0] sm:$0xf]
      %v229 = vld [vmem:[%s1 + $0xa4] sm:$0xf]
      %v230 = vld [vmem:[%s1 + $0xa8] sm:$0xf]
      %v231 = vld [vmem:[%s1 + $0xac] sm:$0xf]
      %v232 = vld [vmem:[%s1 + $0xb0] sm:$0xf]
      %v233 = vld [vmem:[%s1 + $0xb4] sm:$0xf]
      %v234 = vld [vmem:[%s1 + $0xb8] sm:$0xf]
      %v235 = vld [vmem:[%s1 + $0xbc] sm:$0xf]
      %v236 = vld [vmem:[%s1 + $0xc0] sm:$0xf]
      %v237 = vld [vmem:[%s1 + $0xc4] sm:$0xf]
      %v238 = vld [vmem:[%s1 + $0xc8] sm:$0xf]
      %v239 = vld [vmem:[%s1 + $0xcc] sm:$0xf]
      %v240 = vld [vmem:[%s1 + $0xd0] sm:$0xf]
      %v241 = vld [vmem:[%s1 + $0xd4] sm:$0xf]
      %v242 = vld [vmem:[%s1 + $0xd8] sm:$0xf]
      %v243 = vld [vmem:[%s1 + $0xdc] sm:$0xf]
      %v244 = vld [vmem:[%s1 + $0xe0] sm:$0xf]
      %v245 = vld [vmem:[%s1 + $0xe4] sm:$0xf]
      %v246 = vld [vmem:[%s1 + $0xe8] sm:$0xf]
      %v247 = vld [vmem:[%s1 + $0xec] sm:$0xf]
      %v248 = vld [vmem:[%s1 + $0xf0] sm:$0xf]
      %v249 = vld [vmem:[%s1 + $0xf4] sm:$0xf]
      %v250 = vld [vmem:[%s1 + $0xf8] sm:$0xf]
      %v251 = vld [vmem:[%s1 + $0xfc] sm:$0xf]
      %v252 = vld [vmem:[%s1 + $0x100] sm:$0xf]
      %v253 = vld [vmem:[%s1 + $0x104] sm:$0xf]
      %v254 = vld [vmem:[%s1 + $0x108] sm:$0xf]
      %v255 = vld [vmem:[%s1 + $0x10c] sm:$0xf]
      %v256 = vld [vmem:[%s1 + $0x110] sm:$0xf]
      %v257 = vld [vmem:[%s1 + $0x114] sm:$0xf]
      %v258 = vld [vmem:[%s1 + $0x118] sm:$0xf]
      %v259 = vld [vmem:[%s1 + $0x11c] sm:$0xf]
      %v260 = vld [vmem:[%s1 + $0x120] sm:$0xf]
      %v261 = vld [vmem:[%s1 + $0x124] sm:$0xf]
      %v262 = vld [vmem:[%s1 + $0x128] sm:$0xf]
      %v263 = vld [vmem:[%s1 + $0x12c] sm:$0xf]
      %v264 = vld [vmem:[%s1 + $0x130] sm:$0xf]
      %v265 = vld [vmem:[%s1 + $0x134] sm:$0xf]
      %v266 = vld [vmem:[%s1 + $0x138] sm:$0xf]
      %v267 = vld [vmem:[%s1 + $0x13c] sm:$0xf]
      %v268 = vld [vmem:[%s1 + $0x140] sm:$0xf]
      %v269 = vld [vmem:[%s1 + $0x144] sm:$0xf]
      %v270 = vld [vmem:[%s1 + $0x148] sm:$0xf]
      %v271 = vld [vmem:[%s1 + $0x14c] sm:$0xf]
      %v272 = vld [vmem:[%s1 + $0x150] sm:$0xf]
      %v273 = vld [vmem:[%s1 + $0x154] sm:$0xf]
      %v274 = vld [vmem:[%s1 + $0x158] sm:$0xf]
      %v275 = vld [vmem:[%s1 + $0x15c] sm:$0xf]
      %v276 = vld [vmem:[%s1 + $0x160] sm:$0xf]
      %v277 = vld [vmem:[%s1 + $0x164] sm:$0xf]
      %v278 = vld [vmem:[%s1 + $0x168] sm:$0xf]
      %v279 = vld [vmem:[%s1 + $0x16c] sm:$0xf]
      %v280 = vld [vmem:[%s1 + $0x170] sm:$0xf]
      %v281 = vld [vmem:[%s1 + $0x174] sm:$0xf]
      %v282 = vld [vmem:[%s1 + $0x178] sm:$0xf]
      %v283 = vld [vmem:[%s1 + $0x17c] sm:$0xf]
      %v284 = vld [vmem:[%s1 + $0x180] sm:$0xf]
      %v285 = vld [vmem:[%s1 + $0x184] sm:$0xf]
      %v286 = vld [vmem:[%s1 + $0x188] sm:$0xf]
      %v287 = vld [vmem:[%s1 + $0x18c] sm:$0xf]
      %v288 = vld [vmem:[%s1 + $0x190] sm:$0xf]
      %v289 = vld [vmem:[%s1 + $0x194] sm:$0xf]
      %v290 = vld [vmem:[%s1 + $0x198] sm:$0xf]
      %v291 = vld [vmem:[%s1 + $0x19c] sm:$0xf]
      %v292 = vld [vmem:[%s1 + $0x1a0] sm:$0xf]
      %v293 = vld [vmem:[%s1 + $0x1a4] sm:$0xf]
      %v294 = vld [vmem:[%s1 + $0x1a8] sm:$0xf]
      %v295 = vld [vmem:[%s1 + $0x1ac] sm:$0xf]
      %v296 = vld [vmem:[%s1 + $0x1b0] sm:$0xf]
      %v297 = vld [vmem:[%s1 + $0x1b4] sm:$0xf]
      %v298 = vld [vmem:[%s1 + $0x1b8] sm:$0xf]
      %v299 = vld [vmem:[%s1 + $0x1bc] sm:$0xf]
      %v300 = vld [vmem:[%s1 + $0x1c0] sm:$0xf]
      %v301 = vld [vmem:[%s1 + $0x1c4] sm:$0xf]
      %v302 = vld [vmem:[%s1 + $0x1c8] sm:$0xf]
      %v303 = vld [vmem:[%s1 + $0x1cc] sm:$0xf]
      %v304 = vld [vmem:[%s1 + $0x1d0] sm:$0xf]
      %v305 = vld [vmem:[%s1 + $0x1d4] sm:$0xf]
      %v306 = vld [vmem:[%s1 + $0x1d8] sm:$0xf]
      %v307 = vld [vmem:[%s1 + $0x1dc] sm:$0xf]
      %v308 = vld [vmem:[%s1 + $0x1e0] sm:$0xf]
      %v309 = vld [vmem:[%s1 + $0x1e4] sm:$0xf]
      %v310 = vld [vmem:[%s1 + $0x1e8] sm:$0xf]
      %v311 = vld [vmem:[%s1 + $0x1ec] sm:$0xf]
      %v312 = vld [vmem:[%s1 + $0x1f0] sm:$0xf]
      %v313 = vld [vmem:[%s1 + $0x1f4] sm:$0xf]
      %v314 = vld [vmem:[%s1 + $0x1f8] sm:$0xf]
      %v315 = vld [vmem:[%s1 + $0x1fc] sm:$0xf]
      %v316 = vld [vmem:[%s1 + $0x200] sm:$0xf]
      %v317 = vld [vmem:[%s1 + $0x204] sm:$0xf]
      %v318 = vld [vmem:[%s1 + $0x208] sm:$0xf]
      %v319 = vld [vmem:[%s1 + $0x20c] sm:$0xf]
      %v320 = vld [vmem:[%s1 + $0x210] sm:$0xf]
      %v321 = vld [vmem:[%s1 + $0x214] sm:$0xf]
      %v322 = vld [vmem:[%s1 + $0x218] sm:$0xf]
      %v323 = vld [vmem:[%s1 + $0x21c] sm:$0xf]
      %v324 = vld [vmem:[%s1 + $0x220] sm:$0xf]
      %v325 = vld [vmem:[%s1 + $0x224] sm:$0xf]
      %v326 = vld [vmem:[%s1 + $0x228] sm:$0xf]
      %v327 = vld [vmem:[%s1 + $0x22c] sm:$0xf]
      %v328 = vld [vmem:[%s1 + $0x230] sm:$0xf]
      %v329 = vld [vmem:[%s1 + $0x234] sm:$0xf]
      %v330 = vld [vmem:[%s1 + $0x238] sm:$0xf]
      %v331 = vld [vmem:[%s1 + $0x23c] sm:$0xf]
      %v332 = vld [vmem:[%s1 + $0x240] sm:$0xf]
      %v333 = vld [vmem:[%s1 + $0x244] sm:$0xf]
      %v334 = vld [vmem:[%s1 + $0x248] sm:$0xf]
      %v335 = vld [vmem:[%s1 + $0x24c] sm:$0xf]
      %v336 = vld [vmem:[%s1 + $0x250] sm:$0xf]
      %v337 = vld [vmem:[%s1 + $0x254] sm:$0xf]
      %v338 = vld [vmem:[%s1 + $0x258] sm:$0xf]
      %v339 = vld [vmem:[%s1 + $0x25c] sm:$0xf]
      %v340 = vld [vmem:[%s1 + $0x260] sm:$0xf]
      %v341 = vld [vmem:[%s1 + $0x264] sm:$0xf]
      %v342 = vld [vmem:[%s1 + $0x268] sm:$0xf]
      %v343 = vld [vmem:[%s1 + $0x26c] sm:$0xf]
      %v344 = vld [vmem:[%s1 + $0x270] sm:$0xf]
      %v345 = vld [vmem:[%s1 + $0x274] sm:$0xf]
      %v346 = vld [vmem:[%s1 + $0x278] sm:$0xf]
      %v347 = vld [vmem:[%s1 + $0x27c] sm:$0xf]
      %v348 = vld [vmem:[%s1 + $0x280] sm:$0xf]
      %v349 = vld [vmem:[%s1 + $0x284] sm:$0xf]
      %v350 = vld [vmem:[%s1 + $0x288] sm:$0xf]
      %v351 = vld [vmem:[%s1 + $0x28c] sm:$0xf]
      %v352 = vld [vmem:[%s1 + $0x290] sm:$0xf]
      %v353 = vld [vmem:[%s1 + $0x294] sm:$0xf]
      %v354 = vld [vmem:[%s1 + $0x298] sm:$0xf]
      %v355 = vld [vmem:[%s1 + $0x29c] sm:$0xf]
      %v356 = vld [vmem:[%s1 + $0x2a0] sm:$0xf]
      %v357 = vld [vmem:[%s1 + $0x2a4] sm:$0xf]
      %v358 = vld [vmem:[%s1 + $0x2a8] sm:$0xf]
      %v359 = vld [vmem:[%s1 + $0x2ac] sm:$0xf]
      %v360 = vld [vmem:[%s1 + $0x2b0] sm:$0xf]
      %v361 = vld [vmem:[%s1 + $0x2b4] sm:$0xf]
      %v362 = vld [vmem:[%s1 + $0x2b8] sm:$0xf]
      %v363 = vld [vmem:[%s1 + $0x2bc] sm:$0xf]
      %v364 = vld [vmem:[%s1 + $0x2c0] sm:$0xf]
      %v365 = vld [vmem:[%s1 + $0x2c4] sm:$0xf]
      %v366 = vld [vmem:[%s1 + $0x2c8] sm:$0xf]
      %v367 = vld [vmem:[%s1 + $0x2cc] sm:$0xf]
      %v368 = vld [vmem:[%s1 + $0x2d0] sm:$0xf]
      %v369 = vld [vmem:[%s1 + $0x2d4] sm:$0xf]
      %v370 = vld [vmem:[%s1 + $0x2d8] sm:$0xf]
      %v371 = vld [vmem:[%s1 + $0x2dc] sm:$0xf]
      %v372 = vld [vmem:[%s1 + $0x2e0] sm:$0xf]
      %v373 = vld [vmem:[%s1 + $0x2e4] sm:$0xf]
      %v374 = vld [vmem:[%s1 + $0x2e8] sm:$0xf]
      %v375 = vld [vmem:[%s1 + $0x2ec] sm:$0xf]
      %v376 = vld [vmem:[%s1 + $0x2f0] sm:$0xf]
      %v377 = vld [vmem:[%s1 + $0x2f4] sm:$0xf]
      %v378 = vld [vmem:[%s1 + $0x2f8] sm:$0xf]
      %v379 = vld [vmem:[%s1 + $0x2fc] sm:$0xf]
      %v380 = vld [vmem:[%s1 + $0x300] sm:$0xf]
      %v381 = vld [vmem:[%s1 + $0x304] sm:$0xf]
      %v382 = vld [vmem:[%s1 + $0x308] sm:$0xf]
      %v383 = vld [vmem:[%s1 + $0x30c] sm:$0xf]
      %v384 = vld [vmem:[%s1 + $0x310] sm:$0xf]
      %v385 = vld [vmem:[%s1 + $0x314] sm:$0xf]
      %v386 = vld [vmem:[%s1 + $0x318] sm:$0xf]
      %v387 = vld [vmem:[%s1 + $0x31c] sm:$0xf]
      %v388 = vld [vmem:[%s1 + $0x320] sm:$0xf]
      %v389 = vld [vmem:[%s1 + $0x324] sm:$0xf]
      %v390 = vld [vmem:[%s1 + $0x328] sm:$0xf]
      %v391 = vld [vmem:[%s1 + $0x32c] sm:$0xf]
      %v392 = vld [vmem:[%s1 + $0x330] sm:$0xf]
      %v393 = vld [vmem:[%s1 + $0x334] sm:$0xf]
      %v394 = vld [vmem:[%s1 + $0x338] sm:$0xf]
      %v395 = vld [vmem:[%s1 + $0x33c] sm:$0xf]
      %v396 = vld [vmem:[%s1 + $0x340] sm:$0xf]
      %v397 = vld [vmem:[%s1 + $0x344] sm:$0xf]
      %v398 = vld [vmem:[%s1 + $0x348] sm:$0xf]
      %v399 = vld [vmem:[%s1 + $0x34c] sm:$0xf]
      %v400 = vld [vmem:[%s1 + $0x350] sm:$0xf]
      %v401 = vld [vmem:[%s1 + $0x354] sm:$0xf]
      %v402 = vld [vmem:[%s1 + $0x358] sm:$0xf]
      %v403 = vld [vmem:[%s1 + $0x35c] sm:$0xf]
      %v404 = vld [vmem:[%s1 + $0x360] sm:$0xf]
      %v405 = vld [vmem:[%s1 + $0x364] sm:$0xf]
      %v406 = vld [vmem:[%s1 + $0x368] sm:$0xf]
      %v407 = vld [vmem:[%s1 + $0x36c] sm:$0xf]
      %v408 = vld [vmem:[%s1 + $0x370] sm:$0xf]
      %v409 = vld [vmem:[%s1 + $0x374] sm:$0xf]
      %v410 = vld [vmem:[%s1 + $0x378] sm:$0xf]
      %v411 = vld [vmem:[%s1 + $0x37c] sm:$0xf]
      %v412 = vld [vmem:[%s1 + $0x380] sm:$0xf]
      %v413 = vld [vmem:[%s1 + $0x384] sm:$0xf]
      %v414 = vld [vmem:[%s1 + $0x388] sm:$0xf]
      %v415 = vld [vmem:[%s1 + $0x38c] sm:$0xf]
      %v416 = vld [vmem:[%s1 + $0x390] sm:$0xf]
      %v417 = vld [vmem:[%s1 + $0x394] sm:$0xf]
      %v418 = vld [vmem:[%s1 + $0x398] sm:$0xf]
      %v419 = vld [vmem:[%s1 + $0x39c] sm:$0xf]
      %v420 = vld [vmem:[%s1 + $0x3a0] sm:$0xf]
      %v421 = vld [vmem:[%s1 + $0x3a4] sm:$0xf]
      %v422 = vld [vmem:[%s1 + $0x3a8] sm:$0xf]
      %v423 = vld [vmem:[%s1 + $0x3ac] sm:$0xf]
      %v424 = vld [vmem:[%s1 + $0x3b0] sm:$0xf]
      %v425 = vld [vmem:[%s1 + $0x3b4] sm:$0xf]
      %v426 = vld [vmem:[%s1 + $0x3b8] sm:$0xf]
      %v427 = vld [vmem:[%s1 + $0x3bc] sm:$0xf]
      %v428 = vld [vmem:[%s1 + $0x3c0] sm:$0xf]
      %v429 = vld [vmem:[%s1 + $0x3c4] sm:$0xf]
      %v430 = vld [vmem:[%s1 + $0x3c8] sm:$0xf]
      %v431 = vld [vmem:[%s1 + $0x3cc] sm:$0xf]
      %v432 = vld [vmem:[%s1 + $0x3d0] sm:$0xf]
      %v433 = vld [vmem:[%s1 + $0x3d4] sm:$0xf]
      %v434 = vld [vmem:[%s1 + $0x3d8] sm:$0xf]
      %v435 = vld [vmem:[%s1 + $0x3dc] sm:$0xf]
      %v436 = vld [vmem:[%s1 + $0x3e0] sm:$0xf]
      %v437 = vld [vmem:[%s1 + $0x3e4] sm:$0xf]
      %v438 = vld [vmem:[%s1 + $0x3e8] sm:$0xf]
      %v439 = vld [vmem:[%s1 + $0x3ec] sm:$0xf]
      %v440 = vld [vmem:[%s1 + $0x3f0] sm:$0xf]
      %v441 = vld [vmem:[%s1 + $0x3f4] sm:$0xf]
      %v442 = vld [vmem:[%s1 + $0x3f8] sm:$0xf]
      %v443 = vld [vmem:[%s1 + $0x3fc] sm:$0xf]
      %v444 = vld [vmem:[%s2] sm:$0x1]
      %v446 = vlaneseq
      %v447 = vshrl.u32 %v446, 7
      %v448 = vsub.s32 0, %v447
      %v449 = vrot.slane %v444, %v448
      %v467 = vunpack.c.l.b16 %v172
      %v468 = vunpack.c.h.b16 %v172
      %v469 = vunpack.c.l.b16 %v173
      %v470 = vunpack.c.h.b16 %v173
      %v471 = vunpack.c.l.b16 %v174
      %v472 = vunpack.c.h.b16 %v174
      %v473 = vunpack.c.l.b16 %v175
      %v474 = vunpack.c.h.b16 %v175
      %v475 = vunpack.c.l.b16 %v176
      %v476 = vunpack.c.h.b16 %v176
      %v477 = vunpack.c.l.b16 %v177
      %v478 = vunpack.c.h.b16 %v177
      %v479 = vunpack.c.l.b16 %v178
      %v480 = vunpack.c.h.b16 %v178
      %v481 = vunpack.c.l.b16 %v179
      %v482 = vunpack.c.h.b16 %v179
      %v483 = vunpack.c.l.b16 %v180
      %v484 = vunpack.c.h.b16 %v180
      %v485 = vunpack.c.l.b16 %v181
      %v486 = vunpack.c.h.b16 %v181
      %v487 = vunpack.c.l.b16 %v182
      %v488 = vunpack.c.h.b16 %v182
      %v489 = vunpack.c.l.b16 %v183
      %v490 = vunpack.c.h.b16 %v183
      %v491 = vunpack.c.l.b16 %v184
      %v492 = vunpack.c.h.b16 %v184
      %v493 = vunpack.c.l.b16 %v185
      %v494 = vunpack.c.h.b16 %v185
      %v495 = vunpack.c.l.b16 %v186
      %v496 = vunpack.c.h.b16 %v186
      %v497 = vunpack.c.l.b16 %v187
      %v498 = vunpack.c.h.b16 %v187
      %v499 = vpack.c.b16 %v483, %v467
      %v500 = vpack.c.b16 %v484, %v468
      %v501 = vpack.c.b16 %v485, %v469
      %v502 = vpack.c.b16 %v486, %v470
      %v503 = vpack.c.b16 %v487, %v471
      %v504 = vpack.c.b16 %v488, %v472
      %v505 = vpack.c.b16 %v489, %v473
      %v506 = vpack.c.b16 %v490, %v474
      %v507 = vpack.c.b16 %v491, %v475
      %v508 = vpack.c.b16 %v492, %v476
      %v509 = vpack.c.b16 %v493, %v477
      %v510 = vpack.c.b16 %v494, %v478
      %v511 = vpack.c.b16 %v495, %v479
      %v512 = vpack.c.b16 %v496, %v480
      %v513 = vpack.c.b16 %v497, %v481
      %v514 = vpack.c.b16 %v498, %v482
      %v787 = vunpack.c.l.b16 %v188
      %v788 = vunpack.c.l.b16 %v189
      %v789 = vunpack.c.l.b16 %v190
      %v790 = vunpack.c.l.b16 %v191
      %v791 = vunpack.c.l.b16 %v192
      %v792 = vunpack.c.l.b16 %v193
      %v793 = vunpack.c.l.b16 %v194
      %v794 = vunpack.c.l.b16 %v195
      %v795 = vunpack.c.l.b16 %v196
      %v796 = vunpack.c.l.b16 %v197
      %v797 = vunpack.c.l.b16 %v198
      %v798 = vunpack.c.l.b16 %v199
      %v799 = vunpack.c.l.b16 %v200
      %v800 = vunpack.c.l.b16 %v201
      %v801 = vunpack.c.l.b16 %v202
      %v802 = vunpack.c.l.b16 %v203
      %v803 = vunpack.c.l.b16 %v204
      %v804 = vunpack.c.l.b16 %v205
      %v805 = vunpack.c.l.b16 %v206
      %v806 = vunpack.c.l.b16 %v207
      %v807 = vunpack.c.l.b16 %v208
      %v808 = vunpack.c.l.b16 %v209
      %v809 = vunpack.c.l.b16 %v210
      %v810 = vunpack.c.l.b16 %v211
      %v811 = vunpack.c.l.b16 %v212
      %v812 = vunpack.c.l.b16 %v213
      %v813 = vunpack.c.l.b16 %v214
      %v814 = vunpack.c.l.b16 %v215
      %v815 = vunpack.c.l.b16 %v216
      %v816 = vunpack.c.l.b16 %v217
      %v817 = vunpack.c.l.b16 %v218
      %v818 = vunpack.c.l.b16 %v219
      %v819 = vunpack.c.l.b16 %v220
      %v820 = vunpack.c.l.b16 %v221
      %v821 = vunpack.c.l.b16 %v222
      %v822 = vunpack.c.l.b16 %v223
      %v823 = vunpack.c.l.b16 %v224
      %v824 = vunpack.c.l.b16 %v225
      %v825 = vunpack.c.l.b16 %v226
      %v826 = vunpack.c.l.b16 %v227
      %v827 = vunpack.c.l.b16 %v228
      %v828 = vunpack.c.l.b16 %v229
      %v829 = vunpack.c.l.b16 %v230
      %v830 = vunpack.c.l.b16 %v231
      %v831 = vunpack.c.l.b16 %v232
      %v832 = vunpack.c.l.b16 %v233
      %v833 = vunpack.c.l.b16 %v234
      %v834 = vunpack.c.l.b16 %v235
      %v835 = vunpack.c.l.b16 %v236
      %v836 = vunpack.c.l.b16 %v237
      %v837 = vunpack.c.l.b16 %v238
      %v838 = vunpack.c.l.b16 %v239
      %v839 = vunpack.c.l.b16 %v240
      %v840 = vunpack.c.l.b16 %v241
      %v841 = vunpack.c.l.b16 %v242
      %v842 = vunpack.c.l.b16 %v243
      %v843 = vunpack.c.l.b16 %v244
      %v844 = vunpack.c.l.b16 %v245
      %v845 = vunpack.c.l.b16 %v246
      %v846 = vunpack.c.l.b16 %v247
      %v847 = vunpack.c.l.b16 %v248
      %v848 = vunpack.c.l.b16 %v249
      %v849 = vunpack.c.l.b16 %v250
      %v850 = vunpack.c.l.b16 %v251
      %v851 = vunpack.c.l.b16 %v252
      %v852 = vunpack.c.l.b16 %v253
      %v853 = vunpack.c.l.b16 %v254
      %v854 = vunpack.c.l.b16 %v255
      %v855 = vunpack.c.l.b16 %v256
      %v856 = vunpack.c.l.b16 %v257
      %v857 = vunpack.c.l.b16 %v258
      %v858 = vunpack.c.l.b16 %v259
      %v859 = vunpack.c.l.b16 %v260
      %v860 = vunpack.c.l.b16 %v261
      %v861 = vunpack.c.l.b16 %v262
      %v862 = vunpack.c.l.b16 %v263
      %v863 = vunpack.c.l.b16 %v264
      %v864 = vunpack.c.l.b16 %v265
      %v865 = vunpack.c.l.b16 %v266
      %v866 = vunpack.c.l.b16 %v267
      %v867 = vunpack.c.l.b16 %v268
      %v868 = vunpack.c.l.b16 %v269
      %v869 = vunpack.c.l.b16 %v270
      %v870 = vunpack.c.l.b16 %v271
      %v871 = vunpack.c.l.b16 %v272
      %v872 = vunpack.c.l.b16 %v273
      %v873 = vunpack.c.l.b16 %v274
      %v874 = vunpack.c.l.b16 %v275
      %v875 = vunpack.c.l.b16 %v276
      %v876 = vunpack.c.l.b16 %v277
      %v877 = vunpack.c.l.b16 %v278
      %v878 = vunpack.c.l.b16 %v279
      %v879 = vunpack.c.l.b16 %v280
      %v880 = vunpack.c.l.b16 %v281
      %v881 = vunpack.c.l.b16 %v282
      %v882 = vunpack.c.l.b16 %v283
      %v883 = vunpack.c.l.b16 %v284
      %v884 = vunpack.c.l.b16 %v285
      %v885 = vunpack.c.l.b16 %v286
      %v886 = vunpack.c.l.b16 %v287
      %v887 = vunpack.c.l.b16 %v288
      %v888 = vunpack.c.l.b16 %v289
      %v889 = vunpack.c.l.b16 %v290
      %v890 = vunpack.c.l.b16 %v291
      %v891 = vunpack.c.l.b16 %v292
      %v892 = vunpack.c.l.b16 %v293
      %v893 = vunpack.c.l.b16 %v294
      %v894 = vunpack.c.l.b16 %v295
      %v895 = vunpack.c.l.b16 %v296
      %v896 = vunpack.c.l.b16 %v297
      %v897 = vunpack.c.l.b16 %v298
      %v898 = vunpack.c.l.b16 %v299
      %v899 = vunpack.c.l.b16 %v300
      %v900 = vunpack.c.l.b16 %v301
      %v901 = vunpack.c.l.b16 %v302
      %v902 = vunpack.c.l.b16 %v303
      %v903 = vunpack.c.l.b16 %v304
      %v904 = vunpack.c.l.b16 %v305
      %v905 = vunpack.c.l.b16 %v306
      %v906 = vunpack.c.l.b16 %v307
      %v907 = vunpack.c.l.b16 %v308
      %v908 = vunpack.c.l.b16 %v309
      %v909 = vunpack.c.l.b16 %v310
      %v910 = vunpack.c.l.b16 %v311
      %v911 = vunpack.c.l.b16 %v312
      %v912 = vunpack.c.l.b16 %v313
      %v913 = vunpack.c.l.b16 %v314
      %v914 = vunpack.c.l.b16 %v315
      %v915 = vunpack.c.l.b16 %v316
      %v916 = vunpack.c.l.b16 %v317
      %v917 = vunpack.c.l.b16 %v318
      %v918 = vunpack.c.l.b16 %v319
      %v919 = vunpack.c.l.b16 %v320
      %v920 = vunpack.c.l.b16 %v321
      %v921 = vunpack.c.l.b16 %v322
      %v922 = vunpack.c.l.b16 %v323
      %v923 = vunpack.c.l.b16 %v324
      %v924 = vunpack.c.l.b16 %v325
      %v925 = vunpack.c.l.b16 %v326
      %v926 = vunpack.c.l.b16 %v327
      %v927 = vunpack.c.l.b16 %v328
      %v928 = vunpack.c.l.b16 %v329
      %v929 = vunpack.c.l.b16 %v330
      %v930 = vunpack.c.l.b16 %v331
      %v931 = vunpack.c.l.b16 %v332
      %v932 = vunpack.c.l.b16 %v333
      %v933 = vunpack.c.l.b16 %v334
      %v934 = vunpack.c.l.b16 %v335
      %v935 = vunpack.c.l.b16 %v336
      %v936 = vunpack.c.l.b16 %v337
      %v937 = vunpack.c.l.b16 %v338
      %v938 = vunpack.c.l.b16 %v339
      %v939 = vunpack.c.l.b16 %v340
      %v940 = vunpack.c.l.b16 %v341
      %v941 = vunpack.c.l.b16 %v342
      %v942 = vunpack.c.l.b16 %v343
      %v943 = vunpack.c.l.b16 %v344
      %v944 = vunpack.c.l.b16 %v345
      %v945 = vunpack.c.l.b16 %v346
      %v946 = vunpack.c.l.b16 %v347
      %v947 = vunpack.c.l.b16 %v348
      %v948 = vunpack.c.l.b16 %v349
      %v949 = vunpack.c.l.b16 %v350
      %v950 = vunpack.c.l.b16 %v351
      %v951 = vunpack.c.l.b16 %v352
      %v952 = vunpack.c.l.b16 %v353
      %v953 = vunpack.c.l.b16 %v354
      %v954 = vunpack.c.l.b16 %v355
      %v955 = vunpack.c.l.b16 %v356
      %v956 = vunpack.c.l.b16 %v357
      %v957 = vunpack.c.l.b16 %v358
      %v958 = vunpack.c.l.b16 %v359
      %v959 = vunpack.c.l.b16 %v360
      %v960 = vunpack.c.l.b16 %v361
      %v961 = vunpack.c.l.b16 %v362
      %v962 = vunpack.c.l.b16 %v363
      %v963 = vunpack.c.l.b16 %v364
      %v964 = vunpack.c.l.b16 %v365
      %v965 = vunpack.c.l.b16 %v366
      %v966 = vunpack.c.l.b16 %v367
      %v967 = vunpack.c.l.b16 %v368
      %v968 = vunpack.c.l.b16 %v369
      %v969 = vunpack.c.l.b16 %v370
      %v970 = vunpack.c.l.b16 %v371
      %v971 = vunpack.c.l.b16 %v372
      %v972 = vunpack.c.l.b16 %v373
      %v973 = vunpack.c.l.b16 %v374
      %v974 = vunpack.c.l.b16 %v375
      %v975 = vunpack.c.l.b16 %v376
      %v976 = vunpack.c.l.b16 %v377
      %v977 = vunpack.c.l.b16 %v378
      %v978 = vunpack.c.l.b16 %v379
      %v979 = vunpack.c.l.b16 %v380
      %v980 = vunpack.c.l.b16 %v381
      %v981 = vunpack.c.l.b16 %v382
      %v982 = vunpack.c.l.b16 %v383
      %v983 = vunpack.c.l.b16 %v384
      %v984 = vunpack.c.l.b16 %v385
      %v985 = vunpack.c.l.b16 %v386
      %v986 = vunpack.c.l.b16 %v387
      %v987 = vunpack.c.l.b16 %v388
      %v988 = vunpack.c.l.b16 %v389
      %v989 = vunpack.c.l.b16 %v390
      %v990 = vunpack.c.l.b16 %v391
      %v991 = vunpack.c.l.b16 %v392
      %v992 = vunpack.c.l.b16 %v393
      %v993 = vunpack.c.l.b16 %v394
      %v994 = vunpack.c.l.b16 %v395
      %v995 = vunpack.c.l.b16 %v396
      %v996 = vunpack.c.l.b16 %v397
      %v997 = vunpack.c.l.b16 %v398
      %v998 = vunpack.c.l.b16 %v399
      %v999 = vunpack.c.l.b16 %v400
      %v1000 = vunpack.c.l.b16 %v401
      %v1001 = vunpack.c.l.b16 %v402
      %v1002 = vunpack.c.l.b16 %v403
      %v1003 = vunpack.c.l.b16 %v404
      %v1004 = vunpack.c.l.b16 %v405
      %v1005 = vunpack.c.l.b16 %v406
      %v1006 = vunpack.c.l.b16 %v407
      %v1007 = vunpack.c.l.b16 %v408
      %v1008 = vunpack.c.l.b16 %v409
      %v1009 = vunpack.c.l.b16 %v410
      %v1010 = vunpack.c.l.b16 %v411
      %v1011 = vunpack.c.l.b16 %v412
      %v1012 = vunpack.c.l.b16 %v413
      %v1013 = vunpack.c.l.b16 %v414
      %v1014 = vunpack.c.l.b16 %v415
      %v1015 = vunpack.c.l.b16 %v416
      %v1016 = vunpack.c.l.b16 %v417
      %v1017 = vunpack.c.l.b16 %v418
      %v1018 = vunpack.c.l.b16 %v419
      %v1019 = vunpack.c.l.b16 %v420
      %v1020 = vunpack.c.l.b16 %v421
      %v1021 = vunpack.c.l.b16 %v422
      %v1022 = vunpack.c.l.b16 %v423
      %v1023 = vunpack.c.l.b16 %v424
      %v1024 = vunpack.c.l.b16 %v425
      %v1025 = vunpack.c.l.b16 %v426
      %v1026 = vunpack.c.l.b16 %v427
      %v1027 = vunpack.c.l.b16 %v428
      %v1028 = vunpack.c.l.b16 %v429
      %v1029 = vunpack.c.l.b16 %v430
      %v1030 = vunpack.c.l.b16 %v431
      %v1031 = vunpack.c.l.b16 %v432
      %v1032 = vunpack.c.l.b16 %v433
      %v1033 = vunpack.c.l.b16 %v434
      %v1034 = vunpack.c.l.b16 %v435
      %v1035 = vunpack.c.l.b16 %v436
      %v1036 = vunpack.c.l.b16 %v437
      %v1037 = vunpack.c.l.b16 %v438
      %v1038 = vunpack.c.l.b16 %v439
      %v1039 = vunpack.c.l.b16 %v440
      %v1040 = vunpack.c.l.b16 %v441
      %v1041 = vunpack.c.l.b16 %v442
      %v1042 = vunpack.c.l.b16 %v443
      %v1043 = vpack.c.b16 %v788, %v787
      %v1044 = vpack.c.b16 %v790, %v789
      %v1045 = vpack.c.b16 %v792, %v791
      %v1046 = vpack.c.b16 %v794, %v793
      %v1047 = vpack.c.b16 %v796, %v795
      %v1048 = vpack.c.b16 %v798, %v797
      %v1049 = vpack.c.b16 %v800, %v799
      %v1050 = vpack.c.b16 %v802, %v801
      %v1051 = vpack.c.b16 %v804, %v803
      %v1052 = vpack.c.b16 %v806, %v805
      %v1053 = vpack.c.b16 %v808, %v807
      %v1054 = vpack.c.b16 %v810, %v809
      %v1055 = vpack.c.b16 %v812, %v811
      %v1056 = vpack.c.b16 %v814, %v813
      %v1057 = vpack.c.b16 %v816, %v815
      %v1058 = vpack.c.b16 %v818, %v817
      %v1059 = vpack.c.b16 %v820, %v819
      %v1060 = vpack.c.b16 %v822, %v821
      %v1061 = vpack.c.b16 %v824, %v823
      %v1062 = vpack.c.b16 %v826, %v825
      %v1063 = vpack.c.b16 %v828, %v827
      %v1064 = vpack.c.b16 %v830, %v829
      %v1065 = vpack.c.b16 %v832, %v831
      %v1066 = vpack.c.b16 %v834, %v833
      %v1067 = vpack.c.b16 %v836, %v835
      %v1068 = vpack.c.b16 %v838, %v837
      %v1069 = vpack.c.b16 %v840, %v839
      %v1070 = vpack.c.b16 %v842, %v841
      %v1071 = vpack.c.b16 %v844, %v843
      %v1072 = vpack.c.b16 %v846, %v845
      %v1073 = vpack.c.b16 %v848, %v847
      %v1074 = vpack.c.b16 %v850, %v849
      %v1075 = vpack.c.b16 %v852, %v851
      %v1076 = vpack.c.b16 %v854, %v853
      %v1077 = vpack.c.b16 %v856, %v855
      %v1078 = vpack.c.b16 %v858, %v857
      %v1079 = vpack.c.b16 %v860, %v859
      %v1080 = vpack.c.b16 %v862, %v861
      %v1081 = vpack.c.b16 %v864, %v863
      %v1082 = vpack.c.b16 %v866, %v865
      %v1083 = vpack.c.b16 %v868, %v867
      %v1084 = vpack.c.b16 %v870, %v869
      %v1085 = vpack.c.b16 %v872, %v871
      %v1086 = vpack.c.b16 %v874, %v873
      %v1087 = vpack.c.b16 %v876, %v875
      %v1088 = vpack.c.b16 %v878, %v877
      %v1089 = vpack.c.b16 %v880, %v879
      %v1090 = vpack.c.b16 %v882, %v881
      %v1091 = vpack.c.b16 %v884, %v883
      %v1092 = vpack.c.b16 %v886, %v885
      %v1093 = vpack.c.b16 %v888, %v887
      %v1094 = vpack.c.b16 %v890, %v889
      %v1095 = vpack.c.b16 %v892, %v891
      %v1096 = vpack.c.b16 %v894, %v893
      %v1097 = vpack.c.b16 %v896, %v895
      %v1098 = vpack.c.b16 %v898, %v897
      %v1099 = vpack.c.b16 %v900, %v899
      %v1100 = vpack.c.b16 %v902, %v901
      %v1101 = vpack.c.b16 %v904, %v903
      %v1102 = vpack.c.b16 %v906, %v905
      %v1103 = vpack.c.b16 %v908, %v907
      %v1104 = vpack.c.b16 %v910, %v909
      %v1105 = vpack.c.b16 %v912, %v911
      %v1106 = vpack.c.b16 %v914, %v913
      %v1107 = vpack.c.b16 %v916, %v915
      %v1108 = vpack.c.b16 %v918, %v917
      %v1109 = vpack.c.b16 %v920, %v919
      %v1110 = vpack.c.b16 %v922, %v921
      %v1111 = vpack.c.b16 %v924, %v923
      %v1112 = vpack.c.b16 %v926, %v925
      %v1113 = vpack.c.b16 %v928, %v927
      %v1114 = vpack.c.b16 %v930, %v929
      %v1115 = vpack.c.b16 %v932, %v931
      %v1116 = vpack.c.b16 %v934, %v933
      %v1117 = vpack.c.b16 %v936, %v935
      %v1118 = vpack.c.b16 %v938, %v937
      %v1119 = vpack.c.b16 %v940, %v939
      %v1120 = vpack.c.b16 %v942, %v941
      %v1121 = vpack.c.b16 %v944, %v943
      %v1122 = vpack.c.b16 %v946, %v945
      %v1123 = vpack.c.b16 %v948, %v947
      %v1124 = vpack.c.b16 %v950, %v949
      %v1125 = vpack.c.b16 %v952, %v951
      %v1126 = vpack.c.b16 %v954, %v953
      %v1127 = vpack.c.b16 %v956, %v955
      %v1128 = vpack.c.b16 %v958, %v957
      %v1129 = vpack.c.b16 %v960, %v959
      %v1130 = vpack.c.b16 %v962, %v961
      %v1131 = vpack.c.b16 %v964, %v963
      %v1132 = vpack.c.b16 %v966, %v965
      %v1133 = vpack.c.b16 %v968, %v967
      %v1134 = vpack.c.b16 %v970, %v969
      %v1135 = vpack.c.b16 %v972, %v971
      %v1136 = vpack.c.b16 %v974, %v973
      %v1137 = vpack.c.b16 %v976, %v975
      %v1138 = vpack.c.b16 %v978, %v977
      %v1139 = vpack.c.b16 %v980, %v979
      %v1140 = vpack.c.b16 %v982, %v981
      %v1141 = vpack.c.b16 %v984, %v983
      %v1142 = vpack.c.b16 %v986, %v985
      %v1143 = vpack.c.b16 %v988, %v987
      %v1144 = vpack.c.b16 %v990, %v989
      %v1145 = vpack.c.b16 %v992, %v991
      %v1146 = vpack.c.b16 %v994, %v993
      %v1147 = vpack.c.b16 %v996, %v995
      %v1148 = vpack.c.b16 %v998, %v997
      %v1149 = vpack.c.b16 %v1000, %v999
      %v1150 = vpack.c.b16 %v1002, %v1001
      %v1151 = vpack.c.b16 %v1004, %v1003
      %v1152 = vpack.c.b16 %v1006, %v1005
      %v1153 = vpack.c.b16 %v1008, %v1007
      %v1154 = vpack.c.b16 %v1010, %v1009
      %v1155 = vpack.c.b16 %v1012, %v1011
      %v1156 = vpack.c.b16 %v1014, %v1013
      %v1157 = vpack.c.b16 %v1016, %v1015
      %v1158 = vpack.c.b16 %v1018, %v1017
      %v1159 = vpack.c.b16 %v1020, %v1019
      %v1160 = vpack.c.b16 %v1022, %v1021
      %v1161 = vpack.c.b16 %v1024, %v1023
      %v1162 = vpack.c.b16 %v1026, %v1025
      %v1163 = vpack.c.b16 %v1028, %v1027
      %v1164 = vpack.c.b16 %v1030, %v1029
      %v1165 = vpack.c.b16 %v1032, %v1031
      %v1166 = vpack.c.b16 %v1034, %v1033
      %v1167 = vpack.c.b16 %v1036, %v1035
      %v1168 = vpack.c.b16 %v1038, %v1037
      %v1169 = vpack.c.b16 %v1040, %v1039
      %v1170 = vpack.c.b16 %v1042, %v1041
      %1299 = vmatprep.subr.bf16.mxu0 0
      %1300 = vmatpush1.bf16.msra.mxu0 %v1043
      %1301 = vmatprep.subr.bf16.mxu0 0
      %1302 = vmatpush1.bf16.msra.mxu0 %v1044
      %1303 = vmatprep.subr.bf16.mxu0 0
      %1304 = vmatpush1.bf16.msra.mxu0 %v1045
      %1305 = vmatprep.subr.bf16.mxu0 0
      %1306 = vmatpush1.bf16.msra.mxu0 %v1046
      %1307 = vmatprep.subr.bf16.mxu0 0
      %1308 = vmatpush1.bf16.msra.mxu0 %v1047
      %1309 = vmatprep.subr.bf16.mxu0 0
      %1310 = vmatpush1.bf16.msra.mxu0 %v1048
      %1311 = vmatprep.subr.bf16.mxu0 0
      %1312 = vmatpush1.bf16.msra.mxu0 %v1049
      %1313 = vmatprep.subr.bf16.mxu0 0
      %1314 = vmatpush1.bf16.msra.mxu0 %v1050
      %1315 = vmatprep.subr.bf16.mxu0 0
      %1316 = vmatpush1.bf16.msra.mxu0 %v1051
      %1317 = vmatprep.subr.bf16.mxu0 0
      %1318 = vmatpush1.bf16.msra.mxu0 %v1052
      %1319 = vmatprep.subr.bf16.mxu0 0
      %1320 = vmatpush1.bf16.msra.mxu0 %v1053
      %1321 = vmatprep.subr.bf16.mxu0 0
      %1322 = vmatpush1.bf16.msra.mxu0 %v1054
      %1323 = vmatprep.subr.bf16.mxu0 0
      %1324 = vmatpush1.bf16.msra.mxu0 %v1055
      %1325 = vmatprep.subr.bf16.mxu0 0
      %1326 = vmatpush1.bf16.msra.mxu0 %v1056
      %1327 = vmatprep.subr.bf16.mxu0 0
      %1328 = vmatpush1.bf16.msra.mxu0 %v1057
      %1329 = vmatprep.subr.bf16.mxu0 0
      %1330 = vmatpush1.bf16.msra.mxu0 %v1058
      %1331 = vmatprep.mubr.bf16.mxu0 %v500
      %1332 = vmatmul.mubr.bf16.gmra.mrb[0].mxu0 %v499
      %v1333 = vpop.f32.mrb[0].mxu0
      %v1334 = vadd.f32 %v449, %v1333
      %v1335 = vpop.f32.mrb[0].mxu0
      %v1336 = vpop.f32.mrb[0].mxu0
      %v1337 = vadd.f32 %v449, %v1336
      %v1338 = vpop.f32.mrb[0].mxu0
      %1339 = vdwg.mxu0
      %1340 = vmatprep.subr.bf16.mxu0 0
      %1341 = vmatpush1.bf16.msra.mxu0 %v1059
      %1342 = vmatprep.subr.bf16.mxu0 0
      %1343 = vmatpush1.bf16.msra.mxu0 %v1060
      %1344 = vmatprep.subr.bf16.mxu0 0
      %1345 = vmatpush1.bf16.msra.mxu0 %v1061
      %1346 = vmatprep.subr.bf16.mxu0 0
      %1347 = vmatpush1.bf16.msra.mxu0 %v1062
      %1348 = vmatprep.subr.bf16.mxu0 0
      %1349 = vmatpush1.bf16.msra.mxu0 %v1063
      %1350 = vmatprep.subr.bf16.mxu0 0
      %1351 = vmatpush1.bf16.msra.mxu0 %v1064
      %1352 = vmatprep.subr.bf16.mxu0 0
      %1353 = vmatpush1.bf16.msra.mxu0 %v1065
      %1354 = vmatprep.subr.bf16.mxu0 0
      %1355 = vmatpush1.bf16.msra.mxu0 %v1066
      %1356 = vmatprep.subr.bf16.mxu0 0
      %1357 = vmatpush1.bf16.msra.mxu0 %v1067
      %1358 = vmatprep.subr.bf16.mxu0 0
      %1359 = vmatpush1.bf16.msra.mxu0 %v1068
      %1360 = vmatprep.subr.bf16.mxu0 0
      %1361 = vmatpush1.bf16.msra.mxu0 %v1069
      %1362 = vmatprep.subr.bf16.mxu0 0
      %1363 = vmatpush1.bf16.msra.mxu0 %v1070
      %1364 = vmatprep.subr.bf16.mxu0 0
      %1365 = vmatpush1.bf16.msra.mxu0 %v1071
      %1366 = vmatprep.subr.bf16.mxu0 0
      %1367 = vmatpush1.bf16.msra.mxu0 %v1072
      %1368 = vmatprep.subr.bf16.mxu0 0
      %1369 = vmatpush1.bf16.msra.mxu0 %v1073
      %1370 = vmatprep.subr.bf16.mxu0 0
      %1371 = vmatpush1.bf16.msra.mxu0 %v1074
      %1372 = vmatprep.mubr.bf16.mxu0 %v502
      %1373 = vmatmul.mubr.bf16.gmra.mrb[0].mxu0 %v501
      %v1374 = vpop.f32.mrb[0].mxu0
      %v1375 = vadd.f32 %v1334, %v1374
      %v1376 = vpop.f32.mrb[0].mxu0
      %v1377 = vpop.f32.mrb[0].mxu0
      %v1378 = vadd.f32 %v1337, %v1377
      %v1379 = vpop.f32.mrb[0].mxu0
      %1380 = vdwg.mxu0
      %1381 = vmatprep.subr.bf16.mxu0 0
      %1382 = vmatpush1.bf16.msra.mxu0 %v1075
      %1383 = vmatprep.subr.bf16.mxu0 0
      %1384 = vmatpush1.bf16.msra.mxu0 %v1076
      %1385 = vmatprep.subr.bf16.mxu0 0
      %1386 = vmatpush1.bf16.msra.mxu0 %v1077
      %1387 = vmatprep.subr.bf16.mxu0 0
      %1388 = vmatpush1.bf16.msra.mxu0 %v1078
      %1389 = vmatprep.subr.bf16.mxu0 0
      %1390 = vmatpush1.bf16.msra.mxu0 %v1079
      %1391 = vmatprep.subr.bf16.mxu0 0
      %1392 = vmatpush1.bf16.msra.mxu0 %v1080
      %1393 = vmatprep.subr.bf16.mxu0 0
      %1394 = vmatpush1.bf16.msra.mxu0 %v1081
      %1395 = vmatprep.subr.bf16.mxu0 0
      %1396 = vmatpush1.bf16.msra.mxu0 %v1082
      %1397 = vmatprep.subr.bf16.mxu0 0
      %1398 = vmatpush1.bf16.msra.mxu0 %v1083
      %1399 = vmatprep.subr.bf16.mxu0 0
      %1400 = vmatpush1.bf16.msra.mxu0 %v1084
      %1401 = vmatprep.subr.bf16.mxu0 0
      %1402 = vmatpush1.bf16.msra.mxu0 %v1085
      %1403 = vmatprep.subr.bf16.mxu0 0
      %1404 = vmatpush1.bf16.msra.mxu0 %v1086
      %1405 = vmatprep.subr.bf16.mxu0 0
      %1406 = vmatpush1.bf16.msra.mxu0 %v1087
      %1407 = vmatprep.subr.bf16.mxu0 0
      %1408 = vmatpush1.bf16.msra.mxu0 %v1088
      %1409 = vmatprep.subr.bf16.mxu0 0
      %1410 = vmatpush1.bf16.msra.mxu0 %v1089
      %1411 = vmatprep.subr.bf16.mxu0 0
      %1412 = vmatpush1.bf16.msra.mxu0 %v1090
      %1413 = vmatprep.mubr.bf16.mxu0 %v504
      %1414 = vmatmul.mubr.bf16.gmra.mrb[0].mxu0 %v503
      %v1415 = vpop.f32.mrb[0].mxu0
      %v1416 = vadd.f32 %v1375, %v1415
      %v1417 = vpop.f32.mrb[0].mxu0
      %v1418 = vpop.f32.mrb[0].mxu0
      %v1419 = vadd.f32 %v1378, %v1418
      %v1420 = vpop.f32.mrb[0].mxu0
      %1421 = vdwg.mxu0
      %1422 = vmatprep.subr.bf16.mxu0 0
      %1423 = vmatpush1.bf16.msra.mxu0 %v1091
      %1424 = vmatprep.subr.bf16.mxu0 0
      %1425 = vmatpush1.bf16.msra.mxu0 %v1092
      %1426 = vmatprep.subr.bf16.mxu0 0
      %1427 = vmatpush1.bf16.msra.mxu0 %v1093
      %1428 = vmatprep.subr.bf16.mxu0 0
      %1429 = vmatpush1.bf16.msra.mxu0 %v1094
      %1430 = vmatprep.subr.bf16.mxu0 0
      %1431 = vmatpush1.bf16.msra.mxu0 %v1095
      %1432 = vmatprep.subr.bf16.mxu0 0
      %1433 = vmatpush1.bf16.msra.mxu0 %v1096
      %1434 = vmatprep.subr.bf16.mxu0 0
      %1435 = vmatpush1.bf16.msra.mxu0 %v1097
      %1436 = vmatprep.subr.bf16.mxu0 0
      %1437 = vmatpush1.bf16.msra.mxu0 %v1098
      %1438 = vmatprep.subr.bf16.mxu0 0
      %1439 = vmatpush1.bf16.msra.mxu0 %v1099
      %1440 = vmatprep.subr.bf16.mxu0 0
      %1441 = vmatpush1.bf16.msra.mxu0 %v1100
      %1442 = vmatprep.subr.bf16.mxu0 0
      %1443 = vmatpush1.bf16.msra.mxu0 %v1101
      %1444 = vmatprep.subr.bf16.mxu0 0
      %1445 = vmatpush1.bf16.msra.mxu0 %v1102
      %1446 = vmatprep.subr.bf16.mxu0 0
      %1447 = vmatpush1.bf16.msra.mxu0 %v1103
      %1448 = vmatprep.subr.bf16.mxu0 0
      %1449 = vmatpush1.bf16.msra.mxu0 %v1104
      %1450 = vmatprep.subr.bf16.mxu0 0
      %1451 = vmatpush1.bf16.msra.mxu0 %v1105
      %1452 = vmatprep.subr.bf16.mxu0 0
      %1453 = vmatpush1.bf16.msra.mxu0 %v1106
      %1454 = vmatprep.mubr.bf16.mxu0 %v506
      %1455 = vmatmul.mubr.bf16.gmra.mrb[0].mxu0 %v505
      %v1456 = vpop.f32.mrb[0].mxu0
      %v1457 = vadd.f32 %v1416, %v1456
      %v1458 = vpop.f32.mrb[0].mxu0
      %v1459 = vpop.f32.mrb[0].mxu0
      %v1460 = vadd.f32 %v1419, %v1459
      %v1461 = vpop.f32.mrb[0].mxu0
      %1462 = vdwg.mxu0
      %1463 = vmatprep.subr.bf16.mxu0 0
      %1464 = vmatpush1.bf16.msra.mxu0 %v1107
      %1465 = vmatprep.subr.bf16.mxu0 0
      %1466 = vmatpush1.bf16.msra.mxu0 %v1108
      %1467 = vmatprep.subr.bf16.mxu0 0
      %1468 = vmatpush1.bf16.msra.mxu0 %v1109
      %1469 = vmatprep.subr.bf16.mxu0 0
      %1470 = vmatpush1.bf16.msra.mxu0 %v1110
      %1471 = vmatprep.subr.bf16.mxu0 0
      %1472 = vmatpush1.bf16.msra.mxu0 %v1111
      %1473 = vmatprep.subr.bf16.mxu0 0
      %1474 = vmatpush1.bf16.msra.mxu0 %v1112
      %1475 = vmatprep.subr.bf16.mxu0 0
      %1476 = vmatpush1.bf16.msra.mxu0 %v1113
      %1477 = vmatprep.subr.bf16.mxu0 0
      %1478 = vmatpush1.bf16.msra.mxu0 %v1114
      %1479 = vmatprep.subr.bf16.mxu0 0
      %1480 = vmatpush1.bf16.msra.mxu0 %v1115
      %1481 = vmatprep.subr.bf16.mxu0 0
      %1482 = vmatpush1.bf16.msra.mxu0 %v1116
      %1483 = vmatprep.subr.bf16.mxu0 0
      %1484 = vmatpush1.bf16.msra.mxu0 %v1117
      %1485 = vmatprep.subr.bf16.mxu0 0
      %1486 = vmatpush1.bf16.msra.mxu0 %v1118
      %1487 = vmatprep.subr.bf16.mxu0 0
      %1488 = vmatpush1.bf16.msra.mxu0 %v1119
      %1489 = vmatprep.subr.bf16.mxu0 0
      %1490 = vmatpush1.bf16.msra.mxu0 %v1120
      %1491 = vmatprep.subr.bf16.mxu0 0
      %1492 = vmatpush1.bf16.msra.mxu0 %v1121
      %1493 = vmatprep.subr.bf16.mxu0 0
      %1494 = vmatpush1.bf16.msra.mxu0 %v1122
      %1495 = vmatprep.mubr.bf16.mxu0 %v508
      %1496 = vmatmul.mubr.bf16.gmra.mrb[0].mxu0 %v507
      %v1497 = vpop.f32.mrb[0].mxu0
      %v1498 = vadd.f32 %v1457, %v1497
      %v1499 = vpop.f32.mrb[0].mxu0
      %v1500 = vpop.f32.mrb[0].mxu0
      %v1501 = vadd.f32 %v1460, %v1500
      %v1502 = vpop.f32.mrb[0].mxu0
      %1503 = vdwg.mxu0
      %1504 = vmatprep.subr.bf16.mxu0 0
      %1505 = vmatpush1.bf16.msra.mxu0 %v1123
      %1506 = vmatprep.subr.bf16.mxu0 0
      %1507 = vmatpush1.bf16.msra.mxu0 %v1124
      %1508 = vmatprep.subr.bf16.mxu0 0
      %1509 = vmatpush1.bf16.msra.mxu0 %v1125
      %1510 = vmatprep.subr.bf16.mxu0 0
      %1511 = vmatpush1.bf16.msra.mxu0 %v1126
      %1512 = vmatprep.subr.bf16.mxu0 0
      %1513 = vmatpush1.bf16.msra.mxu0 %v1127
      %1514 = vmatprep.subr.bf16.mxu0 0
      %1515 = vmatpush1.bf16.msra.mxu0 %v1128
      %1516 = vmatprep.subr.bf16.mxu0 0
      %1517 = vmatpush1.bf16.msra.mxu0 %v1129
      %1518 = vmatprep.subr.bf16.mxu0 0
      %1519 = vmatpush1.bf16.msra.mxu0 %v1130
      %1520 = vmatprep.subr.bf16.mxu0 0
      %1521 = vmatpush1.bf16.msra.mxu0 %v1131
      %1522 = vmatprep.subr.bf16.mxu0 0
      %1523 = vmatpush1.bf16.msra.mxu0 %v1132
      %1524 = vmatprep.subr.bf16.mxu0 0
      %1525 = vmatpush1.bf16.msra.mxu0 %v1133
      %1526 = vmatprep.subr.bf16.mxu0 0
      %1527 = vmatpush1.bf16.msra.mxu0 %v1134
      %1528 = vmatprep.subr.bf16.mxu0 0
      %1529 = vmatpush1.bf16.msra.mxu0 %v1135
      %1530 = vmatprep.subr.bf16.mxu0 0
      %1531 = vmatpush1.bf16.msra.mxu0 %v1136
      %1532 = vmatprep.subr.bf16.mxu0 0
      %1533 = vmatpush1.bf16.msra.mxu0 %v1137
      %1534 = vmatprep.subr.bf16.mxu0 0
      %1535 = vmatpush1.bf16.msra.mxu0 %v1138
      %1536 = vmatprep.mubr.bf16.mxu0 %v510
      %1537 = vmatmul.mubr.bf16.gmra.mrb[0].mxu0 %v509
      %v1538 = vpop.f32.mrb[0].mxu0
      %v1539 = vadd.f32 %v1498, %v1538
      %v1540 = vpop.f32.mrb[0].mxu0
      %v1541 = vpop.f32.mrb[0].mxu0
      %v1542 = vadd.f32 %v1501, %v1541
      %v1543 = vpop.f32.mrb[0].mxu0
      %1544 = vdwg.mxu0
      %1545 = vmatprep.subr.bf16.mxu0 0
      %1546 = vmatpush1.bf16.msra.mxu0 %v1139
      %1547 = vmatprep.subr.bf16.mxu0 0
      %1548 = vmatpush1.bf16.msra.mxu0 %v1140
      %1549 = vmatprep.subr.bf16.mxu0 0
      %1550 = vmatpush1.bf16.msra.mxu0 %v1141
      %1551 = vmatprep.subr.bf16.mxu0 0
      %1552 = vmatpush1.bf16.msra.mxu0 %v1142
      %1553 = vmatprep.subr.bf16.mxu0 0
      %1554 = vmatpush1.bf16.msra.mxu0 %v1143
      %1555 = vmatprep.subr.bf16.mxu0 0
      %1556 = vmatpush1.bf16.msra.mxu0 %v1144
      %1557 = vmatprep.subr.bf16.mxu0 0
      %1558 = vmatpush1.bf16.msra.mxu0 %v1145
      %1559 = vmatprep.subr.bf16.mxu0 0
      %1560 = vmatpush1.bf16.msra.mxu0 %v1146
      %1561 = vmatprep.subr.bf16.mxu0 0
      %1562 = vmatpush1.bf16.msra.mxu0 %v1147
      %1563 = vmatprep.subr.bf16.mxu0 0
      %1564 = vmatpush1.bf16.msra.mxu0 %v1148
      %1565 = vmatprep.subr.bf16.mxu0 0
      %1566 = vmatpush1.bf16.msra.mxu0 %v1149
      %1567 = vmatprep.subr.bf16.mxu0 0
      %1568 = vmatpush1.bf16.msra.mxu0 %v1150
      %1569 = vmatprep.subr.bf16.mxu0 0
      %1570 = vmatpush1.bf16.msra.mxu0 %v1151
      %1571 = vmatprep.subr.bf16.mxu0 0
      %1572 = vmatpush1.bf16.msra.mxu0 %v1152
      %1573 = vmatprep.subr.bf16.mxu0 0
      %1574 = vmatpush1.bf16.msra.mxu0 %v1153
      %1575 = vmatprep.subr.bf16.mxu0 0
      %1576 = vmatpush1.bf16.msra.mxu0 %v1154
      %1577 = vmatprep.mubr.bf16.mxu0 %v512
      %1578 = vmatmul.mubr.bf16.gmra.mrb[0].mxu0 %v511
      %v1579 = vpop.f32.mrb[0].mxu0
      %v1580 = vadd.f32 %v1539, %v1579
      %v1581 = vpop.f32.mrb[0].mxu0
      %v1582 = vpop.f32.mrb[0].mxu0
      %v1583 = vadd.f32 %v1542, %v1582
      %v1584 = vpop.f32.mrb[0].mxu0
      %1585 = vdwg.mxu0
      %1586 = vmatprep.subr.bf16.mxu0 0
      %1587 = vmatpush1.bf16.msra.mxu0 %v1155
      %1588 = vmatprep.subr.bf16.mxu0 0
      %1589 = vmatpush1.bf16.msra.mxu0 %v1156
      %1590 = vmatprep.subr.bf16.mxu0 0
      %1591 = vmatpush1.bf16.msra.mxu0 %v1157
      %1592 = vmatprep.subr.bf16.mxu0 0
      %1593 = vmatpush1.bf16.msra.mxu0 %v1158
      %1594 = vmatprep.subr.bf16.mxu0 0
      %1595 = vmatpush1.bf16.msra.mxu0 %v1159
      %1596 = vmatprep.subr.bf16.mxu0 0
      %1597 = vmatpush1.bf16.msra.mxu0 %v1160
      %1598 = vmatprep.subr.bf16.mxu0 0
      %1599 = vmatpush1.bf16.msra.mxu0 %v1161
      %1600 = vmatprep.subr.bf16.mxu0 0
      %1601 = vmatpush1.bf16.msra.mxu0 %v1162
      %1602 = vmatprep.subr.bf16.mxu0 0
      %1603 = vmatpush1.bf16.msra.mxu0 %v1163
      %1604 = vmatprep.subr.bf16.mxu0 0
      %1605 = vmatpush1.bf16.msra.mxu0 %v1164
      %1606 = vmatprep.subr.bf16.mxu0 0
      %1607 = vmatpush1.bf16.msra.mxu0 %v1165
      %1608 = vmatprep.subr.bf16.mxu0 0
      %1609 = vmatpush1.bf16.msra.mxu0 %v1166
      %1610 = vmatprep.subr.bf16.mxu0 0
      %1611 = vmatpush1.bf16.msra.mxu0 %v1167
      %1612 = vmatprep.subr.bf16.mxu0 0
      %1613 = vmatpush1.bf16.msra.mxu0 %v1168
      %1614 = vmatprep.subr.bf16.mxu0 0
      %1615 = vmatpush1.bf16.msra.mxu0 %v1169
      %1616 = vmatprep.subr.bf16.mxu0 0
      %1617 = vmatpush1.bf16.msra.mxu0 %v1170
      %1618 = vmatprep.mubr.bf16.mxu0 %v514
      %1619 = vmatmul.mubr.bf16.gmra.mrb[0].mxu0 %v513
      %v1620 = vpop.f32.mrb[0].mxu0
      %v1621 = vadd.f32 %v1580, %v1620
      %v1622 = vpop.f32.mrb[0].mxu0
      %v1623 = vpop.f32.mrb[0].mxu0
      %v1624 = vadd.f32 %v1583, %v1623
      %v1625 = vpop.f32.mrb[0].mxu0
      %1626 = vdwg.mxu0
      %vm1627 = vcmask 7168
      %1628 = vst.msk [vmem:[%s170] sm:$0xff] %vm1627, %v1621
      %vm1629 = vcmask 0
      %1630 = vst.msk [vmem:[%s170 + $0x8] sm:$0x1] %vm1629, %v1624
      %p1631 = scmp.lt.s32.totalorder %s14, 1
      %s1632 = scalar_select %p1631, %s14, 1
      %s1633 = smul.addr %s1632, 2
      %s1634 = smul.addr %s1633, 8
      %s1635 = scalar_lea.vmem %s3, %s1634
      // Predicated region
      $region33: #{_lambda_.5} parent=31 // pred_check
        %p1636 = pneg %p100
      $region34: #{_lambda_.5} parent=31 // pred_check_branch
        %1638 = sbr.rel (%p1636) target = $region36
      $region35: #{_lambda_.5} parent=31 // pred_region
        _
      $region36: #{_lambda_.5} parent=31 // pred_fallthru
        _
    $region32: #{_lambda_.5} parent=5 // pred_fallthru
      _
    %p1639 = scmp.le.s32.totalorder 2, %s9
    // Predicated region
    $region37: #{_lambda_.5} parent=5 // pred_check
      %p1640 = pneg %p1639
    $region38: #{_lambda_.5} parent=5 // pred_check_branch
      %1642 = sbr.rel (%p1640) target = $region40
    $region39: #{_lambda_.5} parent=5 // pred_region
      %s1643 = ssub.s32 %s9, 2
      // Predicated region
      $region41: #{_lambda_.5} parent=39 // pred_check
        %p1644 = pneg %p106
      $region42: #{_lambda_.5} parent=39 // pred_check_branch
        %1646 = sbr.rel (%p1644) target = $region44
      $region43: #{_lambda_.5} parent=39 // pred_region
        %p1647 = scmp.lt.s32.totalorder %s15, 1
        %s1648 = scalar_select %p1647, %s15, 1
        %s1649 = smul.addr %s1648, 2
        %s1650 = smul.addr %s1649, 8
        %s1651 = scalar_lea.vmem %s3, %s1650
      $region44: #{_lambda_.5} parent=39 // pred_fallthru
        _
    $region40: #{_lambda_.5} parent=5 // pred_fallthru
      _
  $region6: #{_lambda_.5} parent=0 // loop_footer
    %s13 = sadd.s32 1, %s9
  $region7: #{_lambda_.5} parent=0 // loop_footer_branch
    %8 = sbr.rel target = $region3
  $region8: #{_lambda_.5} parent=0 // loop_exit
    _

</llo_original>
